<compile_context>
chip_gen: v7x
topology: tpu7x:2x2x1
jax: 0.10.0
libtpu: 0.0.40
codegen_flags: <defaults>
</compile_context>

<pallas_src>
import functools

import jax
import jax.numpy as jnp
from jax.experimental import pallas as pl
from jax.experimental.pallas import tpu as pltpu

EPS = 1e-6  # Llama RMSNorm epsilon


# ----------------------------------------------------------------------------- kernel
def llama_forward_kernel(ids_ref, mask_ref,                        # (rows,1) i32 / (TB,1,S) f32
                         table_ref, cos_ref, sin_ref,              # embedding / RoPE tables
                         ln1_ref, wqkv_ref, wo_ref,                # per-layer attention
                         ln2_ref, wgu_ref, wd_ref,                 # per-layer MLP
                         lnf_ref, wlm_ref,                         # final norm / lm head
                         hs_ref, logits_ref,                       # outputs
                         attn_scr,                                 # VMEM scratch (rows, D)
                         *, seq_len, head_dim):
    """Whole Llama forward for one batch tile (grid axis 0 = batch tiles)."""
    rows, d = cos_ref.shape
    s = seq_len
    tb_sz = rows // s
    n_layers = wqkv_ref.shape[0]
    ffn = wgu_ref.shape[2] // 2
    n_heads = d // head_dim
    vocab = table_ref.shape[0]
    vocab_out = wlm_ref.shape[1]
    scale = 1.0 / (head_dim ** 0.5)
    bf16 = jnp.bfloat16

    def rms(x, w):  # f32 elementwise (v5e-safe)
        var = jnp.mean(x * x, axis=-1, keepdims=True)
        return x * jax.lax.rsqrt(var + EPS) * w

    # ---- token embedding: single one-hot MXU matmul (no per-token gather) ----
    idv = ids_ref[...]                                               # (rows, 1) i32
    onehot = (idv == jax.lax.broadcasted_iota(jnp.int32, (rows, vocab), 1)
              ).astype(jnp.float32)
    h = jnp.dot(onehot, table_ref[...], preferred_element_type=jnp.float32)  # (rows, D)
    hs_ref[0] = h.reshape(tb_sz, s, d)

    # ---- causal bias (once) + per-batch-element key-padding row (broadcast) --
    rowi = jax.lax.broadcasted_iota(jnp.int32, (s, s), 0)
    coli = jax.lax.broadcasted_iota(jnp.int32, (s, s), 1)
    causal = jnp.where(coli <= rowi, 0.0, -1e9).astype(jnp.float32)  # (S, S)
    pad_bias = (mask_ref[...] - 1.0) * 1e9                           # (TB, 1, S) f32

    cosf = cos_ref[...]                                              # (rows, D)
    sinf = sin_ref[...]

    for l in range(n_layers):
        # -------- pre-norm RoPE causal self-attention --------
        xn = rms(h, ln1_ref[l]).astype(bf16)
        # wqkv columns = [q, q@R, k, k@R, v]  (R = rotate_half, folded offline)
        qkv = jnp.dot(xn, wqkv_ref[l], preferred_element_type=jnp.float32)   # (rows, 5D)
        q = qkv[:, 0 * d:1 * d] * cosf + qkv[:, 1 * d:2 * d] * sinf          # RoPE = pure VPU
        k = qkv[:, 2 * d:3 * d] * cosf + qkv[:, 3 * d:4 * d] * sinf
        v = qkv[:, 4 * d:5 * d]

        for tb in range(tb_sz):
            r0 = tb * s
            bias = causal + pad_bias[tb]                             # (S, S), broadcast add
            for hh in range(n_heads):
                c0 = hh * head_dim
                qh = q[r0:r0 + s, c0:c0 + head_dim].astype(bf16)
                kh = k[r0:r0 + s, c0:c0 + head_dim].astype(bf16)
                vh = v[r0:r0 + s, c0:c0 + head_dim].astype(bf16)
                # q @ k^T without materializing a transpose
                sc = jax.lax.dot_general(qh, kh, (((1,), (1,)), ((), ())),
                                         preferred_element_type=jnp.float32)
                sc = sc * scale + bias
                m = jnp.max(sc, axis=-1, keepdims=True)
                e = jnp.exp(sc - m)
                denom = jnp.sum(e, axis=-1, keepdims=True)
                p = (e * pl.reciprocal(denom, approx=True)).astype(bf16)     # EUP divide
                # head output written at its lane offset (no lane concatenate)
                attn_scr[r0:r0 + s, c0:c0 + head_dim] = jnp.dot(
                    p, vh, preferred_element_type=jnp.float32)

        h = h + jnp.dot(attn_scr[...].astype(bf16), wo_ref[l],
                        preferred_element_type=jnp.float32)

        # -------- pre-norm SwiGLU MLP --------
        xn = rms(h, ln2_ref[l]).astype(bf16)
        gu = jnp.dot(xn, wgu_ref[l], preferred_element_type=jnp.float32)     # (rows, 2F)
        g = gu[:, 0:ffn]
        u = gu[:, ffn:2 * ffn]
        act = (g * jax.lax.logistic(g) * u).astype(bf16)                     # SiLU(g) * up
        h = h + jnp.dot(act, wd_ref[l], preferred_element_type=jnp.float32)

        if l < n_layers - 1:
            hs_ref[l + 1] = h.reshape(tb_sz, s, d)

    # HF convention: last hidden state is the final-RMSNorm output.
    hn = rms(h, lnf_ref[...])
    hs_ref[n_layers] = hn.reshape(tb_sz, s, d)
    logits = jnp.dot(hn.astype(bf16), wlm_ref[...],
                     preferred_element_type=jnp.float32)                     # (rows, V+1)
    logits_ref[...] = logits.reshape(tb_sz, s, vocab_out)


# ----------------------------------------------------------------------------- helpers
def rope_tables(seq_len, head_dim):
    inv_freq = 1.0 / (10000.0 ** (jnp.arange(0, head_dim, 2, dtype=jnp.float32) / head_dim))
    pos = jnp.arange(seq_len, dtype=jnp.float32)
    freqs = pos[:, None] * inv_freq[None, :]
    emb = jnp.concatenate([freqs, freqs], axis=-1)        # (S, head_dim)
    return jnp.cos(emb), jnp.sin(emb)


def rotate_half_matrix(d, head_dim):
    """R such that x @ R == per-head concat(-x2, x1) (HF rotate_half)."""
    half = head_dim // 2
    ii = jnp.arange(d)[:, None]
    jj = jnp.arange(d)[None, :]
    in_first = (jj % head_dim) < half
    r = (jnp.where(in_first & (ii == jj + half), -1.0, 0.0)
         + jnp.where((~in_first) & (ii == jj - half), 1.0, 0.0))
    return r.astype(jnp.float32)


# ----------------------------------------------------------------------------- wrapper
def llama_forward_pallas(ids, attention_mask, params, head_dim, batch_tile=None):
    b, s = ids.shape
    table = params["embed"]                                # (V, D) f32
    v, d = table.shape
    layers = params["layers"]
    n_layers = len(layers)
    ffn = layers[0]["wg"].shape[1]
    n_heads = d // head_dim
    wdt = jnp.bfloat16

    # Batch tile: process batch_tile*S rows per grid step to fill the MXU.
    if batch_tile is None:
        batch_tile = 1
        for cand in range(b, 0, -1):
            if b % cand == 0 and cand * s <= 256:
                batch_tile = cand
                break
    tb = batch_tile
    rows = tb * s
    n_grid = b // tb

    # Fold rotate_half into the QKV projection: columns [q, q@R, k, k@R, v].
    rot = rotate_half_matrix(d, head_dim)                  # (D, D) f32
    wqkv = jnp.stack([jnp.concatenate(
        [l["wq"], l["wq"] @ rot, l["wk"], l["wk"] @ rot, l["wv"]], axis=1)
        for l in layers]).astype(wdt)                                               # (L,D,5D)
    ln1 = jnp.stack([l["ln1"].reshape(1, d) for l in layers])                       # (L,1,D)
    ln2 = jnp.stack([l["ln2"].reshape(1, d) for l in layers])                       # (L,1,D)
    wo = jnp.stack([l["wo"] for l in layers]).astype(wdt)                           # (L,D,D)
    wgu = jnp.stack([jnp.concatenate([l["wg"], l["wu"]], axis=1)
                     for l in layers]).astype(wdt)                                  # (L,D,2F)
    wd = jnp.stack([l["wd"] for l in layers]).astype(wdt)                           # (L,F,D)
    lnf = params["ln_f"].reshape(1, d)                                              # (1,D)
    wlm = params["lm_head"].astype(wdt)                                             # (D,V+1)
    vocab_out = wlm.shape[1]

    cos, sin = rope_tables(s, head_dim)                    # (S, head_dim)
    cosf = jnp.tile(jnp.tile(cos, (1, n_heads)), (tb, 1))  # (rows, D)
    sinf = jnp.tile(jnp.tile(sin, (1, n_heads)), (tb, 1))

    ids2 = ids.reshape(b * s, 1).astype(jnp.int32)         # column vector of token ids
    mask3 = attention_mask.reshape(b, 1, s).astype(jnp.float32)

    n_states = n_layers + 1

    in_arrays = (ids2, mask3, table, cosf, sinf, ln1, wqkv, wo, ln2, wgu, wd, lnf, wlm)
    in_bytes = sum(int(a.size) * a.dtype.itemsize for a in in_arrays)
    out_bytes = (n_states * rows * d + rows * vocab_out) * 4
    vmem_limit = int(min(64 * 1024 * 1024,
                         max(16 * 1024 * 1024, 2 * (in_bytes + out_bytes) + (4 << 20))))

    in_specs = [
        pl.BlockSpec((rows, 1), lambda i: (i, 0)),                     # token ids
        pl.BlockSpec((tb, 1, s), lambda i: (i, 0, 0)),                 # attention mask
        pl.BlockSpec((v, d), lambda i: (0, 0)),                        # embedding table
        pl.BlockSpec((rows, d), lambda i: (0, 0)),                     # cos
        pl.BlockSpec((rows, d), lambda i: (0, 0)),                     # sin
        pl.BlockSpec((n_layers, 1, d), lambda i: (0, 0, 0)),           # ln1
        pl.BlockSpec((n_layers, d, 5 * d), lambda i: (0, 0, 0)),       # wqkv (+RoPE rot)
        pl.BlockSpec((n_layers, d, d), lambda i: (0, 0, 0)),           # wo
        pl.BlockSpec((n_layers, 1, d), lambda i: (0, 0, 0)),           # ln2
        pl.BlockSpec((n_layers, d, 2 * ffn), lambda i: (0, 0, 0)),     # wgu
        pl.BlockSpec((n_layers, ffn, d), lambda i: (0, 0, 0)),         # wd
        pl.BlockSpec((1, d), lambda i: (0, 0)),                        # ln_f
        pl.BlockSpec((d, vocab_out), lambda i: (0, 0)),                # lm_head
    ]
    out_specs = (
        pl.BlockSpec((n_states, tb, s, d), lambda i: (0, i, 0, 0)),    # hidden states
        pl.BlockSpec((tb, s, vocab_out), lambda i: (i, 0, 0)),         # logits
    )

    hs, logits = pl.pallas_call(
        functools.partial(llama_forward_kernel, seq_len=s, head_dim=head_dim),
        grid=(n_grid,),
        in_specs=in_specs,
        out_specs=out_specs,
        out_shape=(
            jax.ShapeDtypeStruct((n_states, b, s, d), jnp.float32),
            jax.ShapeDtypeStruct((b, s, vocab_out), jnp.float32),
        ),
        scratch_shapes=[pltpu.VMEM((rows, d), jnp.float32)],
        compiler_params=pltpu.CompilerParams(
            dimension_semantics=("parallel",),
            vmem_limit_bytes=vmem_limit),
    )(*in_arrays)
    return hs, logits


@functools.partial(jax.jit, static_argnames=("head_dim",))
def llama_embedding_forward(ids, attention_mask, params, *, head_dim):
    """Mirrors LlamaEmbedding.forward: returns (outputs, attention_mask)."""
    hs, logits = llama_forward_pallas(ids, attention_mask, params, head_dim)
    n_states = hs.shape[0]
    hidden_states = tuple(hs[i] for i in range(n_states))   # (embed, l1, ..., norm(lN))
    outputs = {"logits": logits, "hidden_states": hidden_states}
    return outputs, attention_mask


# ----------------------------------------------------------------------------- main
if __name__ == "__main__":
    # Small synthetic Llama config
    B, S = 2, 8                 # batch, max_length
    D, H, HD = 32, 4, 8         # hidden, heads, head_dim
    F = 64                      # intermediate (SwiGLU) size
    VOCAB = 127                 # base vocab; +1 for added <PAD> -> 128
    PAD_ID = VOCAB              # id of the added pad token
    N_LAYERS = 2

    key = jax.random.PRNGKey(0)

    def nrm(k, shape):
        return jax.random.normal(k, shape, dtype=jnp.float32) * 0.02

    keys = jax.random.split(key, 4 + 7 * N_LAYERS)
    ki = iter(keys)

    params = {
        "embed": nrm(next(ki), (VOCAB + 1, D)),          # resize_token_embeddings(V+1)
        "ln_f": jnp.ones((1, D), jnp.float32),
        "lm_head": nrm(next(ki), (D, VOCAB + 1)),
        "layers": [],
    }
    for _ in range(N_LAYERS):
        params["layers"].append({
            "ln1": jnp.ones((1, D), jnp.float32),
            "ln2": jnp.ones((1, D), jnp.float32),
            "wq": nrm(next(ki), (D, D)),
            "wk": nrm(next(ki), (D, D)),
            "wv": nrm(next(ki), (D, D)),
            "wo": nrm(next(ki), (D, D)),
            "wg": nrm(next(ki), (D, F)),
            "wu": nrm(next(ki), (D, F)),
            "wd": nrm(next(ki), (F, D)),
        })

    # Synthetic "tokenizer" output: padded/truncated to max_length=S.
    ids = jax.random.randint(next(ki), (B, S), 0, VOCAB, dtype=jnp.int32)
    attention_mask = jnp.array(
        [[1, 1, 1, 1, 1, 1, 1, 1],
         [1, 1, 1, 1, 1, 0, 0, 0]], dtype=jnp.int32)
    ids = jnp.where(attention_mask == 1, ids, PAD_ID)

    outputs, mask = llama_embedding_forward(ids, attention_mask, params, head_dim=HD)
    jax.block_until_ready(outputs["logits"])
    jax.block_until_ready(outputs["hidden_states"])

    assert outputs["logits"].shape == (B, S, VOCAB + 1)
    assert len(outputs["hidden_states"]) == N_LAYERS + 1
    assert all(h.shape == (B, S, D) for h in outputs["hidden_states"])
    assert mask.shape == (B, S)
    print("KERNEL_OK")
</pallas_src>

<mosaic_0001>
module attributes {stable_mosaic.version = 11 : i64} {
  func.func @llama_forward_kernel(%arg0: i32, %arg1: memref<16x1xi32, #tpu.memory_space<vmem>>, %arg2: memref<2x1x8xf32, #tpu.memory_space<vmem>>, %arg3: memref<128x32xf32, #tpu.memory_space<vmem>>, %arg4: memref<16x32xf32, #tpu.memory_space<vmem>>, %arg5: memref<16x32xf32, #tpu.memory_space<vmem>>, %arg6: memref<2x1x32xf32, #tpu.memory_space<vmem>>, %arg7: memref<2x32x160xbf16, #tpu.memory_space<vmem>>, %arg8: memref<2x32x32xbf16, #tpu.memory_space<vmem>>, %arg9: memref<2x1x32xf32, #tpu.memory_space<vmem>>, %arg10: memref<2x32x128xbf16, #tpu.memory_space<vmem>>, %arg11: memref<2x64x32xbf16, #tpu.memory_space<vmem>>, %arg12: memref<1x32xf32, #tpu.memory_space<vmem>>, %arg13: memref<32x128xbf16, #tpu.memory_space<vmem>>, %arg14: memref<3x2x8x32xf32, #tpu.memory_space<vmem>>, %arg15: memref<2x8x128xf32, #tpu.memory_space<vmem>>, %arg16: memref<16x32xf32, #tpu.memory_space<vmem>>) attributes {dimension_semantics = [#tpu.dimension_semantics<parallel>], iteration_bounds = array<i64: 1>, scalar_prefetch = 0 : i64, scratch_operands = 1 : i64, tpu.core_type = #tpu.core_type<tc>, window_params = [{transform_indices = @transform_0, window_bounds = array<i64: 16, 1>}, {transform_indices = @transform_1, window_bounds = array<i64: 2, 1, 8>}, {pipeline_mode = #tpu.pipeline_mode<synchronous>, transform_indices = @transform_2, window_bounds = array<i64: 128, 32>}, {pipeline_mode = #tpu.pipeline_mode<synchronous>, transform_indices = @transform_3, window_bounds = array<i64: 16, 32>}, {pipeline_mode = #tpu.pipeline_mode<synchronous>, transform_indices = @transform_4, window_bounds = array<i64: 16, 32>}, {pipeline_mode = #tpu.pipeline_mode<synchronous>, transform_indices = @transform_5, window_bounds = array<i64: 2, 1, 32>}, {pipeline_mode = #tpu.pipeline_mode<synchronous>, transform_indices = @transform_6, window_bounds = array<i64: 2, 32, 160>}, {pipeline_mode = #tpu.pipeline_mode<synchronous>, transform_indices = @transform_7, window_bounds = array<i64: 2, 32, 32>}, {pipeline_mode = #tpu.pipeline_mode<synchronous>, transform_indices = @transform_8, window_bounds = array<i64: 2, 1, 32>}, {pipeline_mode = #tpu.pipeline_mode<synchronous>, transform_indices = @transform_9, window_bounds = array<i64: 2, 32, 128>}, {pipeline_mode = #tpu.pipeline_mode<synchronous>, transform_indices = @transform_10, window_bounds = array<i64: 2, 64, 32>}, {pipeline_mode = #tpu.pipeline_mode<synchronous>, transform_indices = @transform_11, window_bounds = array<i64: 1, 32>}, {pipeline_mode = #tpu.pipeline_mode<synchronous>, transform_indices = @transform_12, window_bounds = array<i64: 32, 128>}, {transform_indices = @transform_13, window_bounds = array<i64: 3, 2, 8, 32>}, {transform_indices = @transform_14, window_bounds = array<i64: 2, 8, 128>}]} {
    %c0 = arith.constant 0 : index
    %c0_0 = arith.constant 0 : index
    %0 = vector.load %arg1[%c0, %c0_0] : memref<16x1xi32, #tpu.memory_space<vmem>>, vector<16x1xi32>
    %1 = tpu.iota {dimensions = array<i32: 1>} : vector<16x128xi32>
    %2 = vector.broadcast %0 : vector<16x1xi32> to vector<16x128xi32>
    %3 = arith.cmpi eq, %2, %1 : vector<16x128xi32>
    %4 = arith.extui %3 : vector<16x128xi1> to vector<16x128xi32>
    %5 = arith.sitofp %4 : vector<16x128xi32> to vector<16x128xf32>
    %c0_1 = arith.constant 0 : index
    %c0_2 = arith.constant 0 : index
    %6 = vector.load %arg3[%c0_1, %c0_2] : memref<128x32xf32, #tpu.memory_space<vmem>>, vector<128x32xf32>
    %cst = arith.constant dense<0.000000e+00> : vector<16x32xf32>
    %7 = tpu.matmul %5, %6, %cst {dimension_numbers = #tpu.dot_dimension_numbers<[1], [0], [0], [1], [0, 0, 1, 1], [], []>} : vector<16x128xf32>, vector<128x32xf32>, vector<16x32xf32> -> vector<16x32xf32>
    %8 = vector.shape_cast %7 : vector<16x32xf32> to vector<2x8x32xf32>
    %c0_3 = arith.constant 0 : index
    %c0_4 = arith.constant 0 : index
    %c0_5 = arith.constant 0 : index
    %c0_6 = arith.constant 0 : index
    %9 = vector.load %arg14[%c0_3, %c0_4, %c0_5, %c0_6] : memref<3x2x8x32xf32, #tpu.memory_space<vmem>>, vector<1x2x8x32xf32>
    %10 = vector.shape_cast %9 : vector<1x2x8x32xf32> to vector<2x8x32xf32>
    %11 = vector.shape_cast %8 : vector<2x8x32xf32> to vector<1x2x8x32xf32>
    tpu.vector_store %arg14[%c0_3, %c0_4, %c0_5, %c0_6], %11 {strides = array<i32>} : memref<3x2x8x32xf32, #tpu.memory_space<vmem>>, vector<1x2x8x32xf32>,
    %12 = tpu.iota {dimensions = array<i32: 0>} : vector<8x8xi32>
    %13 = tpu.iota {dimensions = array<i32: 1>} : vector<8x8xi32>
    %14 = arith.cmpi sle, %13, %12 : vector<8x8xi32>
    %cst_7 = arith.constant 0.000000e+00 : f32
    %cst_8 = arith.constant -1.000000e+09 : f32
    %15 = vector.broadcast %cst_7 : f32 to vector<8x8xf32>
    %16 = vector.broadcast %cst_8 : f32 to vector<8x8xf32>
    %17 = arith.select %14, %15, %16 : vector<8x8xi1>, vector<8x8xf32>
    %c0_9 = arith.constant 0 : index
    %c0_10 = arith.constant 0 : index
    %c0_11 = arith.constant 0 : index
    %18 = vector.load %arg2[%c0_9, %c0_10, %c0_11] : memref<2x1x8xf32, #tpu.memory_space<vmem>>, vector<2x1x8xf32>
    %cst_12 = arith.constant 1.000000e+00 : f32
    %19 = vector.broadcast %cst_12 : f32 to vector<2x1x8xf32>
    %20 = arith.subf %18, %19 : vector<2x1x8xf32>
    %cst_13 = arith.constant 1.000000e+09 : f32
    %21 = vector.broadcast %cst_13 : f32 to vector<2x1x8xf32>
    %22 = arith.mulf %20, %21 : vector<2x1x8xf32>
    %c0_14 = arith.constant 0 : index
    %c0_15 = arith.constant 0 : index
    %23 = vector.load %arg4[%c0_14, %c0_15] : memref<16x32xf32, #tpu.memory_space<vmem>>, vector<16x32xf32>
    %c0_16 = arith.constant 0 : index
    %c0_17 = arith.constant 0 : index
    %24 = vector.load %arg5[%c0_16, %c0_17] : memref<16x32xf32, #tpu.memory_space<vmem>>, vector<16x32xf32>
    %c0_18 = arith.constant 0 : index
    %c0_19 = arith.constant 0 : index
    %c0_20 = arith.constant 0 : index
    %25 = vector.load %arg6[%c0_18, %c0_19, %c0_20] : memref<2x1x32xf32, #tpu.memory_space<vmem>>, vector<1x1x32xf32>
    %26 = vector.shape_cast %25 : vector<1x1x32xf32> to vector<1x32xf32>
    %27 = arith.mulf %7, %7 : vector<16x32xf32>
    %cst_21 = arith.constant dense<0.000000e+00> : vector<16xf32>
    %28 = vector.multi_reduction <add>, %27, %cst_21 [1] : vector<16x32xf32> to vector<16xf32>
    %29 = vector.shape_cast %28 : vector<16xf32> to vector<16x1xf32>
    %cst_22 = arith.constant 3.200000e+01 : f32
    %30 = vector.broadcast %cst_22 : f32 to vector<16x1xf32>
    %31 = arith.divf %29, %30 : vector<16x1xf32>
    %cst_23 = arith.constant 9.99999997E-7 : f32
    %32 = vector.broadcast %cst_23 : f32 to vector<16x1xf32>
    %33 = arith.addf %31, %32 : vector<16x1xf32>
    %34 = math.rsqrt %33 : vector<16x1xf32>
    %35 = vector.broadcast %34 : vector<16x1xf32> to vector<16x32xf32>
    %36 = arith.mulf %7, %35 : vector<16x32xf32>
    %37 = vector.broadcast %26 : vector<1x32xf32> to vector<16x32xf32>
    %38 = arith.mulf %36, %37 : vector<16x32xf32>
    %39 = arith.truncf %38 : vector<16x32xf32> to vector<16x32xbf16>
    %c0_24 = arith.constant 0 : index
    %c0_25 = arith.constant 0 : index
    %c0_26 = arith.constant 0 : index
    %40 = vector.load %arg7[%c0_24, %c0_25, %c0_26] : memref<2x32x160xbf16, #tpu.memory_space<vmem>>, vector<1x32x160xbf16>
    %41 = vector.shape_cast %40 : vector<1x32x160xbf16> to vector<32x160xbf16>
    %cst_27 = arith.constant dense<0.000000e+00> : vector<16x160xf32>
    %42 = tpu.matmul %39, %41, %cst_27 {dimension_numbers = #tpu.dot_dimension_numbers<[1], [0], [0], [1], [0, 0, 1, 1], [], []>} : vector<16x32xbf16>, vector<32x160xbf16>, vector<16x160xf32> -> vector<16x160xf32>
    %43 = vector.extract_strided_slice %42 {offsets = [0, 0], sizes = [16, 32], strides = [1, 1]} : vector<16x160xf32> to vector<16x32xf32>
    %44 = arith.mulf %43, %23 : vector<16x32xf32>
    %45 = vector.extract_strided_slice %42 {offsets = [0, 32], sizes = [16, 32], strides = [1, 1]} : vector<16x160xf32> to vector<16x32xf32>
    %46 = arith.mulf %45, %24 : vector<16x32xf32>
    %47 = arith.addf %44, %46 : vector<16x32xf32>
    %48 = vector.extract_strided_slice %42 {offsets = [0, 64], sizes = [16, 32], strides = [1, 1]} : vector<16x160xf32> to vector<16x32xf32>
    %49 = arith.mulf %48, %23 : vector<16x32xf32>
    %50 = vector.extract_strided_slice %42 {offsets = [0, 96], sizes = [16, 32], strides = [1, 1]} : vector<16x160xf32> to vector<16x32xf32>
    %51 = arith.mulf %50, %24 : vector<16x32xf32>
    %52 = arith.addf %49, %51 : vector<16x32xf32>
    %53 = vector.extract_strided_slice %42 {offsets = [0, 128], sizes = [16, 32], strides = [1, 1]} : vector<16x160xf32> to vector<16x32xf32>
    %54 = vector.extract_strided_slice %22 {offsets = [0, 0, 0], sizes = [1, 1, 8], strides = [1, 1, 1]} : vector<2x1x8xf32> to vector<1x1x8xf32>
    %55 = vector.shape_cast %54 : vector<1x1x8xf32> to vector<1x8xf32>
    %56 = vector.broadcast %55 : vector<1x8xf32> to vector<8x8xf32>
    %57 = arith.addf %17, %56 : vector<8x8xf32>
    %58 = vector.extract_strided_slice %47 {offsets = [0, 0], sizes = [8, 8], strides = [1, 1]} : vector<16x32xf32> to vector<8x8xf32>
    %59 = arith.truncf %58 : vector<8x8xf32> to vector<8x8xbf16>
    %60 = vector.extract_strided_slice %52 {offsets = [0, 0], sizes = [8, 8], strides = [1, 1]} : vector<16x32xf32> to vector<8x8xf32>
    %61 = arith.truncf %60 : vector<8x8xf32> to vector<8x8xbf16>
    %62 = vector.extract_strided_slice %53 {offsets = [0, 0], sizes = [8, 8], strides = [1, 1]} : vector<16x32xf32> to vector<8x8xf32>
    %63 = arith.truncf %62 : vector<8x8xf32> to vector<8x8xbf16>
    %cst_28 = arith.constant dense<0.000000e+00> : vector<8x8xf32>
    %64 = tpu.matmul %59, %61, %cst_28 {dimension_numbers = #tpu.dot_dimension_numbers<[1], [1], [0], [0], [0, 0, 1, 0], [], []>} : vector<8x8xbf16>, vector<8x8xbf16>, vector<8x8xf32> -> vector<8x8xf32>
    %cst_29 = arith.constant 0.353553385 : f32
    %65 = vector.broadcast %cst_29 : f32 to vector<8x8xf32>
    %66 = arith.mulf %64, %65 : vector<8x8xf32>
    %67 = arith.addf %66, %57 : vector<8x8xf32>
    %cst_30 = arith.constant dense<0xFF800000> : vector<8xf32>
    %68 = vector.multi_reduction <maximumf>, %67, %cst_30 [1] : vector<8x8xf32> to vector<8xf32>
    %69 = vector.shape_cast %68 : vector<8xf32> to vector<8x1xf32>
    %70 = vector.broadcast %69 : vector<8x1xf32> to vector<8x8xf32>
    %71 = arith.subf %67, %70 : vector<8x8xf32>
    %72 = math.exp %71 : vector<8x8xf32>
    %cst_31 = arith.constant dense<0.000000e+00> : vector<8xf32>
    %73 = vector.multi_reduction <add>, %72, %cst_31 [1] : vector<8x8xf32> to vector<8xf32>
    %74 = vector.shape_cast %73 : vector<8xf32> to vector<8x1xf32>
    %75 = tpu.reciprocal %74 {approx = true} : vector<8x1xf32> -> vector<8x1xf32>
    %76 = vector.broadcast %75 : vector<8x1xf32> to vector<8x8xf32>
    %77 = arith.mulf %72, %76 : vector<8x8xf32>
    %78 = arith.truncf %77 : vector<8x8xf32> to vector<8x8xbf16>
    %cst_32 = arith.constant dense<0.000000e+00> : vector<8x8xf32>
    %79 = tpu.matmul %78, %63, %cst_32 {dimension_numbers = #tpu.dot_dimension_numbers<[1], [0], [0], [1], [0, 0, 1, 1], [], []>} : vector<8x8xbf16>, vector<8x8xbf16>, vector<8x8xf32> -> vector<8x8xf32>
    %c0_33 = arith.constant 0 : index
    %c0_34 = arith.constant 0 : index
    %80 = vector.load %arg16[%c0_33, %c0_34] : memref<16x32xf32, #tpu.memory_space<vmem>>, vector<8x8xf32>
    tpu.vector_store %arg16[%c0_33, %c0_34], %79 {strides = array<i32>} : memref<16x32xf32, #tpu.memory_space<vmem>>, vector<8x8xf32>,
    %81 = vector.extract_strided_slice %47 {offsets = [0, 8], sizes = [8, 8], strides = [1, 1]} : vector<16x32xf32> to vector<8x8xf32>
    %82 = arith.truncf %81 : vector<8x8xf32> to vector<8x8xbf16>
    %83 = vector.extract_strided_slice %52 {offsets = [0, 8], sizes = [8, 8], strides = [1, 1]} : vector<16x32xf32> to vector<8x8xf32>
    %84 = arith.truncf %83 : vector<8x8xf32> to vector<8x8xbf16>
    %85 = vector.extract_strided_slice %53 {offsets = [0, 8], sizes = [8, 8], strides = [1, 1]} : vector<16x32xf32> to vector<8x8xf32>
    %86 = arith.truncf %85 : vector<8x8xf32> to vector<8x8xbf16>
    %cst_35 = arith.constant dense<0.000000e+00> : vector<8x8xf32>
    %87 = tpu.matmul %82, %84, %cst_35 {dimension_numbers = #tpu.dot_dimension_numbers<[1], [1], [0], [0], [0, 0, 1, 0], [], []>} : vector<8x8xbf16>, vector<8x8xbf16>, vector<8x8xf32> -> vector<8x8xf32>
    %cst_36 = arith.constant 0.353553385 : f32
    %88 = vector.broadcast %cst_36 : f32 to vector<8x8xf32>
    %89 = arith.mulf %87, %88 : vector<8x8xf32>
    %90 = arith.addf %89, %57 : vector<8x8xf32>
    %cst_37 = arith.constant dense<0xFF800000> : vector<8xf32>
    %91 = vector.multi_reduction <maximumf>, %90, %cst_37 [1] : vector<8x8xf32> to vector<8xf32>
    %92 = vector.shape_cast %91 : vector<8xf32> to vector<8x1xf32>
    %93 = vector.broadcast %92 : vector<8x1xf32> to vector<8x8xf32>
    %94 = arith.subf %90, %93 : vector<8x8xf32>
    %95 = math.exp %94 : vector<8x8xf32>
    %cst_38 = arith.constant dense<0.000000e+00> : vector<8xf32>
    %96 = vector.multi_reduction <add>, %95, %cst_38 [1] : vector<8x8xf32> to vector<8xf32>
    %97 = vector.shape_cast %96 : vector<8xf32> to vector<8x1xf32>
    %98 = tpu.reciprocal %97 {approx = true} : vector<8x1xf32> -> vector<8x1xf32>
    %99 = vector.broadcast %98 : vector<8x1xf32> to vector<8x8xf32>
    %100 = arith.mulf %95, %99 : vector<8x8xf32>
    %101 = arith.truncf %100 : vector<8x8xf32> to vector<8x8xbf16>
    %cst_39 = arith.constant dense<0.000000e+00> : vector<8x8xf32>
    %102 = tpu.matmul %101, %86, %cst_39 {dimension_numbers = #tpu.dot_dimension_numbers<[1], [0], [0], [1], [0, 0, 1, 1], [], []>} : vector<8x8xbf16>, vector<8x8xbf16>, vector<8x8xf32> -> vector<8x8xf32>
    %c0_40 = arith.constant 0 : index
    %c8 = arith.constant 8 : index
    %103 = vector.load %arg16[%c0_40, %c8] : memref<16x32xf32, #tpu.memory_space<vmem>>, vector<8x8xf32>
    tpu.vector_store %arg16[%c0_40, %c8], %102 {strides = array<i32>} : memref<16x32xf32, #tpu.memory_space<vmem>>, vector<8x8xf32>,
    %104 = vector.extract_strided_slice %47 {offsets = [0, 16], sizes = [8, 8], strides = [1, 1]} : vector<16x32xf32> to vector<8x8xf32>
    %105 = arith.truncf %104 : vector<8x8xf32> to vector<8x8xbf16>
    %106 = vector.extract_strided_slice %52 {offsets = [0, 16], sizes = [8, 8], strides = [1, 1]} : vector<16x32xf32> to vector<8x8xf32>
    %107 = arith.truncf %106 : vector<8x8xf32> to vector<8x8xbf16>
    %108 = vector.extract_strided_slice %53 {offsets = [0, 16], sizes = [8, 8], strides = [1, 1]} : vector<16x32xf32> to vector<8x8xf32>
    %109 = arith.truncf %108 : vector<8x8xf32> to vector<8x8xbf16>
    %cst_41 = arith.constant dense<0.000000e+00> : vector<8x8xf32>
    %110 = tpu.matmul %105, %107, %cst_41 {dimension_numbers = #tpu.dot_dimension_numbers<[1], [1], [0], [0], [0, 0, 1, 0], [], []>} : vector<8x8xbf16>, vector<8x8xbf16>, vector<8x8xf32> -> vector<8x8xf32>
    %cst_42 = arith.constant 0.353553385 : f32
    %111 = vector.broadcast %cst_42 : f32 to vector<8x8xf32>
    %112 = arith.mulf %110, %111 : vector<8x8xf32>
    %113 = arith.addf %112, %57 : vector<8x8xf32>
    %cst_43 = arith.constant dense<0xFF800000> : vector<8xf32>
    %114 = vector.multi_reduction <maximumf>, %113, %cst_43 [1] : vector<8x8xf32> to vector<8xf32>
    %115 = vector.shape_cast %114 : vector<8xf32> to vector<8x1xf32>
    %116 = vector.broadcast %115 : vector<8x1xf32> to vector<8x8xf32>
    %117 = arith.subf %113, %116 : vector<8x8xf32>
    %118 = math.exp %117 : vector<8x8xf32>
    %cst_44 = arith.constant dense<0.000000e+00> : vector<8xf32>
    %119 = vector.multi_reduction <add>, %118, %cst_44 [1] : vector<8x8xf32> to vector<8xf32>
    %120 = vector.shape_cast %119 : vector<8xf32> to vector<8x1xf32>
    %121 = tpu.reciprocal %120 {approx = true} : vector<8x1xf32> -> vector<8x1xf32>
    %122 = vector.broadcast %121 : vector<8x1xf32> to vector<8x8xf32>
    %123 = arith.mulf %118, %122 : vector<8x8xf32>
    %124 = arith.truncf %123 : vector<8x8xf32> to vector<8x8xbf16>
    %cst_45 = arith.constant dense<0.000000e+00> : vector<8x8xf32>
    %125 = tpu.matmul %124, %109, %cst_45 {dimension_numbers = #tpu.dot_dimension_numbers<[1], [0], [0], [1], [0, 0, 1, 1], [], []>} : vector<8x8xbf16>, vector<8x8xbf16>, vector<8x8xf32> -> vector<8x8xf32>
    %c0_46 = arith.constant 0 : index
    %c16 = arith.constant 16 : index
    %126 = vector.load %arg16[%c0_46, %c16] : memref<16x32xf32, #tpu.memory_space<vmem>>, vector<8x8xf32>
    tpu.vector_store %arg16[%c0_46, %c16], %125 {strides = array<i32>} : memref<16x32xf32, #tpu.memory_space<vmem>>, vector<8x8xf32>,
    %127 = vector.extract_strided_slice %47 {offsets = [0, 24], sizes = [8, 8], strides = [1, 1]} : vector<16x32xf32> to vector<8x8xf32>
    %128 = arith.truncf %127 : vector<8x8xf32> to vector<8x8xbf16>
    %129 = vector.extract_strided_slice %52 {offsets = [0, 24], sizes = [8, 8], strides = [1, 1]} : vector<16x32xf32> to vector<8x8xf32>
    %130 = arith.truncf %129 : vector<8x8xf32> to vector<8x8xbf16>
    %131 = vector.extract_strided_slice %53 {offsets = [0, 24], sizes = [8, 8], strides = [1, 1]} : vector<16x32xf32> to vector<8x8xf32>
    %132 = arith.truncf %131 : vector<8x8xf32> to vector<8x8xbf16>
    %cst_47 = arith.constant dense<0.000000e+00> : vector<8x8xf32>
    %133 = tpu.matmul %128, %130, %cst_47 {dimension_numbers = #tpu.dot_dimension_numbers<[1], [1], [0], [0], [0, 0, 1, 0], [], []>} : vector<8x8xbf16>, vector<8x8xbf16>, vector<8x8xf32> -> vector<8x8xf32>
    %cst_48 = arith.constant 0.353553385 : f32
    %134 = vector.broadcast %cst_48 : f32 to vector<8x8xf32>
    %135 = arith.mulf %133, %134 : vector<8x8xf32>
    %136 = arith.addf %135, %57 : vector<8x8xf32>
    %cst_49 = arith.constant dense<0xFF800000> : vector<8xf32>
    %137 = vector.multi_reduction <maximumf>, %136, %cst_49 [1] : vector<8x8xf32> to vector<8xf32>
    %138 = vector.shape_cast %137 : vector<8xf32> to vector<8x1xf32>
    %139 = vector.broadcast %138 : vector<8x1xf32> to vector<8x8xf32>
    %140 = arith.subf %136, %139 : vector<8x8xf32>
    %141 = math.exp %140 : vector<8x8xf32>
    %cst_50 = arith.constant dense<0.000000e+00> : vector<8xf32>
    %142 = vector.multi_reduction <add>, %141, %cst_50 [1] : vector<8x8xf32> to vector<8xf32>
    %143 = vector.shape_cast %142 : vector<8xf32> to vector<8x1xf32>
    %144 = tpu.reciprocal %143 {approx = true} : vector<8x1xf32> -> vector<8x1xf32>
    %145 = vector.broadcast %144 : vector<8x1xf32> to vector<8x8xf32>
    %146 = arith.mulf %141, %145 : vector<8x8xf32>
    %147 = arith.truncf %146 : vector<8x8xf32> to vector<8x8xbf16>
    %cst_51 = arith.constant dense<0.000000e+00> : vector<8x8xf32>
    %148 = tpu.matmul %147, %132, %cst_51 {dimension_numbers = #tpu.dot_dimension_numbers<[1], [0], [0], [1], [0, 0, 1, 1], [], []>} : vector<8x8xbf16>, vector<8x8xbf16>, vector<8x8xf32> -> vector<8x8xf32>
    %c0_52 = arith.constant 0 : index
    %c24 = arith.constant 24 : index
    %149 = vector.load %arg16[%c0_52, %c24] : memref<16x32xf32, #tpu.memory_space<vmem>>, vector<8x8xf32>
    tpu.vector_store %arg16[%c0_52, %c24], %148 {strides = array<i32>} : memref<16x32xf32, #tpu.memory_space<vmem>>, vector<8x8xf32>,
    %150 = vector.extract_strided_slice %22 {offsets = [1, 0, 0], sizes = [1, 1, 8], strides = [1, 1, 1]} : vector<2x1x8xf32> to vector<1x1x8xf32>
    %151 = vector.shape_cast %150 : vector<1x1x8xf32> to vector<1x8xf32>
    %152 = vector.broadcast %151 : vector<1x8xf32> to vector<8x8xf32>
    %153 = arith.addf %17, %152 : vector<8x8xf32>
    %154 = vector.extract_strided_slice %47 {offsets = [8, 0], sizes = [8, 8], strides = [1, 1]} : vector<16x32xf32> to vector<8x8xf32>
    %155 = arith.truncf %154 : vector<8x8xf32> to vector<8x8xbf16>
    %156 = vector.extract_strided_slice %52 {offsets = [8, 0], sizes = [8, 8], strides = [1, 1]} : vector<16x32xf32> to vector<8x8xf32>
    %157 = arith.truncf %156 : vector<8x8xf32> to vector<8x8xbf16>
    %158 = vector.extract_strided_slice %53 {offsets = [8, 0], sizes = [8, 8], strides = [1, 1]} : vector<16x32xf32> to vector<8x8xf32>
    %159 = arith.truncf %158 : vector<8x8xf32> to vector<8x8xbf16>
    %cst_53 = arith.constant dense<0.000000e+00> : vector<8x8xf32>
    %160 = tpu.matmul %155, %157, %cst_53 {dimension_numbers = #tpu.dot_dimension_numbers<[1], [1], [0], [0], [0, 0, 1, 0], [], []>} : vector<8x8xbf16>, vector<8x8xbf16>, vector<8x8xf32> -> vector<8x8xf32>
    %cst_54 = arith.constant 0.353553385 : f32
    %161 = vector.broadcast %cst_54 : f32 to vector<8x8xf32>
    %162 = arith.mulf %160, %161 : vector<8x8xf32>
    %163 = arith.addf %162, %153 : vector<8x8xf32>
    %cst_55 = arith.constant dense<0xFF800000> : vector<8xf32>
    %164 = vector.multi_reduction <maximumf>, %163, %cst_55 [1] : vector<8x8xf32> to vector<8xf32>
    %165 = vector.shape_cast %164 : vector<8xf32> to vector<8x1xf32>
    %166 = vector.broadcast %165 : vector<8x1xf32> to vector<8x8xf32>
    %167 = arith.subf %163, %166 : vector<8x8xf32>
    %168 = math.exp %167 : vector<8x8xf32>
    %cst_56 = arith.constant dense<0.000000e+00> : vector<8xf32>
    %169 = vector.multi_reduction <add>, %168, %cst_56 [1] : vector<8x8xf32> to vector<8xf32>
    %170 = vector.shape_cast %169 : vector<8xf32> to vector<8x1xf32>
    %171 = tpu.reciprocal %170 {approx = true} : vector<8x1xf32> -> vector<8x1xf32>
    %172 = vector.broadcast %171 : vector<8x1xf32> to vector<8x8xf32>
    %173 = arith.mulf %168, %172 : vector<8x8xf32>
    %174 = arith.truncf %173 : vector<8x8xf32> to vector<8x8xbf16>
    %cst_57 = arith.constant dense<0.000000e+00> : vector<8x8xf32>
    %175 = tpu.matmul %174, %159, %cst_57 {dimension_numbers = #tpu.dot_dimension_numbers<[1], [0], [0], [1], [0, 0, 1, 1], [], []>} : vector<8x8xbf16>, vector<8x8xbf16>, vector<8x8xf32> -> vector<8x8xf32>
    %c8_58 = arith.constant 8 : index
    %c0_59 = arith.constant 0 : index
    %176 = vector.load %arg16[%c8_58, %c0_59] : memref<16x32xf32, #tpu.memory_space<vmem>>, vector<8x8xf32>
    tpu.vector_store %arg16[%c8_58, %c0_59], %175 {strides = array<i32>} : memref<16x32xf32, #tpu.memory_space<vmem>>, vector<8x8xf32>,
    %177 = vector.extract_strided_slice %47 {offsets = [8, 8], sizes = [8, 8], strides = [1, 1]} : vector<16x32xf32> to vector<8x8xf32>
    %178 = arith.truncf %177 : vector<8x8xf32> to vector<8x8xbf16>
    %179 = vector.extract_strided_slice %52 {offsets = [8, 8], sizes = [8, 8], strides = [1, 1]} : vector<16x32xf32> to vector<8x8xf32>
    %180 = arith.truncf %179 : vector<8x8xf32> to vector<8x8xbf16>
    %181 = vector.extract_strided_slice %53 {offsets = [8, 8], sizes = [8, 8], strides = [1, 1]} : vector<16x32xf32> to vector<8x8xf32>
    %182 = arith.truncf %181 : vector<8x8xf32> to vector<8x8xbf16>
    %cst_60 = arith.constant dense<0.000000e+00> : vector<8x8xf32>
    %183 = tpu.matmul %178, %180, %cst_60 {dimension_numbers = #tpu.dot_dimension_numbers<[1], [1], [0], [0], [0, 0, 1, 0], [], []>} : vector<8x8xbf16>, vector<8x8xbf16>, vector<8x8xf32> -> vector<8x8xf32>
    %cst_61 = arith.constant 0.353553385 : f32
    %184 = vector.broadcast %cst_61 : f32 to vector<8x8xf32>
    %185 = arith.mulf %183, %184 : vector<8x8xf32>
    %186 = arith.addf %185, %153 : vector<8x8xf32>
    %cst_62 = arith.constant dense<0xFF800000> : vector<8xf32>
    %187 = vector.multi_reduction <maximumf>, %186, %cst_62 [1] : vector<8x8xf32> to vector<8xf32>
    %188 = vector.shape_cast %187 : vector<8xf32> to vector<8x1xf32>
    %189 = vector.broadcast %188 : vector<8x1xf32> to vector<8x8xf32>
    %190 = arith.subf %186, %189 : vector<8x8xf32>
    %191 = math.exp %190 : vector<8x8xf32>
    %cst_63 = arith.constant dense<0.000000e+00> : vector<8xf32>
    %192 = vector.multi_reduction <add>, %191, %cst_63 [1] : vector<8x8xf32> to vector<8xf32>
    %193 = vector.shape_cast %192 : vector<8xf32> to vector<8x1xf32>
    %194 = tpu.reciprocal %193 {approx = true} : vector<8x1xf32> -> vector<8x1xf32>
    %195 = vector.broadcast %194 : vector<8x1xf32> to vector<8x8xf32>
    %196 = arith.mulf %191, %195 : vector<8x8xf32>
    %197 = arith.truncf %196 : vector<8x8xf32> to vector<8x8xbf16>
    %cst_64 = arith.constant dense<0.000000e+00> : vector<8x8xf32>
    %198 = tpu.matmul %197, %182, %cst_64 {dimension_numbers = #tpu.dot_dimension_numbers<[1], [0], [0], [1], [0, 0, 1, 1], [], []>} : vector<8x8xbf16>, vector<8x8xbf16>, vector<8x8xf32> -> vector<8x8xf32>
    %c8_65 = arith.constant 8 : index
    %c8_66 = arith.constant 8 : index
    %199 = vector.load %arg16[%c8_65, %c8_66] : memref<16x32xf32, #tpu.memory_space<vmem>>, vector<8x8xf32>
    tpu.vector_store %arg16[%c8_65, %c8_66], %198 {strides = array<i32>} : memref<16x32xf32, #tpu.memory_space<vmem>>, vector<8x8xf32>,
    %200 = vector.extract_strided_slice %47 {offsets = [8, 16], sizes = [8, 8], strides = [1, 1]} : vector<16x32xf32> to vector<8x8xf32>
    %201 = arith.truncf %200 : vector<8x8xf32> to vector<8x8xbf16>
    %202 = vector.extract_strided_slice %52 {offsets = [8, 16], sizes = [8, 8], strides = [1, 1]} : vector<16x32xf32> to vector<8x8xf32>
    %203 = arith.truncf %202 : vector<8x8xf32> to vector<8x8xbf16>
    %204 = vector.extract_strided_slice %53 {offsets = [8, 16], sizes = [8, 8], strides = [1, 1]} : vector<16x32xf32> to vector<8x8xf32>
    %205 = arith.truncf %204 : vector<8x8xf32> to vector<8x8xbf16>
    %cst_67 = arith.constant dense<0.000000e+00> : vector<8x8xf32>
    %206 = tpu.matmul %201, %203, %cst_67 {dimension_numbers = #tpu.dot_dimension_numbers<[1], [1], [0], [0], [0, 0, 1, 0], [], []>} : vector<8x8xbf16>, vector<8x8xbf16>, vector<8x8xf32> -> vector<8x8xf32>
    %cst_68 = arith.constant 0.353553385 : f32
    %207 = vector.broadcast %cst_68 : f32 to vector<8x8xf32>
    %208 = arith.mulf %206, %207 : vector<8x8xf32>
    %209 = arith.addf %208, %153 : vector<8x8xf32>
    %cst_69 = arith.constant dense<0xFF800000> : vector<8xf32>
    %210 = vector.multi_reduction <maximumf>, %209, %cst_69 [1] : vector<8x8xf32> to vector<8xf32>
    %211 = vector.shape_cast %210 : vector<8xf32> to vector<8x1xf32>
    %212 = vector.broadcast %211 : vector<8x1xf32> to vector<8x8xf32>
    %213 = arith.subf %209, %212 : vector<8x8xf32>
    %214 = math.exp %213 : vector<8x8xf32>
    %cst_70 = arith.constant dense<0.000000e+00> : vector<8xf32>
    %215 = vector.multi_reduction <add>, %214, %cst_70 [1] : vector<8x8xf32> to vector<8xf32>
    %216 = vector.shape_cast %215 : vector<8xf32> to vector<8x1xf32>
    %217 = tpu.reciprocal %216 {approx = true} : vector<8x1xf32> -> vector<8x1xf32>
    %218 = vector.broadcast %217 : vector<8x1xf32> to vector<8x8xf32>
    %219 = arith.mulf %214, %218 : vector<8x8xf32>
    %220 = arith.truncf %219 : vector<8x8xf32> to vector<8x8xbf16>
    %cst_71 = arith.constant dense<0.000000e+00> : vector<8x8xf32>
    %221 = tpu.matmul %220, %205, %cst_71 {dimension_numbers = #tpu.dot_dimension_numbers<[1], [0], [0], [1], [0, 0, 1, 1], [], []>} : vector<8x8xbf16>, vector<8x8xbf16>, vector<8x8xf32> -> vector<8x8xf32>
    %c8_72 = arith.constant 8 : index
    %c16_73 = arith.constant 16 : index
    %222 = vector.load %arg16[%c8_72, %c16_73] : memref<16x32xf32, #tpu.memory_space<vmem>>, vector<8x8xf32>
    tpu.vector_store %arg16[%c8_72, %c16_73], %221 {strides = array<i32>} : memref<16x32xf32, #tpu.memory_space<vmem>>, vector<8x8xf32>,
    %223 = vector.extract_strided_slice %47 {offsets = [8, 24], sizes = [8, 8], strides = [1, 1]} : vector<16x32xf32> to vector<8x8xf32>
    %224 = arith.truncf %223 : vector<8x8xf32> to vector<8x8xbf16>
    %225 = vector.extract_strided_slice %52 {offsets = [8, 24], sizes = [8, 8], strides = [1, 1]} : vector<16x32xf32> to vector<8x8xf32>
    %226 = arith.truncf %225 : vector<8x8xf32> to vector<8x8xbf16>
    %227 = vector.extract_strided_slice %53 {offsets = [8, 24], sizes = [8, 8], strides = [1, 1]} : vector<16x32xf32> to vector<8x8xf32>
    %228 = arith.truncf %227 : vector<8x8xf32> to vector<8x8xbf16>
    %cst_74 = arith.constant dense<0.000000e+00> : vector<8x8xf32>
    %229 = tpu.matmul %224, %226, %cst_74 {dimension_numbers = #tpu.dot_dimension_numbers<[1], [1], [0], [0], [0, 0, 1, 0], [], []>} : vector<8x8xbf16>, vector<8x8xbf16>, vector<8x8xf32> -> vector<8x8xf32>
    %cst_75 = arith.constant 0.353553385 : f32
    %230 = vector.broadcast %cst_75 : f32 to vector<8x8xf32>
    %231 = arith.mulf %229, %230 : vector<8x8xf32>
    %232 = arith.addf %231, %153 : vector<8x8xf32>
    %cst_76 = arith.constant dense<0xFF800000> : vector<8xf32>
    %233 = vector.multi_reduction <maximumf>, %232, %cst_76 [1] : vector<8x8xf32> to vector<8xf32>
    %234 = vector.shape_cast %233 : vector<8xf32> to vector<8x1xf32>
    %235 = vector.broadcast %234 : vector<8x1xf32> to vector<8x8xf32>
    %236 = arith.subf %232, %235 : vector<8x8xf32>
    %237 = math.exp %236 : vector<8x8xf32>
    %cst_77 = arith.constant dense<0.000000e+00> : vector<8xf32>
    %238 = vector.multi_reduction <add>, %237, %cst_77 [1] : vector<8x8xf32> to vector<8xf32>
    %239 = vector.shape_cast %238 : vector<8xf32> to vector<8x1xf32>
    %240 = tpu.reciprocal %239 {approx = true} : vector<8x1xf32> -> vector<8x1xf32>
    %241 = vector.broadcast %240 : vector<8x1xf32> to vector<8x8xf32>
    %242 = arith.mulf %237, %241 : vector<8x8xf32>
    %243 = arith.truncf %242 : vector<8x8xf32> to vector<8x8xbf16>
    %cst_78 = arith.constant dense<0.000000e+00> : vector<8x8xf32>
    %244 = tpu.matmul %243, %228, %cst_78 {dimension_numbers = #tpu.dot_dimension_numbers<[1], [0], [0], [1], [0, 0, 1, 1], [], []>} : vector<8x8xbf16>, vector<8x8xbf16>, vector<8x8xf32> -> vector<8x8xf32>
    %c8_79 = arith.constant 8 : index
    %c24_80 = arith.constant 24 : index
    %245 = vector.load %arg16[%c8_79, %c24_80] : memref<16x32xf32, #tpu.memory_space<vmem>>, vector<8x8xf32>
    tpu.vector_store %arg16[%c8_79, %c24_80], %244 {strides = array<i32>} : memref<16x32xf32, #tpu.memory_space<vmem>>, vector<8x8xf32>,
    %c0_81 = arith.constant 0 : index
    %c0_82 = arith.constant 0 : index
    %246 = vector.load %arg16[%c0_81, %c0_82] : memref<16x32xf32, #tpu.memory_space<vmem>>, vector<16x32xf32>
    %247 = arith.truncf %246 : vector<16x32xf32> to vector<16x32xbf16>
    %c0_83 = arith.constant 0 : index
    %c0_84 = arith.constant 0 : index
    %c0_85 = arith.constant 0 : index
    %248 = vector.load %arg8[%c0_83, %c0_84, %c0_85] : memref<2x32x32xbf16, #tpu.memory_space<vmem>>, vector<1x32x32xbf16>
    %249 = vector.shape_cast %248 : vector<1x32x32xbf16> to vector<32x32xbf16>
    %cst_86 = arith.constant dense<0.000000e+00> : vector<16x32xf32>
    %250 = tpu.matmul %247, %249, %cst_86 {dimension_numbers = #tpu.dot_dimension_numbers<[1], [0], [0], [1], [0, 0, 1, 1], [], []>} : vector<16x32xbf16>, vector<32x32xbf16>, vector<16x32xf32> -> vector<16x32xf32>
    %251 = arith.addf %7, %250 : vector<16x32xf32>
    %c0_87 = arith.constant 0 : index
    %c0_88 = arith.constant 0 : index
    %c0_89 = arith.constant 0 : index
    %252 = vector.load %arg9[%c0_87, %c0_88, %c0_89] : memref<2x1x32xf32, #tpu.memory_space<vmem>>, vector<1x1x32xf32>
    %253 = vector.shape_cast %252 : vector<1x1x32xf32> to vector<1x32xf32>
    %254 = arith.mulf %251, %251 : vector<16x32xf32>
    %cst_90 = arith.constant dense<0.000000e+00> : vector<16xf32>
    %255 = vector.multi_reduction <add>, %254, %cst_90 [1] : vector<16x32xf32> to vector<16xf32>
    %256 = vector.shape_cast %255 : vector<16xf32> to vector<16x1xf32>
    %cst_91 = arith.constant 3.200000e+01 : f32
    %257 = vector.broadcast %cst_91 : f32 to vector<16x1xf32>
    %258 = arith.divf %256, %257 : vector<16x1xf32>
    %cst_92 = arith.constant 9.99999997E-7 : f32
    %259 = vector.broadcast %cst_92 : f32 to vector<16x1xf32>
    %260 = arith.addf %258, %259 : vector<16x1xf32>
    %261 = math.rsqrt %260 : vector<16x1xf32>
    %262 = vector.broadcast %261 : vector<16x1xf32> to vector<16x32xf32>
    %263 = arith.mulf %251, %262 : vector<16x32xf32>
    %264 = vector.broadcast %253 : vector<1x32xf32> to vector<16x32xf32>
    %265 = arith.mulf %263, %264 : vector<16x32xf32>
    %266 = arith.truncf %265 : vector<16x32xf32> to vector<16x32xbf16>
    %c0_93 = arith.constant 0 : index
    %c0_94 = arith.constant 0 : index
    %c0_95 = arith.constant 0 : index
    %267 = vector.load %arg10[%c0_93, %c0_94, %c0_95] : memref<2x32x128xbf16, #tpu.memory_space<vmem>>, vector<1x32x128xbf16>
    %268 = vector.shape_cast %267 : vector<1x32x128xbf16> to vector<32x128xbf16>
    %cst_96 = arith.constant dense<0.000000e+00> : vector<16x128xf32>
    %269 = tpu.matmul %266, %268, %cst_96 {dimension_numbers = #tpu.dot_dimension_numbers<[1], [0], [0], [1], [0, 0, 1, 1], [], []>} : vector<16x32xbf16>, vector<32x128xbf16>, vector<16x128xf32> -> vector<16x128xf32>
    %270 = vector.extract_strided_slice %269 {offsets = [0, 0], sizes = [16, 64], strides = [1, 1]} : vector<16x128xf32> to vector<16x64xf32>
    %271 = vector.extract_strided_slice %269 {offsets = [0, 64], sizes = [16, 64], strides = [1, 1]} : vector<16x128xf32> to vector<16x64xf32>
    %272 = arith.negf %270 : vector<16x64xf32>
    %273 = math.exp %272 : vector<16x64xf32>
    %cst_97 = arith.constant 1.000000e+00 : f32
    %274 = vector.broadcast %cst_97 : f32 to vector<16x64xf32>
    %275 = arith.addf %274, %273 : vector<16x64xf32>
    %276 = arith.divf %274, %275 : vector<16x64xf32>
    %277 = arith.mulf %270, %276 : vector<16x64xf32>
    %278 = arith.mulf %277, %271 : vector<16x64xf32>
    %279 = arith.truncf %278 : vector<16x64xf32> to vector<16x64xbf16>
    %c0_98 = arith.constant 0 : index
    %c0_99 = arith.constant 0 : index
    %c0_100 = arith.constant 0 : index
    %280 = vector.load %arg11[%c0_98, %c0_99, %c0_100] : memref<2x64x32xbf16, #tpu.memory_space<vmem>>, vector<1x64x32xbf16>
    %281 = vector.shape_cast %280 : vector<1x64x32xbf16> to vector<64x32xbf16>
    %cst_101 = arith.constant dense<0.000000e+00> : vector<16x32xf32>
    %282 = tpu.matmul %279, %281, %cst_101 {dimension_numbers = #tpu.dot_dimension_numbers<[1], [0], [0], [1], [0, 0, 1, 1], [], []>} : vector<16x64xbf16>, vector<64x32xbf16>, vector<16x32xf32> -> vector<16x32xf32>
    %283 = arith.addf %251, %282 : vector<16x32xf32>
    %284 = vector.shape_cast %283 : vector<16x32xf32> to vector<2x8x32xf32>
    %c1 = arith.constant 1 : index
    %c0_102 = arith.constant 0 : index
    %c0_103 = arith.constant 0 : index
    %c0_104 = arith.constant 0 : index
    %285 = vector.load %arg14[%c1, %c0_102, %c0_103, %c0_104] : memref<3x2x8x32xf32, #tpu.memory_space<vmem>>, vector<1x2x8x32xf32>
    %286 = vector.shape_cast %285 : vector<1x2x8x32xf32> to vector<2x8x32xf32>
    %287 = vector.shape_cast %284 : vector<2x8x32xf32> to vector<1x2x8x32xf32>
    tpu.vector_store %arg14[%c1, %c0_102, %c0_103, %c0_104], %287 {strides = array<i32>} : memref<3x2x8x32xf32, #tpu.memory_space<vmem>>, vector<1x2x8x32xf32>,
    %c1_105 = arith.constant 1 : index
    %c0_106 = arith.constant 0 : index
    %c0_107 = arith.constant 0 : index
    %288 = vector.load %arg6[%c1_105, %c0_106, %c0_107] : memref<2x1x32xf32, #tpu.memory_space<vmem>>, vector<1x1x32xf32>
    %289 = vector.shape_cast %288 : vector<1x1x32xf32> to vector<1x32xf32>
    %290 = arith.mulf %283, %283 : vector<16x32xf32>
    %cst_108 = arith.constant dense<0.000000e+00> : vector<16xf32>
    %291 = vector.multi_reduction <add>, %290, %cst_108 [1] : vector<16x32xf32> to vector<16xf32>
    %292 = vector.shape_cast %291 : vector<16xf32> to vector<16x1xf32>
    %cst_109 = arith.constant 3.200000e+01 : f32
    %293 = vector.broadcast %cst_109 : f32 to vector<16x1xf32>
    %294 = arith.divf %292, %293 : vector<16x1xf32>
    %cst_110 = arith.constant 9.99999997E-7 : f32
    %295 = vector.broadcast %cst_110 : f32 to vector<16x1xf32>
    %296 = arith.addf %294, %295 : vector<16x1xf32>
    %297 = math.rsqrt %296 : vector<16x1xf32>
    %298 = vector.broadcast %297 : vector<16x1xf32> to vector<16x32xf32>
    %299 = arith.mulf %283, %298 : vector<16x32xf32>
    %300 = vector.broadcast %289 : vector<1x32xf32> to vector<16x32xf32>
    %301 = arith.mulf %299, %300 : vector<16x32xf32>
    %302 = arith.truncf %301 : vector<16x32xf32> to vector<16x32xbf16>
    %c1_111 = arith.constant 1 : index
    %c0_112 = arith.constant 0 : index
    %c0_113 = arith.constant 0 : index
    %303 = vector.load %arg7[%c1_111, %c0_112, %c0_113] : memref<2x32x160xbf16, #tpu.memory_space<vmem>>, vector<1x32x160xbf16>
    %304 = vector.shape_cast %303 : vector<1x32x160xbf16> to vector<32x160xbf16>
    %cst_114 = arith.constant dense<0.000000e+00> : vector<16x160xf32>
    %305 = tpu.matmul %302, %304, %cst_114 {dimension_numbers = #tpu.dot_dimension_numbers<[1], [0], [0], [1], [0, 0, 1, 1], [], []>} : vector<16x32xbf16>, vector<32x160xbf16>, vector<16x160xf32> -> vector<16x160xf32>
    %306 = vector.extract_strided_slice %305 {offsets = [0, 0], sizes = [16, 32], strides = [1, 1]} : vector<16x160xf32> to vector<16x32xf32>
    %307 = arith.mulf %306, %23 : vector<16x32xf32>
    %308 = vector.extract_strided_slice %305 {offsets = [0, 32], sizes = [16, 32], strides = [1, 1]} : vector<16x160xf32> to vector<16x32xf32>
    %309 = arith.mulf %308, %24 : vector<16x32xf32>
    %310 = arith.addf %307, %309 : vector<16x32xf32>
    %311 = vector.extract_strided_slice %305 {offsets = [0, 64], sizes = [16, 32], strides = [1, 1]} : vector<16x160xf32> to vector<16x32xf32>
    %312 = arith.mulf %311, %23 : vector<16x32xf32>
    %313 = vector.extract_strided_slice %305 {offsets = [0, 96], sizes = [16, 32], strides = [1, 1]} : vector<16x160xf32> to vector<16x32xf32>
    %314 = arith.mulf %313, %24 : vector<16x32xf32>
    %315 = arith.addf %312, %314 : vector<16x32xf32>
    %316 = vector.extract_strided_slice %305 {offsets = [0, 128], sizes = [16, 32], strides = [1, 1]} : vector<16x160xf32> to vector<16x32xf32>
    %317 = vector.extract_strided_slice %22 {offsets = [0, 0, 0], sizes = [1, 1, 8], strides = [1, 1, 1]} : vector<2x1x8xf32> to vector<1x1x8xf32>
    %318 = vector.shape_cast %317 : vector<1x1x8xf32> to vector<1x8xf32>
    %319 = vector.broadcast %318 : vector<1x8xf32> to vector<8x8xf32>
    %320 = arith.addf %17, %319 : vector<8x8xf32>
    %321 = vector.extract_strided_slice %310 {offsets = [0, 0], sizes = [8, 8], strides = [1, 1]} : vector<16x32xf32> to vector<8x8xf32>
    %322 = arith.truncf %321 : vector<8x8xf32> to vector<8x8xbf16>
    %323 = vector.extract_strided_slice %315 {offsets = [0, 0], sizes = [8, 8], strides = [1, 1]} : vector<16x32xf32> to vector<8x8xf32>
    %324 = arith.truncf %323 : vector<8x8xf32> to vector<8x8xbf16>
    %325 = vector.extract_strided_slice %316 {offsets = [0, 0], sizes = [8, 8], strides = [1, 1]} : vector<16x32xf32> to vector<8x8xf32>
    %326 = arith.truncf %325 : vector<8x8xf32> to vector<8x8xbf16>
    %cst_115 = arith.constant dense<0.000000e+00> : vector<8x8xf32>
    %327 = tpu.matmul %322, %324, %cst_115 {dimension_numbers = #tpu.dot_dimension_numbers<[1], [1], [0], [0], [0, 0, 1, 0], [], []>} : vector<8x8xbf16>, vector<8x8xbf16>, vector<8x8xf32> -> vector<8x8xf32>
    %cst_116 = arith.constant 0.353553385 : f32
    %328 = vector.broadcast %cst_116 : f32 to vector<8x8xf32>
    %329 = arith.mulf %327, %328 : vector<8x8xf32>
    %330 = arith.addf %329, %320 : vector<8x8xf32>
    %cst_117 = arith.constant dense<0xFF800000> : vector<8xf32>
    %331 = vector.multi_reduction <maximumf>, %330, %cst_117 [1] : vector<8x8xf32> to vector<8xf32>
    %332 = vector.shape_cast %331 : vector<8xf32> to vector<8x1xf32>
    %333 = vector.broadcast %332 : vector<8x1xf32> to vector<8x8xf32>
    %334 = arith.subf %330, %333 : vector<8x8xf32>
    %335 = math.exp %334 : vector<8x8xf32>
    %cst_118 = arith.constant dense<0.000000e+00> : vector<8xf32>
    %336 = vector.multi_reduction <add>, %335, %cst_118 [1] : vector<8x8xf32> to vector<8xf32>
    %337 = vector.shape_cast %336 : vector<8xf32> to vector<8x1xf32>
    %338 = tpu.reciprocal %337 {approx = true} : vector<8x1xf32> -> vector<8x1xf32>
    %339 = vector.broadcast %338 : vector<8x1xf32> to vector<8x8xf32>
    %340 = arith.mulf %335, %339 : vector<8x8xf32>
    %341 = arith.truncf %340 : vector<8x8xf32> to vector<8x8xbf16>
    %cst_119 = arith.constant dense<0.000000e+00> : vector<8x8xf32>
    %342 = tpu.matmul %341, %326, %cst_119 {dimension_numbers = #tpu.dot_dimension_numbers<[1], [0], [0], [1], [0, 0, 1, 1], [], []>} : vector<8x8xbf16>, vector<8x8xbf16>, vector<8x8xf32> -> vector<8x8xf32>
    %c0_120 = arith.constant 0 : index
    %c0_121 = arith.constant 0 : index
    %343 = vector.load %arg16[%c0_120, %c0_121] : memref<16x32xf32, #tpu.memory_space<vmem>>, vector<8x8xf32>
    tpu.vector_store %arg16[%c0_120, %c0_121], %342 {strides = array<i32>} : memref<16x32xf32, #tpu.memory_space<vmem>>, vector<8x8xf32>,
    %344 = vector.extract_strided_slice %310 {offsets = [0, 8], sizes = [8, 8], strides = [1, 1]} : vector<16x32xf32> to vector<8x8xf32>
    %345 = arith.truncf %344 : vector<8x8xf32> to vector<8x8xbf16>
    %346 = vector.extract_strided_slice %315 {offsets = [0, 8], sizes = [8, 8], strides = [1, 1]} : vector<16x32xf32> to vector<8x8xf32>
    %347 = arith.truncf %346 : vector<8x8xf32> to vector<8x8xbf16>
    %348 = vector.extract_strided_slice %316 {offsets = [0, 8], sizes = [8, 8], strides = [1, 1]} : vector<16x32xf32> to vector<8x8xf32>
    %349 = arith.truncf %348 : vector<8x8xf32> to vector<8x8xbf16>
    %cst_122 = arith.constant dense<0.000000e+00> : vector<8x8xf32>
    %350 = tpu.matmul %345, %347, %cst_122 {dimension_numbers = #tpu.dot_dimension_numbers<[1], [1], [0], [0], [0, 0, 1, 0], [], []>} : vector<8x8xbf16>, vector<8x8xbf16>, vector<8x8xf32> -> vector<8x8xf32>
    %cst_123 = arith.constant 0.353553385 : f32
    %351 = vector.broadcast %cst_123 : f32 to vector<8x8xf32>
    %352 = arith.mulf %350, %351 : vector<8x8xf32>
    %353 = arith.addf %352, %320 : vector<8x8xf32>
    %cst_124 = arith.constant dense<0xFF800000> : vector<8xf32>
    %354 = vector.multi_reduction <maximumf>, %353, %cst_124 [1] : vector<8x8xf32> to vector<8xf32>
    %355 = vector.shape_cast %354 : vector<8xf32> to vector<8x1xf32>
    %356 = vector.broadcast %355 : vector<8x1xf32> to vector<8x8xf32>
    %357 = arith.subf %353, %356 : vector<8x8xf32>
    %358 = math.exp %357 : vector<8x8xf32>
    %cst_125 = arith.constant dense<0.000000e+00> : vector<8xf32>
    %359 = vector.multi_reduction <add>, %358, %cst_125 [1] : vector<8x8xf32> to vector<8xf32>
    %360 = vector.shape_cast %359 : vector<8xf32> to vector<8x1xf32>
    %361 = tpu.reciprocal %360 {approx = true} : vector<8x1xf32> -> vector<8x1xf32>
    %362 = vector.broadcast %361 : vector<8x1xf32> to vector<8x8xf32>
    %363 = arith.mulf %358, %362 : vector<8x8xf32>
    %364 = arith.truncf %363 : vector<8x8xf32> to vector<8x8xbf16>
    %cst_126 = arith.constant dense<0.000000e+00> : vector<8x8xf32>
    %365 = tpu.matmul %364, %349, %cst_126 {dimension_numbers = #tpu.dot_dimension_numbers<[1], [0], [0], [1], [0, 0, 1, 1], [], []>} : vector<8x8xbf16>, vector<8x8xbf16>, vector<8x8xf32> -> vector<8x8xf32>
    %c0_127 = arith.constant 0 : index
    %c8_128 = arith.constant 8 : index
    %366 = vector.load %arg16[%c0_127, %c8_128] : memref<16x32xf32, #tpu.memory_space<vmem>>, vector<8x8xf32>
    tpu.vector_store %arg16[%c0_127, %c8_128], %365 {strides = array<i32>} : memref<16x32xf32, #tpu.memory_space<vmem>>, vector<8x8xf32>,
    %367 = vector.extract_strided_slice %310 {offsets = [0, 16], sizes = [8, 8], strides = [1, 1]} : vector<16x32xf32> to vector<8x8xf32>
    %368 = arith.truncf %367 : vector<8x8xf32> to vector<8x8xbf16>
    %369 = vector.extract_strided_slice %315 {offsets = [0, 16], sizes = [8, 8], strides = [1, 1]} : vector<16x32xf32> to vector<8x8xf32>
    %370 = arith.truncf %369 : vector<8x8xf32> to vector<8x8xbf16>
    %371 = vector.extract_strided_slice %316 {offsets = [0, 16], sizes = [8, 8], strides = [1, 1]} : vector<16x32xf32> to vector<8x8xf32>
    %372 = arith.truncf %371 : vector<8x8xf32> to vector<8x8xbf16>
    %cst_129 = arith.constant dense<0.000000e+00> : vector<8x8xf32>
    %373 = tpu.matmul %368, %370, %cst_129 {dimension_numbers = #tpu.dot_dimension_numbers<[1], [1], [0], [0], [0, 0, 1, 0], [], []>} : vector<8x8xbf16>, vector<8x8xbf16>, vector<8x8xf32> -> vector<8x8xf32>
    %cst_130 = arith.constant 0.353553385 : f32
    %374 = vector.broadcast %cst_130 : f32 to vector<8x8xf32>
    %375 = arith.mulf %373, %374 : vector<8x8xf32>
    %376 = arith.addf %375, %320 : vector<8x8xf32>
    %cst_131 = arith.constant dense<0xFF800000> : vector<8xf32>
    %377 = vector.multi_reduction <maximumf>, %376, %cst_131 [1] : vector<8x8xf32> to vector<8xf32>
    %378 = vector.shape_cast %377 : vector<8xf32> to vector<8x1xf32>
    %379 = vector.broadcast %378 : vector<8x1xf32> to vector<8x8xf32>
    %380 = arith.subf %376, %379 : vector<8x8xf32>
    %381 = math.exp %380 : vector<8x8xf32>
    %cst_132 = arith.constant dense<0.000000e+00> : vector<8xf32>
    %382 = vector.multi_reduction <add>, %381, %cst_132 [1] : vector<8x8xf32> to vector<8xf32>
    %383 = vector.shape_cast %382 : vector<8xf32> to vector<8x1xf32>
    %384 = tpu.reciprocal %383 {approx = true} : vector<8x1xf32> -> vector<8x1xf32>
    %385 = vector.broadcast %384 : vector<8x1xf32> to vector<8x8xf32>
    %386 = arith.mulf %381, %385 : vector<8x8xf32>
    %387 = arith.truncf %386 : vector<8x8xf32> to vector<8x8xbf16>
    %cst_133 = arith.constant dense<0.000000e+00> : vector<8x8xf32>
    %388 = tpu.matmul %387, %372, %cst_133 {dimension_numbers = #tpu.dot_dimension_numbers<[1], [0], [0], [1], [0, 0, 1, 1], [], []>} : vector<8x8xbf16>, vector<8x8xbf16>, vector<8x8xf32> -> vector<8x8xf32>
    %c0_134 = arith.constant 0 : index
    %c16_135 = arith.constant 16 : index
    %389 = vector.load %arg16[%c0_134, %c16_135] : memref<16x32xf32, #tpu.memory_space<vmem>>, vector<8x8xf32>
    tpu.vector_store %arg16[%c0_134, %c16_135], %388 {strides = array<i32>} : memref<16x32xf32, #tpu.memory_space<vmem>>, vector<8x8xf32>,
    %390 = vector.extract_strided_slice %310 {offsets = [0, 24], sizes = [8, 8], strides = [1, 1]} : vector<16x32xf32> to vector<8x8xf32>
    %391 = arith.truncf %390 : vector<8x8xf32> to vector<8x8xbf16>
    %392 = vector.extract_strided_slice %315 {offsets = [0, 24], sizes = [8, 8], strides = [1, 1]} : vector<16x32xf32> to vector<8x8xf32>
    %393 = arith.truncf %392 : vector<8x8xf32> to vector<8x8xbf16>
    %394 = vector.extract_strided_slice %316 {offsets = [0, 24], sizes = [8, 8], strides = [1, 1]} : vector<16x32xf32> to vector<8x8xf32>
    %395 = arith.truncf %394 : vector<8x8xf32> to vector<8x8xbf16>
    %cst_136 = arith.constant dense<0.000000e+00> : vector<8x8xf32>
    %396 = tpu.matmul %391, %393, %cst_136 {dimension_numbers = #tpu.dot_dimension_numbers<[1], [1], [0], [0], [0, 0, 1, 0], [], []>} : vector<8x8xbf16>, vector<8x8xbf16>, vector<8x8xf32> -> vector<8x8xf32>
    %cst_137 = arith.constant 0.353553385 : f32
    %397 = vector.broadcast %cst_137 : f32 to vector<8x8xf32>
    %398 = arith.mulf %396, %397 : vector<8x8xf32>
    %399 = arith.addf %398, %320 : vector<8x8xf32>
    %cst_138 = arith.constant dense<0xFF800000> : vector<8xf32>
    %400 = vector.multi_reduction <maximumf>, %399, %cst_138 [1] : vector<8x8xf32> to vector<8xf32>
    %401 = vector.shape_cast %400 : vector<8xf32> to vector<8x1xf32>
    %402 = vector.broadcast %401 : vector<8x1xf32> to vector<8x8xf32>
    %403 = arith.subf %399, %402 : vector<8x8xf32>
    %404 = math.exp %403 : vector<8x8xf32>
    %cst_139 = arith.constant dense<0.000000e+00> : vector<8xf32>
    %405 = vector.multi_reduction <add>, %404, %cst_139 [1] : vector<8x8xf32> to vector<8xf32>
    %406 = vector.shape_cast %405 : vector<8xf32> to vector<8x1xf32>
    %407 = tpu.reciprocal %406 {approx = true} : vector<8x1xf32> -> vector<8x1xf32>
    %408 = vector.broadcast %407 : vector<8x1xf32> to vector<8x8xf32>
    %409 = arith.mulf %404, %408 : vector<8x8xf32>
    %410 = arith.truncf %409 : vector<8x8xf32> to vector<8x8xbf16>
    %cst_140 = arith.constant dense<0.000000e+00> : vector<8x8xf32>
    %411 = tpu.matmul %410, %395, %cst_140 {dimension_numbers = #tpu.dot_dimension_numbers<[1], [0], [0], [1], [0, 0, 1, 1], [], []>} : vector<8x8xbf16>, vector<8x8xbf16>, vector<8x8xf32> -> vector<8x8xf32>
    %c0_141 = arith.constant 0 : index
    %c24_142 = arith.constant 24 : index
    %412 = vector.load %arg16[%c0_141, %c24_142] : memref<16x32xf32, #tpu.memory_space<vmem>>, vector<8x8xf32>
    tpu.vector_store %arg16[%c0_141, %c24_142], %411 {strides = array<i32>} : memref<16x32xf32, #tpu.memory_space<vmem>>, vector<8x8xf32>,
    %413 = vector.extract_strided_slice %22 {offsets = [1, 0, 0], sizes = [1, 1, 8], strides = [1, 1, 1]} : vector<2x1x8xf32> to vector<1x1x8xf32>
    %414 = vector.shape_cast %413 : vector<1x1x8xf32> to vector<1x8xf32>
    %415 = vector.broadcast %414 : vector<1x8xf32> to vector<8x8xf32>
    %416 = arith.addf %17, %415 : vector<8x8xf32>
    %417 = vector.extract_strided_slice %310 {offsets = [8, 0], sizes = [8, 8], strides = [1, 1]} : vector<16x32xf32> to vector<8x8xf32>
    %418 = arith.truncf %417 : vector<8x8xf32> to vector<8x8xbf16>
    %419 = vector.extract_strided_slice %315 {offsets = [8, 0], sizes = [8, 8], strides = [1, 1]} : vector<16x32xf32> to vector<8x8xf32>
    %420 = arith.truncf %419 : vector<8x8xf32> to vector<8x8xbf16>
    %421 = vector.extract_strided_slice %316 {offsets = [8, 0], sizes = [8, 8], strides = [1, 1]} : vector<16x32xf32> to vector<8x8xf32>
    %422 = arith.truncf %421 : vector<8x8xf32> to vector<8x8xbf16>
    %cst_143 = arith.constant dense<0.000000e+00> : vector<8x8xf32>
    %423 = tpu.matmul %418, %420, %cst_143 {dimension_numbers = #tpu.dot_dimension_numbers<[1], [1], [0], [0], [0, 0, 1, 0], [], []>} : vector<8x8xbf16>, vector<8x8xbf16>, vector<8x8xf32> -> vector<8x8xf32>
    %cst_144 = arith.constant 0.353553385 : f32
    %424 = vector.broadcast %cst_144 : f32 to vector<8x8xf32>
    %425 = arith.mulf %423, %424 : vector<8x8xf32>
    %426 = arith.addf %425, %416 : vector<8x8xf32>
    %cst_145 = arith.constant dense<0xFF800000> : vector<8xf32>
    %427 = vector.multi_reduction <maximumf>, %426, %cst_145 [1] : vector<8x8xf32> to vector<8xf32>
    %428 = vector.shape_cast %427 : vector<8xf32> to vector<8x1xf32>
    %429 = vector.broadcast %428 : vector<8x1xf32> to vector<8x8xf32>
    %430 = arith.subf %426, %429 : vector<8x8xf32>
    %431 = math.exp %430 : vector<8x8xf32>
    %cst_146 = arith.constant dense<0.000000e+00> : vector<8xf32>
    %432 = vector.multi_reduction <add>, %431, %cst_146 [1] : vector<8x8xf32> to vector<8xf32>
    %433 = vector.shape_cast %432 : vector<8xf32> to vector<8x1xf32>
    %434 = tpu.reciprocal %433 {approx = true} : vector<8x1xf32> -> vector<8x1xf32>
    %435 = vector.broadcast %434 : vector<8x1xf32> to vector<8x8xf32>
    %436 = arith.mulf %431, %435 : vector<8x8xf32>
    %437 = arith.truncf %436 : vector<8x8xf32> to vector<8x8xbf16>
    %cst_147 = arith.constant dense<0.000000e+00> : vector<8x8xf32>
    %438 = tpu.matmul %437, %422, %cst_147 {dimension_numbers = #tpu.dot_dimension_numbers<[1], [0], [0], [1], [0, 0, 1, 1], [], []>} : vector<8x8xbf16>, vector<8x8xbf16>, vector<8x8xf32> -> vector<8x8xf32>
    %c8_148 = arith.constant 8 : index
    %c0_149 = arith.constant 0 : index
    %439 = vector.load %arg16[%c8_148, %c0_149] : memref<16x32xf32, #tpu.memory_space<vmem>>, vector<8x8xf32>
    tpu.vector_store %arg16[%c8_148, %c0_149], %438 {strides = array<i32>} : memref<16x32xf32, #tpu.memory_space<vmem>>, vector<8x8xf32>,
    %440 = vector.extract_strided_slice %310 {offsets = [8, 8], sizes = [8, 8], strides = [1, 1]} : vector<16x32xf32> to vector<8x8xf32>
    %441 = arith.truncf %440 : vector<8x8xf32> to vector<8x8xbf16>
    %442 = vector.extract_strided_slice %315 {offsets = [8, 8], sizes = [8, 8], strides = [1, 1]} : vector<16x32xf32> to vector<8x8xf32>
    %443 = arith.truncf %442 : vector<8x8xf32> to vector<8x8xbf16>
    %444 = vector.extract_strided_slice %316 {offsets = [8, 8], sizes = [8, 8], strides = [1, 1]} : vector<16x32xf32> to vector<8x8xf32>
    %445 = arith.truncf %444 : vector<8x8xf32> to vector<8x8xbf16>
    %cst_150 = arith.constant dense<0.000000e+00> : vector<8x8xf32>
    %446 = tpu.matmul %441, %443, %cst_150 {dimension_numbers = #tpu.dot_dimension_numbers<[1], [1], [0], [0], [0, 0, 1, 0], [], []>} : vector<8x8xbf16>, vector<8x8xbf16>, vector<8x8xf32> -> vector<8x8xf32>
    %cst_151 = arith.constant 0.353553385 : f32
    %447 = vector.broadcast %cst_151 : f32 to vector<8x8xf32>
    %448 = arith.mulf %446, %447 : vector<8x8xf32>
    %449 = arith.addf %448, %416 : vector<8x8xf32>
    %cst_152 = arith.constant dense<0xFF800000> : vector<8xf32>
    %450 = vector.multi_reduction <maximumf>, %449, %cst_152 [1] : vector<8x8xf32> to vector<8xf32>
    %451 = vector.shape_cast %450 : vector<8xf32> to vector<8x1xf32>
    %452 = vector.broadcast %451 : vector<8x1xf32> to vector<8x8xf32>
    %453 = arith.subf %449, %452 : vector<8x8xf32>
    %454 = math.exp %453 : vector<8x8xf32>
    %cst_153 = arith.constant dense<0.000000e+00> : vector<8xf32>
    %455 = vector.multi_reduction <add>, %454, %cst_153 [1] : vector<8x8xf32> to vector<8xf32>
    %456 = vector.shape_cast %455 : vector<8xf32> to vector<8x1xf32>
    %457 = tpu.reciprocal %456 {approx = true} : vector<8x1xf32> -> vector<8x1xf32>
    %458 = vector.broadcast %457 : vector<8x1xf32> to vector<8x8xf32>
    %459 = arith.mulf %454, %458 : vector<8x8xf32>
    %460 = arith.truncf %459 : vector<8x8xf32> to vector<8x8xbf16>
    %cst_154 = arith.constant dense<0.000000e+00> : vector<8x8xf32>
    %461 = tpu.matmul %460, %445, %cst_154 {dimension_numbers = #tpu.dot_dimension_numbers<[1], [0], [0], [1], [0, 0, 1, 1], [], []>} : vector<8x8xbf16>, vector<8x8xbf16>, vector<8x8xf32> -> vector<8x8xf32>
    %c8_155 = arith.constant 8 : index
    %c8_156 = arith.constant 8 : index
    %462 = vector.load %arg16[%c8_155, %c8_156] : memref<16x32xf32, #tpu.memory_space<vmem>>, vector<8x8xf32>
    tpu.vector_store %arg16[%c8_155, %c8_156], %461 {strides = array<i32>} : memref<16x32xf32, #tpu.memory_space<vmem>>, vector<8x8xf32>,
    %463 = vector.extract_strided_slice %310 {offsets = [8, 16], sizes = [8, 8], strides = [1, 1]} : vector<16x32xf32> to vector<8x8xf32>
    %464 = arith.truncf %463 : vector<8x8xf32> to vector<8x8xbf16>
    %465 = vector.extract_strided_slice %315 {offsets = [8, 16], sizes = [8, 8], strides = [1, 1]} : vector<16x32xf32> to vector<8x8xf32>
    %466 = arith.truncf %465 : vector<8x8xf32> to vector<8x8xbf16>
    %467 = vector.extract_strided_slice %316 {offsets = [8, 16], sizes = [8, 8], strides = [1, 1]} : vector<16x32xf32> to vector<8x8xf32>
    %468 = arith.truncf %467 : vector<8x8xf32> to vector<8x8xbf16>
    %cst_157 = arith.constant dense<0.000000e+00> : vector<8x8xf32>
    %469 = tpu.matmul %464, %466, %cst_157 {dimension_numbers = #tpu.dot_dimension_numbers<[1], [1], [0], [0], [0, 0, 1, 0], [], []>} : vector<8x8xbf16>, vector<8x8xbf16>, vector<8x8xf32> -> vector<8x8xf32>
    %cst_158 = arith.constant 0.353553385 : f32
    %470 = vector.broadcast %cst_158 : f32 to vector<8x8xf32>
    %471 = arith.mulf %469, %470 : vector<8x8xf32>
    %472 = arith.addf %471, %416 : vector<8x8xf32>
    %cst_159 = arith.constant dense<0xFF800000> : vector<8xf32>
    %473 = vector.multi_reduction <maximumf>, %472, %cst_159 [1] : vector<8x8xf32> to vector<8xf32>
    %474 = vector.shape_cast %473 : vector<8xf32> to vector<8x1xf32>
    %475 = vector.broadcast %474 : vector<8x1xf32> to vector<8x8xf32>
    %476 = arith.subf %472, %475 : vector<8x8xf32>
    %477 = math.exp %476 : vector<8x8xf32>
    %cst_160 = arith.constant dense<0.000000e+00> : vector<8xf32>
    %478 = vector.multi_reduction <add>, %477, %cst_160 [1] : vector<8x8xf32> to vector<8xf32>
    %479 = vector.shape_cast %478 : vector<8xf32> to vector<8x1xf32>
    %480 = tpu.reciprocal %479 {approx = true} : vector<8x1xf32> -> vector<8x1xf32>
    %481 = vector.broadcast %480 : vector<8x1xf32> to vector<8x8xf32>
    %482 = arith.mulf %477, %481 : vector<8x8xf32>
    %483 = arith.truncf %482 : vector<8x8xf32> to vector<8x8xbf16>
    %cst_161 = arith.constant dense<0.000000e+00> : vector<8x8xf32>
    %484 = tpu.matmul %483, %468, %cst_161 {dimension_numbers = #tpu.dot_dimension_numbers<[1], [0], [0], [1], [0, 0, 1, 1], [], []>} : vector<8x8xbf16>, vector<8x8xbf16>, vector<8x8xf32> -> vector<8x8xf32>
    %c8_162 = arith.constant 8 : index
    %c16_163 = arith.constant 16 : index
    %485 = vector.load %arg16[%c8_162, %c16_163] : memref<16x32xf32, #tpu.memory_space<vmem>>, vector<8x8xf32>
    tpu.vector_store %arg16[%c8_162, %c16_163], %484 {strides = array<i32>} : memref<16x32xf32, #tpu.memory_space<vmem>>, vector<8x8xf32>,
    %486 = vector.extract_strided_slice %310 {offsets = [8, 24], sizes = [8, 8], strides = [1, 1]} : vector<16x32xf32> to vector<8x8xf32>
    %487 = arith.truncf %486 : vector<8x8xf32> to vector<8x8xbf16>
    %488 = vector.extract_strided_slice %315 {offsets = [8, 24], sizes = [8, 8], strides = [1, 1]} : vector<16x32xf32> to vector<8x8xf32>
    %489 = arith.truncf %488 : vector<8x8xf32> to vector<8x8xbf16>
    %490 = vector.extract_strided_slice %316 {offsets = [8, 24], sizes = [8, 8], strides = [1, 1]} : vector<16x32xf32> to vector<8x8xf32>
    %491 = arith.truncf %490 : vector<8x8xf32> to vector<8x8xbf16>
    %cst_164 = arith.constant dense<0.000000e+00> : vector<8x8xf32>
    %492 = tpu.matmul %487, %489, %cst_164 {dimension_numbers = #tpu.dot_dimension_numbers<[1], [1], [0], [0], [0, 0, 1, 0], [], []>} : vector<8x8xbf16>, vector<8x8xbf16>, vector<8x8xf32> -> vector<8x8xf32>
    %cst_165 = arith.constant 0.353553385 : f32
    %493 = vector.broadcast %cst_165 : f32 to vector<8x8xf32>
    %494 = arith.mulf %492, %493 : vector<8x8xf32>
    %495 = arith.addf %494, %416 : vector<8x8xf32>
    %cst_166 = arith.constant dense<0xFF800000> : vector<8xf32>
    %496 = vector.multi_reduction <maximumf>, %495, %cst_166 [1] : vector<8x8xf32> to vector<8xf32>
    %497 = vector.shape_cast %496 : vector<8xf32> to vector<8x1xf32>
    %498 = vector.broadcast %497 : vector<8x1xf32> to vector<8x8xf32>
    %499 = arith.subf %495, %498 : vector<8x8xf32>
    %500 = math.exp %499 : vector<8x8xf32>
    %cst_167 = arith.constant dense<0.000000e+00> : vector<8xf32>
    %501 = vector.multi_reduction <add>, %500, %cst_167 [1] : vector<8x8xf32> to vector<8xf32>
    %502 = vector.shape_cast %501 : vector<8xf32> to vector<8x1xf32>
    %503 = tpu.reciprocal %502 {approx = true} : vector<8x1xf32> -> vector<8x1xf32>
    %504 = vector.broadcast %503 : vector<8x1xf32> to vector<8x8xf32>
    %505 = arith.mulf %500, %504 : vector<8x8xf32>
    %506 = arith.truncf %505 : vector<8x8xf32> to vector<8x8xbf16>
    %cst_168 = arith.constant dense<0.000000e+00> : vector<8x8xf32>
    %507 = tpu.matmul %506, %491, %cst_168 {dimension_numbers = #tpu.dot_dimension_numbers<[1], [0], [0], [1], [0, 0, 1, 1], [], []>} : vector<8x8xbf16>, vector<8x8xbf16>, vector<8x8xf32> -> vector<8x8xf32>
    %c8_169 = arith.constant 8 : index
    %c24_170 = arith.constant 24 : index
    %508 = vector.load %arg16[%c8_169, %c24_170] : memref<16x32xf32, #tpu.memory_space<vmem>>, vector<8x8xf32>
    tpu.vector_store %arg16[%c8_169, %c24_170], %507 {strides = array<i32>} : memref<16x32xf32, #tpu.memory_space<vmem>>, vector<8x8xf32>,
    %c0_171 = arith.constant 0 : index
    %c0_172 = arith.constant 0 : index
    %509 = vector.load %arg16[%c0_171, %c0_172] : memref<16x32xf32, #tpu.memory_space<vmem>>, vector<16x32xf32>
    %510 = arith.truncf %509 : vector<16x32xf32> to vector<16x32xbf16>
    %c1_173 = arith.constant 1 : index
    %c0_174 = arith.constant 0 : index
    %c0_175 = arith.constant 0 : index
    %511 = vector.load %arg8[%c1_173, %c0_174, %c0_175] : memref<2x32x32xbf16, #tpu.memory_space<vmem>>, vector<1x32x32xbf16>
    %512 = vector.shape_cast %511 : vector<1x32x32xbf16> to vector<32x32xbf16>
    %cst_176 = arith.constant dense<0.000000e+00> : vector<16x32xf32>
    %513 = tpu.matmul %510, %512, %cst_176 {dimension_numbers = #tpu.dot_dimension_numbers<[1], [0], [0], [1], [0, 0, 1, 1], [], []>} : vector<16x32xbf16>, vector<32x32xbf16>, vector<16x32xf32> -> vector<16x32xf32>
    %514 = arith.addf %283, %513 : vector<16x32xf32>
    %c1_177 = arith.constant 1 : index
    %c0_178 = arith.constant 0 : index
    %c0_179 = arith.constant 0 : index
    %515 = vector.load %arg9[%c1_177, %c0_178, %c0_179] : memref<2x1x32xf32, #tpu.memory_space<vmem>>, vector<1x1x32xf32>
    %516 = vector.shape_cast %515 : vector<1x1x32xf32> to vector<1x32xf32>
    %517 = arith.mulf %514, %514 : vector<16x32xf32>
    %cst_180 = arith.constant dense<0.000000e+00> : vector<16xf32>
    %518 = vector.multi_reduction <add>, %517, %cst_180 [1] : vector<16x32xf32> to vector<16xf32>
    %519 = vector.shape_cast %518 : vector<16xf32> to vector<16x1xf32>
    %cst_181 = arith.constant 3.200000e+01 : f32
    %520 = vector.broadcast %cst_181 : f32 to vector<16x1xf32>
    %521 = arith.divf %519, %520 : vector<16x1xf32>
    %cst_182 = arith.constant 9.99999997E-7 : f32
    %522 = vector.broadcast %cst_182 : f32 to vector<16x1xf32>
    %523 = arith.addf %521, %522 : vector<16x1xf32>
    %524 = math.rsqrt %523 : vector<16x1xf32>
    %525 = vector.broadcast %524 : vector<16x1xf32> to vector<16x32xf32>
    %526 = arith.mulf %514, %525 : vector<16x32xf32>
    %527 = vector.broadcast %516 : vector<1x32xf32> to vector<16x32xf32>
    %528 = arith.mulf %526, %527 : vector<16x32xf32>
    %529 = arith.truncf %528 : vector<16x32xf32> to vector<16x32xbf16>
    %c1_183 = arith.constant 1 : index
    %c0_184 = arith.constant 0 : index
    %c0_185 = arith.constant 0 : index
    %530 = vector.load %arg10[%c1_183, %c0_184, %c0_185] : memref<2x32x128xbf16, #tpu.memory_space<vmem>>, vector<1x32x128xbf16>
    %531 = vector.shape_cast %530 : vector<1x32x128xbf16> to vector<32x128xbf16>
    %cst_186 = arith.constant dense<0.000000e+00> : vector<16x128xf32>
    %532 = tpu.matmul %529, %531, %cst_186 {dimension_numbers = #tpu.dot_dimension_numbers<[1], [0], [0], [1], [0, 0, 1, 1], [], []>} : vector<16x32xbf16>, vector<32x128xbf16>, vector<16x128xf32> -> vector<16x128xf32>
    %533 = vector.extract_strided_slice %532 {offsets = [0, 0], sizes = [16, 64], strides = [1, 1]} : vector<16x128xf32> to vector<16x64xf32>
    %534 = vector.extract_strided_slice %532 {offsets = [0, 64], sizes = [16, 64], strides = [1, 1]} : vector<16x128xf32> to vector<16x64xf32>
    %535 = arith.negf %533 : vector<16x64xf32>
    %536 = math.exp %535 : vector<16x64xf32>
    %cst_187 = arith.constant 1.000000e+00 : f32
    %537 = vector.broadcast %cst_187 : f32 to vector<16x64xf32>
    %538 = arith.addf %537, %536 : vector<16x64xf32>
    %539 = arith.divf %537, %538 : vector<16x64xf32>
    %540 = arith.mulf %533, %539 : vector<16x64xf32>
    %541 = arith.mulf %540, %534 : vector<16x64xf32>
    %542 = arith.truncf %541 : vector<16x64xf32> to vector<16x64xbf16>
    %c1_188 = arith.constant 1 : index
    %c0_189 = arith.constant 0 : index
    %c0_190 = arith.constant 0 : index
    %543 = vector.load %arg11[%c1_188, %c0_189, %c0_190] : memref<2x64x32xbf16, #tpu.memory_space<vmem>>, vector<1x64x32xbf16>
    %544 = vector.shape_cast %543 : vector<1x64x32xbf16> to vector<64x32xbf16>
    %cst_191 = arith.constant dense<0.000000e+00> : vector<16x32xf32>
    %545 = tpu.matmul %542, %544, %cst_191 {dimension_numbers = #tpu.dot_dimension_numbers<[1], [0], [0], [1], [0, 0, 1, 1], [], []>} : vector<16x64xbf16>, vector<64x32xbf16>, vector<16x32xf32> -> vector<16x32xf32>
    %546 = arith.addf %514, %545 : vector<16x32xf32>
    %c0_192 = arith.constant 0 : index
    %c0_193 = arith.constant 0 : index
    %547 = vector.load %arg12[%c0_192, %c0_193] : memref<1x32xf32, #tpu.memory_space<vmem>>, vector<1x32xf32>
    %548 = arith.mulf %546, %546 : vector<16x32xf32>
    %cst_194 = arith.constant dense<0.000000e+00> : vector<16xf32>
    %549 = vector.multi_reduction <add>, %548, %cst_194 [1] : vector<16x32xf32> to vector<16xf32>
    %550 = vector.shape_cast %549 : vector<16xf32> to vector<16x1xf32>
    %cst_195 = arith.constant 3.200000e+01 : f32
    %551 = vector.broadcast %cst_195 : f32 to vector<16x1xf32>
    %552 = arith.divf %550, %551 : vector<16x1xf32>
    %cst_196 = arith.constant 9.99999997E-7 : f32
    %553 = vector.broadcast %cst_196 : f32 to vector<16x1xf32>
    %554 = arith.addf %552, %553 : vector<16x1xf32>
    %555 = math.rsqrt %554 : vector<16x1xf32>
    %556 = vector.broadcast %555 : vector<16x1xf32> to vector<16x32xf32>
    %557 = arith.mulf %546, %556 : vector<16x32xf32>
    %558 = vector.broadcast %547 : vector<1x32xf32> to vector<16x32xf32>
    %559 = arith.mulf %557, %558 : vector<16x32xf32>
    %560 = vector.shape_cast %559 : vector<16x32xf32> to vector<2x8x32xf32>
    %c2 = arith.constant 2 : index
    %c0_197 = arith.constant 0 : index
    %c0_198 = arith.constant 0 : index
    %c0_199 = arith.constant 0 : index
    %561 = vector.load %arg14[%c2, %c0_197, %c0_198, %c0_199] : memref<3x2x8x32xf32, #tpu.memory_space<vmem>>, vector<1x2x8x32xf32>
    %562 = vector.shape_cast %561 : vector<1x2x8x32xf32> to vector<2x8x32xf32>
    %563 = vector.shape_cast %560 : vector<2x8x32xf32> to vector<1x2x8x32xf32>
    tpu.vector_store %arg14[%c2, %c0_197, %c0_198, %c0_199], %563 {strides = array<i32>} : memref<3x2x8x32xf32, #tpu.memory_space<vmem>>, vector<1x2x8x32xf32>,
    %564 = arith.truncf %559 : vector<16x32xf32> to vector<16x32xbf16>
    %c0_200 = arith.constant 0 : index
    %c0_201 = arith.constant 0 : index
    %565 = vector.load %arg13[%c0_200, %c0_201] : memref<32x128xbf16, #tpu.memory_space<vmem>>, vector<32x128xbf16>
    %cst_202 = arith.constant dense<0.000000e+00> : vector<16x128xf32>
    %566 = tpu.matmul %564, %565, %cst_202 {dimension_numbers = #tpu.dot_dimension_numbers<[1], [0], [0], [1], [0, 0, 1, 1], [], []>} : vector<16x32xbf16>, vector<32x128xbf16>, vector<16x128xf32> -> vector<16x128xf32>
    %567 = vector.shape_cast %566 : vector<16x128xf32> to vector<2x8x128xf32>
    %c0_203 = arith.constant 0 : index
    %c0_204 = arith.constant 0 : index
    %c0_205 = arith.constant 0 : index
    %568 = vector.load %arg15[%c0_203, %c0_204, %c0_205] : memref<2x8x128xf32, #tpu.memory_space<vmem>>, vector<2x8x128xf32>
    tpu.vector_store %arg15[%c0_203, %c0_204, %c0_205], %567 {strides = array<i32>} : memref<2x8x128xf32, #tpu.memory_space<vmem>>, vector<2x8x128xf32>,
    return
  }
  func.func @transform_0(%arg0: i32) -> (i32, i32) {
    %c0_i32 = arith.constant 0 : i32
    %c0_i32_0 = arith.constant 0 : i32
    return %arg0, %c0_i32 : i32, i32
  }
  func.func @transform_1(%arg0: i32) -> (i32, i32, i32) {
    %c0_i32 = arith.constant 0 : i32
    %c0_i32_0 = arith.constant 0 : i32
    %c0_i32_1 = arith.constant 0 : i32
    return %arg0, %c0_i32, %c0_i32_0 : i32, i32, i32
  }
  func.func @transform_2(%arg0: i32) -> (i32, i32) {
    %c0_i32 = arith.constant 0 : i32
    %c0_i32_0 = arith.constant 0 : i32
    %c0_i32_1 = arith.constant 0 : i32
    return %c0_i32, %c0_i32_0 : i32, i32
  }
  func.func @transform_3(%arg0: i32) -> (i32, i32) {
    %c0_i32 = arith.constant 0 : i32
    %c0_i32_0 = arith.constant 0 : i32
    %c0_i32_1 = arith.constant 0 : i32
    return %c0_i32, %c0_i32_0 : i32, i32
  }
  func.func @transform_4(%arg0: i32) -> (i32, i32) {
    %c0_i32 = arith.constant 0 : i32
    %c0_i32_0 = arith.constant 0 : i32
    %c0_i32_1 = arith.constant 0 : i32
    return %c0_i32, %c0_i32_0 : i32, i32
  }
  func.func @transform_5(%arg0: i32) -> (i32, i32, i32) {
    %c0_i32 = arith.constant 0 : i32
    %c0_i32_0 = arith.constant 0 : i32
    %c0_i32_1 = arith.constant 0 : i32
    %c0_i32_2 = arith.constant 0 : i32
    return %c0_i32, %c0_i32_0, %c0_i32_1 : i32, i32, i32
  }
  func.func @transform_6(%arg0: i32) -> (i32, i32, i32) {
    %c0_i32 = arith.constant 0 : i32
    %c0_i32_0 = arith.constant 0 : i32
    %c0_i32_1 = arith.constant 0 : i32
    %c0_i32_2 = arith.constant 0 : i32
    return %c0_i32, %c0_i32_0, %c0_i32_1 : i32, i32, i32
  }
  func.func @transform_7(%arg0: i32) -> (i32, i32, i32) {
    %c0_i32 = arith.constant 0 : i32
    %c0_i32_0 = arith.constant 0 : i32
    %c0_i32_1 = arith.constant 0 : i32
    %c0_i32_2 = arith.constant 0 : i32
    return %c0_i32, %c0_i32_0, %c0_i32_1 : i32, i32, i32
  }
  func.func @transform_8(%arg0: i32) -> (i32, i32, i32) {
    %c0_i32 = arith.constant 0 : i32
    %c0_i32_0 = arith.constant 0 : i32
    %c0_i32_1 = arith.constant 0 : i32
    %c0_i32_2 = arith.constant 0 : i32
    return %c0_i32, %c0_i32_0, %c0_i32_1 : i32, i32, i32
  }
  func.func @transform_9(%arg0: i32) -> (i32, i32, i32) {
    %c0_i32 = arith.constant 0 : i32
    %c0_i32_0 = arith.constant 0 : i32
    %c0_i32_1 = arith.constant 0 : i32
    %c0_i32_2 = arith.constant 0 : i32
    return %c0_i32, %c0_i32_0, %c0_i32_1 : i32, i32, i32
  }
  func.func @transform_10(%arg0: i32) -> (i32, i32, i32) {
    %c0_i32 = arith.constant 0 : i32
    %c0_i32_0 = arith.constant 0 : i32
    %c0_i32_1 = arith.constant 0 : i32
    %c0_i32_2 = arith.constant 0 : i32
    return %c0_i32, %c0_i32_0, %c0_i32_1 : i32, i32, i32
  }
  func.func @transform_11(%arg0: i32) -> (i32, i32) {
    %c0_i32 = arith.constant 0 : i32
    %c0_i32_0 = arith.constant 0 : i32
    %c0_i32_1 = arith.constant 0 : i32
    return %c0_i32, %c0_i32_0 : i32, i32
  }
  func.func @transform_12(%arg0: i32) -> (i32, i32) {
    %c0_i32 = arith.constant 0 : i32
    %c0_i32_0 = arith.constant 0 : i32
    %c0_i32_1 = arith.constant 0 : i32
    return %c0_i32, %c0_i32_0 : i32, i32
  }
  func.func @transform_13(%arg0: i32) -> (i32, i32, i32, i32) {
    %c0_i32 = arith.constant 0 : i32
    %c0_i32_0 = arith.constant 0 : i32
    %c0_i32_1 = arith.constant 0 : i32
    %c0_i32_2 = arith.constant 0 : i32
    return %c0_i32, %arg0, %c0_i32_0, %c0_i32_1 : i32, i32, i32, i32
  }
  func.func @transform_14(%arg0: i32) -> (i32, i32, i32) {
    %c0_i32 = arith.constant 0 : i32
    %c0_i32_0 = arith.constant 0 : i32
    %c0_i32_1 = arith.constant 0 : i32
    return %arg0, %c0_i32, %c0_i32_0 : i32, i32, i32
  }
}

</mosaic_0001>

<llo_original>
// kernel: llama_embedding_forward.1
$region0: #{llama_embedding_forward.1}
  #allocation0 [shape = 'u32[]', space=smem, size = 0x4, offset = 0x4, fixed_abs, tag = 'smem constant byte address 0x4 - core index']
  #allocation1 [shape = 'u32[144,128]{1,0:T(1,128)}', space=vmem, size = 0x12000, scoped, tag = 'internal scratch']
  #allocation2 [shape = 'f32[16,32]{1,0:T(8,128)}', space=vmem, size = 0x2000, scoped, tag = 'scratch operand']
  %s0 = inlined_call_operand.vmem [shape: s32[16,1], index: 0, kind: input, shape index: {}]
  %s1 = inlined_call_operand.vmem [shape: f32[2,1,8], index: 1, kind: input, shape index: {}]
  %s2 = inlined_call_operand.vmem [shape: f32[128,32], index: 2, kind: input, shape index: {}]
  %s3 = inlined_call_operand.vmem [shape: f32[16,32], index: 3, kind: input, shape index: {}]
  %s4 = inlined_call_operand.vmem [shape: f32[16,32], index: 4, kind: input, shape index: {}]
  %s5 = inlined_call_operand.vmem [shape: f32[2,1,32], index: 5, kind: input, shape index: {}]
  %s6 = inlined_call_operand.vmem [shape: bf16[2,32,160], index: 6, kind: input, shape index: {}]
  %s7 = inlined_call_operand.vmem [shape: bf16[2,32,32], index: 7, kind: input, shape index: {}]
  %s8 = inlined_call_operand.vmem [shape: f32[2,1,32], index: 8, kind: input, shape index: {}]
  %s9 = inlined_call_operand.vmem [shape: bf16[2,32,128], index: 9, kind: input, shape index: {}]
  %s10 = inlined_call_operand.vmem [shape: bf16[2,64,32], index: 10, kind: input, shape index: {}]
  %s11 = inlined_call_operand.vmem [shape: f32[1,32], index: 11, kind: input, shape index: {}]
  %s12 = inlined_call_operand.vmem [shape: bf16[32,128], index: 12, kind: input, shape index: {}]
  %s13 = inlined_call_operand.vmem [shape: f32[3,2,8,32], index: 13, kind: output, shape index: {0}]
  %s14 = inlined_call_operand.hbm [shape: f32[2,8,128], index: 14, kind: output, shape index: {1}]
  %15 = xla_tuple %s13, %s14
  %s16 = sld [smem:[#allocation0]]
  $region70: #{llama_embedding_forward.1} parent=0
    _
  %s18 = ssub.s32 1, %s16
  %s19 = scalar_select 0, %s18, %s16
  $region1: #{llama_embedding_forward.1} parent=0
    #allocation3 [shape = 'u8[8192]{0}', space=vmem, size = 0x2000, scoped, tag = 'output window, operand 1, single buffered']
    #allocation4 [shape = 's32[1]{0}', space=sflag, size = 0x4, scoped, tag = 'scoped memory for llama_embedding_forward.1']
    %20 = vsyncpa [#allocation4], 0
    // Predicated region
    $region2: #{llama_embedding_forward.1} parent=1 // pred_check
      _
    $region3: #{llama_embedding_forward.1} parent=1 // pred_check_branch
      %22 = sbr.rel (0) target = $region5
    $region4: #{llama_embedding_forward.1} parent=1 // pred_region
      _
    $region5: #{llama_embedding_forward.1} parent=1 // pred_fallthru
      _
    // Predicated region
    $region6: #{llama_embedding_forward.1} parent=1 // pred_check
      _
    $region7: #{llama_embedding_forward.1} parent=1 // pred_check_branch
      %24 = sbr.rel (0) target = $region9
    $region8: #{llama_embedding_forward.1} parent=1 // pred_region
      _
    $region9: #{llama_embedding_forward.1} parent=1 // pred_fallthru
      _
    // Predicated region
    $region10: #{llama_embedding_forward.1} parent=1 // pred_check
      _
    $region11: #{llama_embedding_forward.1} parent=1 // pred_check_branch
      %26 = sbr.rel (0) target = $region13
    $region12: #{llama_embedding_forward.1} parent=1 // pred_region
      _
    $region13: #{llama_embedding_forward.1} parent=1 // pred_fallthru
      _
    // Predicated region
    $region14: #{llama_embedding_forward.1} parent=1 // pred_check
      _
    $region15: #{llama_embedding_forward.1} parent=1 // pred_check_branch
      %28 = sbr.rel (0) target = $region17
    $region16: #{llama_embedding_forward.1} parent=1 // pred_region
      _
    $region17: #{llama_embedding_forward.1} parent=1 // pred_fallthru
      _
    // Predicated region
    $region18: #{llama_embedding_forward.1} parent=1 // pred_check
      _
    $region19: #{llama_embedding_forward.1} parent=1 // pred_check_branch
      %30 = sbr.rel (0) target = $region21
    $region20: #{llama_embedding_forward.1} parent=1 // pred_region
      _
    $region21: #{llama_embedding_forward.1} parent=1 // pred_fallthru
      _
    // Predicated region
    $region22: #{llama_embedding_forward.1} parent=1 // pred_check
      _
    $region23: #{llama_embedding_forward.1} parent=1 // pred_check_branch
      %32 = sbr.rel (0) target = $region25
    $region24: #{llama_embedding_forward.1} parent=1 // pred_region
      _
    $region25: #{llama_embedding_forward.1} parent=1 // pred_fallthru
      _
    // Predicated region
    $region26: #{llama_embedding_forward.1} parent=1 // pred_check
      _
    $region27: #{llama_embedding_forward.1} parent=1 // pred_check_branch
      %34 = sbr.rel (0) target = $region29
    $region28: #{llama_embedding_forward.1} parent=1 // pred_region
      _
    $region29: #{llama_embedding_forward.1} parent=1 // pred_fallthru
      _
    // Predicated region
    $region30: #{llama_embedding_forward.1} parent=1 // pred_check
      _
    $region31: #{llama_embedding_forward.1} parent=1 // pred_check_branch
      %36 = sbr.rel (0) target = $region33
    $region32: #{llama_embedding_forward.1} parent=1 // pred_region
      _
    $region33: #{llama_embedding_forward.1} parent=1 // pred_fallthru
      _
    // Predicated region
    $region34: #{llama_embedding_forward.1} parent=1 // pred_check
      _
    $region35: #{llama_embedding_forward.1} parent=1 // pred_check_branch
      %38 = sbr.rel (0) target = $region37
    $region36: #{llama_embedding_forward.1} parent=1 // pred_region
      _
    $region37: #{llama_embedding_forward.1} parent=1 // pred_fallthru
      _
    // Predicated region
    $region38: #{llama_embedding_forward.1} parent=1 // pred_check
      _
    $region39: #{llama_embedding_forward.1} parent=1 // pred_check_branch
      %40 = sbr.rel (0) target = $region41
    $region40: #{llama_embedding_forward.1} parent=1 // pred_region
      _
    $region41: #{llama_embedding_forward.1} parent=1 // pred_fallthru
      _
    // Predicated region
    $region42: #{llama_embedding_forward.1} parent=1 // pred_check
      _
    $region43: #{llama_embedding_forward.1} parent=1 // pred_check_branch
      %42 = sbr.rel (0) target = $region45
    $region44: #{llama_embedding_forward.1} parent=1 // pred_region
      _
    $region45: #{llama_embedding_forward.1} parent=1 // pred_fallthru
      _
    // Predicated region
    $region46: #{llama_embedding_forward.1} parent=1 // pred_check
      _
    $region47: #{llama_embedding_forward.1} parent=1 // pred_check_branch
      %44 = sbr.rel (0) target = $region49
    $region48: #{llama_embedding_forward.1} parent=1 // pred_region
      _
    $region49: #{llama_embedding_forward.1} parent=1 // pred_fallthru
      _
    // Predicated region
    $region50: #{llama_embedding_forward.1} parent=1 // pred_check
      _
    $region51: #{llama_embedding_forward.1} parent=1 // pred_check_branch
      %46 = sbr.rel (0) target = $region53
    $region52: #{llama_embedding_forward.1} parent=1 // pred_region
      _
    $region53: #{llama_embedding_forward.1} parent=1 // pred_fallthru
      _
    %v48 = vld [vmem:[%s0] sm:$0xff]
    %v49 = vld [vmem:[%s0 + $0x8] sm:$0xff]
    %v50 = vlaneseq
    %v51 = vand.u32 %v50, 127
    %52 = vset.pattern.permute.xlu0 0
    %53 = vperm.xlu0 %52, %v48
    %v54 = vpop.permute.xlu0 %53
    %55 = vset.pattern.permute.xlu0 0
    %56 = vperm.xlu0 %55, %v49
    %v57 = vpop.permute.xlu0 %56
    %vm58 = vcmp.eq.s32.totalorder %v54, %v51
    %vm59 = vcmp.eq.s32.totalorder %v57, %v51
    %v60 = vsel %vm58, 1, 0
    %v61 = vsel %vm59, 1, 0
    %v62 = vcvt.s32.f32 %v60
    %v63 = vcvt.s32.f32 %v61
    %v64 = vld [vmem:[%s2] sm:$0xff]
    %v65 = vld [vmem:[%s2 + $0x8] sm:$0xff]
    %v66 = vld [vmem:[%s2 + $0x10] sm:$0xff]
    %v67 = vld [vmem:[%s2 + $0x18] sm:$0xff]
    %v68 = vld [vmem:[%s2 + $0x20] sm:$0xff]
    %v69 = vld [vmem:[%s2 + $0x28] sm:$0xff]
    %v70 = vld [vmem:[%s2 + $0x30] sm:$0xff]
    %v71 = vld [vmem:[%s2 + $0x38] sm:$0xff]
    %v72 = vld [vmem:[%s2 + $0x40] sm:$0xff]
    %v73 = vld [vmem:[%s2 + $0x48] sm:$0xff]
    %v74 = vld [vmem:[%s2 + $0x50] sm:$0xff]
    %v75 = vld [vmem:[%s2 + $0x58] sm:$0xff]
    %v76 = vld [vmem:[%s2 + $0x60] sm:$0xff]
    %v77 = vld [vmem:[%s2 + $0x68] sm:$0xff]
    %v78 = vld [vmem:[%s2 + $0x70] sm:$0xff]
    %v79 = vld [vmem:[%s2 + $0x78] sm:$0xff]
    %80 = vmatprep.subr.mxu0 0.0
    %81 = vmatpush1.msra.mxu0 %v64
    %82 = vmatprep.subr.mxu0 0.0
    %83 = vmatpush1.msra.mxu0 %v65
    %84 = vmatprep.subr.mxu0 0.0
    %85 = vmatpush1.msra.mxu0 %v66
    %86 = vmatprep.subr.mxu0 0.0
    %87 = vmatpush1.msra.mxu0 %v67
    %88 = vmatprep.subr.mxu0 0.0
    %89 = vmatpush1.msra.mxu0 %v68
    %90 = vmatprep.subr.mxu0 0.0
    %91 = vmatpush1.msra.mxu0 %v69
    %92 = vmatprep.subr.mxu0 0.0
    %93 = vmatpush1.msra.mxu0 %v70
    %94 = vmatprep.subr.mxu0 0.0
    %95 = vmatpush1.msra.mxu0 %v71
    %96 = vmatprep.subr.mxu0 0.0
    %97 = vmatpush1.msra.mxu0 %v72
    %98 = vmatprep.subr.mxu0 0.0
    %99 = vmatpush1.msra.mxu0 %v73
    %100 = vmatprep.subr.mxu0 0.0
    %101 = vmatpush1.msra.mxu0 %v74
    %102 = vmatprep.subr.mxu0 0.0
    %103 = vmatpush1.msra.mxu0 %v75
    %104 = vmatprep.subr.mxu0 0.0
    %105 = vmatpush1.msra.mxu0 %v76
    %106 = vmatprep.subr.mxu0 0.0
    %107 = vmatpush1.msra.mxu0 %v77
    %108 = vmatprep.subr.mxu0 0.0
    %109 = vmatpush1.msra.mxu0 %v78
    %110 = vmatprep.subr.mxu0 0.0
    %111 = vmatpush1.msra.mxu0 %v79
    %112 = vmatprep.subr.mxu0 0.0
    %113 = vmatpush1.msra.mxu0 0.0
    %114 = vmatprep.subr.mxu0 0.0
    %115 = vmatpush1.msra.mxu0 0.0
    %116 = vmatprep.subr.mxu0 0.0
    %117 = vmatpush1.msra.mxu0 0.0
    %118 = vmatprep.subr.mxu0 0.0
    %119 = vmatpush1.msra.mxu0 0.0
    %120 = vmatprep.subr.mxu0 0.0
    %121 = vmatpush1.msra.mxu0 0.0
    %122 = vmatprep.subr.mxu0 0.0
    %123 = vmatpush1.msra.mxu0 0.0
    %124 = vmatprep.subr.mxu0 0.0
    %125 = vmatpush1.msra.mxu0 0.0
    %126 = vmatprep.subr.mxu0 0.0
    %127 = vmatpush1.msra.mxu0 0.0
    %128 = vmatprep.subr.mxu0 0.0
    %129 = vmatpush1.msra.mxu0 0.0
    %130 = vmatprep.subr.mxu0 0.0
    %131 = vmatpush1.msra.mxu0 0.0
    %132 = vmatprep.subr.mxu0 0.0
    %133 = vmatpush1.msra.mxu0 0.0
    %134 = vmatprep.subr.mxu0 0.0
    %135 = vmatpush1.msra.mxu0 0.0
    %136 = vmatprep.subr.mxu0 0.0
    %137 = vmatpush1.msra.mxu0 0.0
    %138 = vmatprep.subr.mxu0 0.0
    %139 = vmatpush1.msra.mxu0 0.0
    %140 = vmatprep.subr.mxu0 0.0
    %141 = vmatpush1.msra.mxu0 0.0
    %142 = vmatprep.subr.mxu0 0.0
    %143 = vmatpush1.msra.mxu0 0.0
    %144 = vmatprep.mubr.f32.mxu0 0.0
    %145 = vmatmul.mubr.f32.gmra.mrb[0].mxu0 %v62
    %v146 = vpop.f32.mrb[0].mxu0
    %v147 = vadd.f32 0.0, %v146
    %v148 = vpop.f32.mrb[0].mxu0
    %149 = vmatprep.mubr.f32.mxu0 0.0
    %150 = vmatmul.mubr.f32.gmra.mrb[0].mxu0 %v63
    %v151 = vpop.f32.mrb[0].mxu0
    %v152 = vadd.f32 0.0, %v151
    %v153 = vpop.f32.mrb[0].mxu0
    %154 = vdwg.mxu0
    %vm155 = vcmask 261120
    %156 = vst.msk [vmem:[%s13] sm:$0xff] %vm155, %v147
    %157 = vst.msk [vmem:[%s13 + $0x8] sm:$0xff] %vm155, %v152
    %v158 = vlaneseq
    %v159 = vshrl.u32 %v158, 7
    %vm160 = vcmp.le.s32.totalorder %v51, %v159
    %v161 = vsel %vm160, 0.0, -1e+09
    %v162 = vld [vmem:[%s1] sm:$0x1]
    %v163 = vld [vmem:[%s1 + $0x1] sm:$0x1]
    %v164 = vsub.f32 %v162, 1.0
    %v165 = vsub.f32 %v163, 1.0
    %v166 = vmul.f32 %v164, 1e+09
    %v167 = vmul.f32 %v165, 1e+09
    %v168 = vld [vmem:[%s3] sm:$0xff]
    %v169 = vld [vmem:[%s3 + $0x8] sm:$0xff]
    %v170 = vld [vmem:[%s4] sm:$0xff]
    %v171 = vld [vmem:[%s4 + $0x8] sm:$0xff]
    %v172 = vld [vmem:[%s5] sm:$0x1]
    %v173 = vmul.f32 %v147, %v147
    %v174 = vmul.f32 %v152, %v152
    %v175 = vsel %vm155, %v173, 0.0
    %176 = vadd.xlane.f32.xlu0 %v175
    %v177 = vpop.xlane.xlu0 %176
    %v178 = vsel %vm155, %v174, 0.0
    %179 = vadd.xlane.f32.xlu0 %v178
    %v180 = vpop.xlane.xlu0 %179
    %v181 = vrcp.pop 32.0
    %v182 = vmul.f32 %v177, %v181
    %v183 = vmul.f32 %v180, %v181
    %v184 = vadd.f32 %v182, 1e-06
    %v185 = vadd.f32 %v183, 1e-06
    %v186 = vrsqrt.pop %v184
    %v187 = vrsqrt.pop %v185
    %v188 = vmul.f32 %v147, %v186
    %v189 = vmul.f32 %v152, %v187
    %v191 = vlaneseq
    %v192 = vshrl.u32 %v191, 7
    %v193 = vsub.s32 0, %v192
    %v194 = vrot.slane %v172, %v193
    %v196 = vmul.f32 %v188, %v194
    %v197 = vmul.f32 %v189, %v194
    %v198 = vpack.c.bf16 %v197, %v196
    %v199 = vld [vmem:[%s6] sm:$0xff]
    %v200 = vld [vmem:[%s6 + $0x8] sm:$0xff]
    %v201 = vld [vmem:[%s6 + $0x10] sm:$0xff]
    %v202 = vld [vmem:[%s6 + $0x18] sm:$0xff]
    %v207 = vunpack.c.l.b16 %v199
    %v208 = vunpack.c.h.b16 %v199
    %v209 = vunpack.c.l.b16 %v200
    %v210 = vunpack.c.h.b16 %v200
    %v211 = vunpack.c.l.b16 %v201
    %v212 = vunpack.c.h.b16 %v201
    %v213 = vunpack.c.l.b16 %v202
    %v214 = vunpack.c.h.b16 %v202
    %v215 = vpack.c.b16 %v209, %v207
    %v216 = vpack.c.b16 %v210, %v208
    %v217 = vpack.c.b16 %v213, %v211
    %v218 = vpack.c.b16 %v214, %v212
    %v224 = vsel %vm155, %v198, 0
    %226 = vmatprep.subr.bf16.mxu0 %v216
    %227 = vmatpush1.bf16.msra.mxu0 %v215
    %228 = vmatprep.subr.bf16.mxu0 %v218
    %229 = vmatpush1.bf16.msra.mxu0 %v217
    %230 = vmatprep.subr.bf16.mxu0 0
    %231 = vmatpush1.bf16.msra.mxu0 0
    %232 = vmatprep.subr.bf16.mxu0 0
    %233 = vmatpush1.bf16.msra.mxu0 0
    %234 = vmatprep.subr.bf16.mxu0 0
    %235 = vmatpush1.bf16.msra.mxu0 0
    %236 = vmatprep.subr.bf16.mxu0 0
    %237 = vmatpush1.bf16.msra.mxu0 0
    %238 = vmatprep.subr.bf16.mxu0 0
    %239 = vmatpush1.bf16.msra.mxu0 0
    %240 = vmatprep.subr.bf16.mxu0 0
    %241 = vmatpush1.bf16.msra.mxu0 0
    %242 = vmatprep.subr.bf16.mxu0 0
    %243 = vmatpush1.bf16.msra.mxu0 0
    %244 = vmatprep.subr.bf16.mxu0 0
    %245 = vmatpush1.bf16.msra.mxu0 0
    %246 = vmatprep.subr.bf16.mxu0 0
    %247 = vmatpush1.bf16.msra.mxu0 0
    %248 = vmatprep.subr.bf16.mxu0 0
    %249 = vmatpush1.bf16.msra.mxu0 0
    %250 = vmatprep.subr.bf16.mxu0 0
    %251 = vmatpush1.bf16.msra.mxu0 0
    %252 = vmatprep.subr.bf16.mxu0 0
    %253 = vmatpush1.bf16.msra.mxu0 0
    %254 = vmatprep.subr.bf16.mxu0 0
    %255 = vmatpush1.bf16.msra.mxu0 0
    %256 = vmatprep.subr.bf16.mxu0 0
    %257 = vmatpush1.bf16.msra.mxu0 0
    %258 = vmatprep.mubr.bf16.mxu0 0
    %259 = vmatmul.mubr.bf16.gmra.mrb[0].mxu0 %v224
    %v260 = vpop.f32.mrb[0].mxu0
    %v261 = vadd.f32 0.0, %v260
    %v262 = vpop.f32.mrb[0].mxu0
    %v263 = vadd.f32 0.0, %v262
    %v264 = vpop.f32.mrb[0].mxu0
    %v265 = vadd.f32 0.0, %v264
    %v266 = vpop.f32.mrb[0].mxu0
    %v267 = vadd.f32 0.0, %v266
    %268 = vdwg.mxu0
    %v269 = vmul.f32 %v261, %v168
    %v270 = vmul.f32 %v265, %v169
    %273 = vrot.lane.b32.xlu0 %v170, 32
    %v274 = vpop.permute.xlu0 %273
    %275 = vrot.lane.b32.xlu0 %v171, 32
    %v276 = vpop.permute.xlu0 %275
    %v279 = vmul.f32 %v261, %v274
    %v280 = vmul.f32 %v265, %v276
    %283 = vrot.lane.b32.xlu0 %v279, 96
    %v284 = vpop.permute.xlu0 %283
    %285 = vrot.lane.b32.xlu0 %v280, 96
    %v286 = vpop.permute.xlu0 %285
    %v289 = vadd.f32 %v269, %v284
    %v290 = vadd.f32 %v270, %v286
    %293 = vrot.lane.b32.xlu0 %v168, 64
    %v294 = vpop.permute.xlu0 %293
    %295 = vrot.lane.b32.xlu0 %v169, 64
    %v296 = vpop.permute.xlu0 %295
    %v299 = vmul.f32 %v261, %v294
    %v300 = vmul.f32 %v265, %v296
    %301 = vrot.lane.b32.xlu0 %v170, 96
    %v302 = vpop.permute.xlu0 %301
    %303 = vrot.lane.b32.xlu0 %v171, 96
    %v304 = vpop.permute.xlu0 %303
    %v307 = vmul.f32 %v261, %v302
    %v308 = vmul.f32 %v265, %v304
    %311 = vrot.lane.b32.xlu0 %v307, 96
    %v312 = vpop.permute.xlu0 %311
    %313 = vrot.lane.b32.xlu0 %v308, 96
    %v314 = vpop.permute.xlu0 %313
    %v317 = vadd.f32 %v299, %v312
    %v318 = vadd.f32 %v300, %v314
    %v320 = vlaneseq
    %v321 = vshrl.u32 %v320, 7
    %v322 = vsub.s32 0, %v321
    %v323 = vrot.slane %v166, %v322
    %v325 = vadd.f32 %v161, %v323
    %v326 = vpack.c.bf16 %v289, %v289
    %v327 = vpack.c.bf16 %v317, %v317
    %v328 = vpack.c.bf16 %v263, %v263
    %330 = vrot.lane.b32.xlu0 %v327, 64
    %v331 = vpop.permute.xlu0 %330
    %vm332 = vcmask 64512
    %v334 = vsel %vm332, %v326, 0
    %v337 = vsel %vm332, %v331, 0
    %339 = vmatprep.subr.bf16.mxu0 0
    %340 = vmatpush1.bf16.xpose.msra.mxu0 %v337
    %341 = vmatprep.subr.bf16.mxu0 0
    %342 = vmatpush1.bf16.xpose.msra.mxu0 0
    %343 = vmatprep.subr.bf16.mxu0 0
    %344 = vmatpush1.bf16.xpose.msra.mxu0 0
    %345 = vmatprep.subr.bf16.mxu0 0
    %346 = vmatpush1.bf16.xpose.msra.mxu0 0
    %347 = vmatprep.subr.bf16.mxu0 0
    %348 = vmatpush1.bf16.xpose.msra.mxu0 0
    %349 = vmatprep.subr.bf16.mxu0 0
    %350 = vmatpush1.bf16.xpose.msra.mxu0 0
    %351 = vmatprep.subr.bf16.mxu0 0
    %352 = vmatpush1.bf16.xpose.msra.mxu0 0
    %353 = vmatprep.subr.bf16.mxu0 0
    %354 = vmatpush1.bf16.xpose.msra.mxu0 0
    %355 = vmatprep.subr.bf16.mxu0 0
    %356 = vmatpush1.bf16.xpose.msra.mxu0 0
    %357 = vmatprep.subr.bf16.mxu0 0
    %358 = vmatpush1.bf16.xpose.msra.mxu0 0
    %359 = vmatprep.subr.bf16.mxu0 0
    %360 = vmatpush1.bf16.xpose.msra.mxu0 0
    %361 = vmatprep.subr.bf16.mxu0 0
    %362 = vmatpush1.bf16.xpose.msra.mxu0 0
    %363 = vmatprep.subr.bf16.mxu0 0
    %364 = vmatpush1.bf16.xpose.msra.mxu0 0
    %365 = vmatprep.subr.bf16.mxu0 0
    %366 = vmatpush1.bf16.xpose.msra.mxu0 0
    %367 = vmatprep.subr.bf16.mxu0 0
    %368 = vmatpush1.bf16.xpose.msra.mxu0 0
    %369 = vmatprep.subr.bf16.mxu0 0
    %370 = vmatpush1.bf16.xpose.msra.mxu0 0
    %371 = vmatprep.mubr.bf16.mxu0 0
    %372 = vmatmul.mubr.bf16.gmra.mrb[0].mxu0 %v334
    %v373 = vpop.f32.mrb[0].mxu0
    %v374 = vadd.f32 0.0, %v373
    %v375 = vpop.f32.mrb[0].mxu0
    %v376 = vpop.f32.mrb[0].mxu0
    %v377 = vpop.f32.mrb[0].mxu0
    %378 = vdwg.mxu0
    %v379 = vmul.f32 %v374, 0.35355338
    %v380 = vadd.f32 %v379, %v325
    %v381 = vsel %vm332, %v380, -inf
    %382 = vmax.xlane.f32.xlu0 %v381
    %v383 = vpop.xlane.xlu0 %382
    %v384 = vsub.f32 %v380, %v383
    %v385 = vmul.f32 %v384, 1.442695
    %v386 = vpow.pop %v385
    %v387 = vsel %vm332, %v386, 0.0
    %388 = vadd.xlane.f32.xlu0 %v387
    %v389 = vpop.xlane.xlu0 %388
    %v390 = vrcp.pop %v389
    %v391 = vmul.f32 %v386, %v390
    %v392 = vpack.c.bf16 %v391, %v391
    %v394 = vsel %vm332, %v392, 0
    %vm396 = vcmask 1043456
    %v398 = vsel %vm396, %v328, 0
    %400 = vmatprep.subr.bf16.mxu0 0
    %401 = vmatpush1.bf16.msra.mxu0 %v398
    %402 = vmatprep.subr.bf16.mxu0 0
    %403 = vmatpush1.bf16.msra.mxu0 0
    %404 = vmatprep.subr.bf16.mxu0 0
    %405 = vmatpush1.bf16.msra.mxu0 0
    %406 = vmatprep.subr.bf16.mxu0 0
    %407 = vmatpush1.bf16.msra.mxu0 0
    %408 = vmatprep.subr.bf16.mxu0 0
    %409 = vmatpush1.bf16.msra.mxu0 0
    %410 = vmatprep.subr.bf16.mxu0 0
    %411 = vmatpush1.bf16.msra.mxu0 0
    %412 = vmatprep.subr.bf16.mxu0 0
    %413 = vmatpush1.bf16.msra.mxu0 0
    %414 = vmatprep.subr.bf16.mxu0 0
    %415 = vmatpush1.bf16.msra.mxu0 0
    %416 = vmatprep.subr.bf16.mxu0 0
    %417 = vmatpush1.bf16.msra.mxu0 0
    %418 = vmatprep.subr.bf16.mxu0 0
    %419 = vmatpush1.bf16.msra.mxu0 0
    %420 = vmatprep.subr.bf16.mxu0 0
    %421 = vmatpush1.bf16.msra.mxu0 0
    %422 = vmatprep.subr.bf16.mxu0 0
    %423 = vmatpush1.bf16.msra.mxu0 0
    %424 = vmatprep.subr.bf16.mxu0 0
    %425 = vmatpush1.bf16.msra.mxu0 0
    %426 = vmatprep.subr.bf16.mxu0 0
    %427 = vmatpush1.bf16.msra.mxu0 0
    %428 = vmatprep.subr.bf16.mxu0 0
    %429 = vmatpush1.bf16.msra.mxu0 0
    %430 = vmatprep.subr.bf16.mxu0 0
    %431 = vmatpush1.bf16.msra.mxu0 0
    %432 = vmatprep.mubr.bf16.mxu0 0
    %433 = vmatmul.mubr.bf16.gmra.mrb[0].mxu0 %v394
    %v434 = vpop.f32.mrb[0].mxu0
    %v435 = vadd.f32 0.0, %v434
    %v436 = vpop.f32.mrb[0].mxu0
    %v437 = vpop.f32.mrb[0].mxu0
    %v438 = vpop.f32.mrb[0].mxu0
    %439 = vdwg.mxu0
    %440 = vst.msk [vmem:[#allocation2] sm:$0xff] %vm332, %v435
    %442 = vrot.lane.b32.xlu0 %v326, 120
    %v443 = vpop.permute.xlu0 %442
    %444 = vrot.lane.b32.xlu0 %v327, 56
    %v445 = vpop.permute.xlu0 %444
    %v447 = vsel %vm332, %v443, 0
    %v450 = vsel %vm332, %v445, 0
    %452 = vmatprep.subr.bf16.mxu0 0
    %453 = vmatpush1.bf16.xpose.msra.mxu0 %v450
    %454 = vmatprep.subr.bf16.mxu0 0
    %455 = vmatpush1.bf16.xpose.msra.mxu0 0
    %456 = vmatprep.subr.bf16.mxu0 0
    %457 = vmatpush1.bf16.xpose.msra.mxu0 0
    %458 = vmatprep.subr.bf16.mxu0 0
    %459 = vmatpush1.bf16.xpose.msra.mxu0 0
    %460 = vmatprep.subr.bf16.mxu0 0
    %461 = vmatpush1.bf16.xpose.msra.mxu0 0
    %462 = vmatprep.subr.bf16.mxu0 0
    %463 = vmatpush1.bf16.xpose.msra.mxu0 0
    %464 = vmatprep.subr.bf16.mxu0 0
    %465 = vmatpush1.bf16.xpose.msra.mxu0 0
    %466 = vmatprep.subr.bf16.mxu0 0
    %467 = vmatpush1.bf16.xpose.msra.mxu0 0
    %468 = vmatprep.subr.bf16.mxu0 0
    %469 = vmatpush1.bf16.xpose.msra.mxu0 0
    %470 = vmatprep.subr.bf16.mxu0 0
    %471 = vmatpush1.bf16.xpose.msra.mxu0 0
    %472 = vmatprep.subr.bf16.mxu0 0
    %473 = vmatpush1.bf16.xpose.msra.mxu0 0
    %474 = vmatprep.subr.bf16.mxu0 0
    %475 = vmatpush1.bf16.xpose.msra.mxu0 0
    %476 = vmatprep.subr.bf16.mxu0 0
    %477 = vmatpush1.bf16.xpose.msra.mxu0 0
    %478 = vmatprep.subr.bf16.mxu0 0
    %479 = vmatpush1.bf16.xpose.msra.mxu0 0
    %480 = vmatprep.subr.bf16.mxu0 0
    %481 = vmatpush1.bf16.xpose.msra.mxu0 0
    %482 = vmatprep.subr.bf16.mxu0 0
    %483 = vmatpush1.bf16.xpose.msra.mxu0 0
    %484 = vmatprep.mubr.bf16.mxu0 0
    %485 = vmatmul.mubr.bf16.gmra.mrb[0].mxu0 %v447
    %v486 = vpop.f32.mrb[0].mxu0
    %v487 = vadd.f32 0.0, %v486
    %v488 = vpop.f32.mrb[0].mxu0
    %v489 = vpop.f32.mrb[0].mxu0
    %v490 = vpop.f32.mrb[0].mxu0
    %491 = vdwg.mxu0
    %v492 = vmul.f32 %v487, 0.35355338
    %v493 = vadd.f32 %v492, %v325
    %v494 = vsel %vm332, %v493, -inf
    %495 = vmax.xlane.f32.xlu0 %v494
    %v496 = vpop.xlane.xlu0 %495
    %v497 = vsub.f32 %v493, %v496
    %v498 = vmul.f32 %v497, 1.442695
    %v499 = vpow.pop %v498
    %v500 = vsel %vm332, %v499, 0.0
    %501 = vadd.xlane.f32.xlu0 %v500
    %v502 = vpop.xlane.xlu0 %501
    %v503 = vrcp.pop %v502
    %v504 = vmul.f32 %v499, %v503
    %v505 = vpack.c.bf16 %v504, %v504
    %507 = vrot.lane.b32.xlu0 %v328, 120
    %v508 = vpop.permute.xlu0 %507
    %v510 = vsel %vm332, %v505, 0
    %v513 = vsel %vm396, %v508, 0
    %515 = vmatprep.subr.bf16.mxu0 0
    %516 = vmatpush1.bf16.msra.mxu0 %v513
    %517 = vmatprep.subr.bf16.mxu0 0
    %518 = vmatpush1.bf16.msra.mxu0 0
    %519 = vmatprep.subr.bf16.mxu0 0
    %520 = vmatpush1.bf16.msra.mxu0 0
    %521 = vmatprep.subr.bf16.mxu0 0
    %522 = vmatpush1.bf16.msra.mxu0 0
    %523 = vmatprep.subr.bf16.mxu0 0
    %524 = vmatpush1.bf16.msra.mxu0 0
    %525 = vmatprep.subr.bf16.mxu0 0
    %526 = vmatpush1.bf16.msra.mxu0 0
    %527 = vmatprep.subr.bf16.mxu0 0
    %528 = vmatpush1.bf16.msra.mxu0 0
    %529 = vmatprep.subr.bf16.mxu0 0
    %530 = vmatpush1.bf16.msra.mxu0 0
    %531 = vmatprep.subr.bf16.mxu0 0
    %532 = vmatpush1.bf16.msra.mxu0 0
    %533 = vmatprep.subr.bf16.mxu0 0
    %534 = vmatpush1.bf16.msra.mxu0 0
    %535 = vmatprep.subr.bf16.mxu0 0
    %536 = vmatpush1.bf16.msra.mxu0 0
    %537 = vmatprep.subr.bf16.mxu0 0
    %538 = vmatpush1.bf16.msra.mxu0 0
    %539 = vmatprep.subr.bf16.mxu0 0
    %540 = vmatpush1.bf16.msra.mxu0 0
    %541 = vmatprep.subr.bf16.mxu0 0
    %542 = vmatpush1.bf16.msra.mxu0 0
    %543 = vmatprep.subr.bf16.mxu0 0
    %544 = vmatpush1.bf16.msra.mxu0 0
    %545 = vmatprep.subr.bf16.mxu0 0
    %546 = vmatpush1.bf16.msra.mxu0 0
    %547 = vmatprep.mubr.bf16.mxu0 0
    %548 = vmatmul.mubr.bf16.gmra.mrb[0].mxu0 %v510
    %v549 = vpop.f32.mrb[0].mxu0
    %v550 = vadd.f32 0.0, %v549
    %v551 = vpop.f32.mrb[0].mxu0
    %v552 = vpop.f32.mrb[0].mxu0
    %v553 = vpop.f32.mrb[0].mxu0
    %554 = vdwg.mxu0
    %556 = vrot.lane.b32.xlu0 %v550, 8
    %v557 = vpop.permute.xlu0 %556
    %vm559 = vcmask 130112
    %560 = vst.msk [vmem:[#allocation2] sm:$0xff] %vm559, %v557
    %561 = vrot.lane.b32.xlu0 %v326, 112
    %v562 = vpop.permute.xlu0 %561
    %563 = vrot.lane.b32.xlu0 %v327, 48
    %v564 = vpop.permute.xlu0 %563
    %v566 = vsel %vm332, %v562, 0
    %v569 = vsel %vm332, %v564, 0
    %571 = vmatprep.subr.bf16.mxu0 0
    %572 = vmatpush1.bf16.xpose.msra.mxu0 %v569
    %573 = vmatprep.subr.bf16.mxu0 0
    %574 = vmatpush1.bf16.xpose.msra.mxu0 0
    %575 = vmatprep.subr.bf16.mxu0 0
    %576 = vmatpush1.bf16.xpose.msra.mxu0 0
    %577 = vmatprep.subr.bf16.mxu0 0
    %578 = vmatpush1.bf16.xpose.msra.mxu0 0
    %579 = vmatprep.subr.bf16.mxu0 0
    %580 = vmatpush1.bf16.xpose.msra.mxu0 0
    %581 = vmatprep.subr.bf16.mxu0 0
    %582 = vmatpush1.bf16.xpose.msra.mxu0 0
    %583 = vmatprep.subr.bf16.mxu0 0
    %584 = vmatpush1.bf16.xpose.msra.mxu0 0
    %585 = vmatprep.subr.bf16.mxu0 0
    %586 = vmatpush1.bf16.xpose.msra.mxu0 0
    %587 = vmatprep.subr.bf16.mxu0 0
    %588 = vmatpush1.bf16.xpose.msra.mxu0 0
    %589 = vmatprep.subr.bf16.mxu0 0
    %590 = vmatpush1.bf16.xpose.msra.mxu0 0
    %591 = vmatprep.subr.bf16.mxu0 0
    %592 = vmatpush1.bf16.xpose.msra.mxu0 0
    %593 = vmatprep.subr.bf16.mxu0 0
    %594 = vmatpush1.bf16.xpose.msra.mxu0 0
    %595 = vmatprep.subr.bf16.mxu0 0
    %596 = vmatpush1.bf16.xpose.msra.mxu0 0
    %597 = vmatprep.subr.bf16.mxu0 0
    %598 = vmatpush1.bf16.xpose.msra.mxu0 0
    %599 = vmatprep.subr.bf16.mxu0 0
    %600 = vmatpush1.bf16.xpose.msra.mxu0 0
    %601 = vmatprep.subr.bf16.mxu0 0
    %602 = vmatpush1.bf16.xpose.msra.mxu0 0
    %603 = vmatprep.mubr.bf16.mxu0 0
    %604 = vmatmul.mubr.bf16.gmra.mrb[0].mxu0 %v566
    %v605 = vpop.f32.mrb[0].mxu0
    %v606 = vadd.f32 0.0, %v605
    %v607 = vpop.f32.mrb[0].mxu0
    %v608 = vpop.f32.mrb[0].mxu0
    %v609 = vpop.f32.mrb[0].mxu0
    %610 = vdwg.mxu0
    %v611 = vmul.f32 %v606, 0.35355338
    %v612 = vadd.f32 %v611, %v325
    %v613 = vsel %vm332, %v612, -inf
    %614 = vmax.xlane.f32.xlu0 %v613
    %v615 = vpop.xlane.xlu0 %614
    %v616 = vsub.f32 %v612, %v615
    %v617 = vmul.f32 %v616, 1.442695
    %v618 = vpow.pop %v617
    %v619 = vsel %vm332, %v618, 0.0
    %620 = vadd.xlane.f32.xlu0 %v619
    %v621 = vpop.xlane.xlu0 %620
    %v622 = vrcp.pop %v621
    %v623 = vmul.f32 %v618, %v622
    %v624 = vpack.c.bf16 %v623, %v623
    %625 = vrot.lane.b32.xlu0 %v328, 112
    %v626 = vpop.permute.xlu0 %625
    %v628 = vsel %vm332, %v624, 0
    %v631 = vsel %vm396, %v626, 0
    %633 = vmatprep.subr.bf16.mxu0 0
    %634 = vmatpush1.bf16.msra.mxu0 %v631
    %635 = vmatprep.subr.bf16.mxu0 0
    %636 = vmatpush1.bf16.msra.mxu0 0
    %637 = vmatprep.subr.bf16.mxu0 0
    %638 = vmatpush1.bf16.msra.mxu0 0
    %639 = vmatprep.subr.bf16.mxu0 0
    %640 = vmatpush1.bf16.msra.mxu0 0
    %641 = vmatprep.subr.bf16.mxu0 0
    %642 = vmatpush1.bf16.msra.mxu0 0
    %643 = vmatprep.subr.bf16.mxu0 0
    %644 = vmatpush1.bf16.msra.mxu0 0
    %645 = vmatprep.subr.bf16.mxu0 0
    %646 = vmatpush1.bf16.msra.mxu0 0
    %647 = vmatprep.subr.bf16.mxu0 0
    %648 = vmatpush1.bf16.msra.mxu0 0
    %649 = vmatprep.subr.bf16.mxu0 0
    %650 = vmatpush1.bf16.msra.mxu0 0
    %651 = vmatprep.subr.bf16.mxu0 0
    %652 = vmatpush1.bf16.msra.mxu0 0
    %653 = vmatprep.subr.bf16.mxu0 0
    %654 = vmatpush1.bf16.msra.mxu0 0
    %655 = vmatprep.subr.bf16.mxu0 0
    %656 = vmatpush1.bf16.msra.mxu0 0
    %657 = vmatprep.subr.bf16.mxu0 0
    %658 = vmatpush1.bf16.msra.mxu0 0
    %659 = vmatprep.subr.bf16.mxu0 0
    %660 = vmatpush1.bf16.msra.mxu0 0
    %661 = vmatprep.subr.bf16.mxu0 0
    %662 = vmatpush1.bf16.msra.mxu0 0
    %663 = vmatprep.subr.bf16.mxu0 0
    %664 = vmatpush1.bf16.msra.mxu0 0
    %665 = vmatprep.mubr.bf16.mxu0 0
    %666 = vmatmul.mubr.bf16.gmra.mrb[0].mxu0 %v628
    %v667 = vpop.f32.mrb[0].mxu0
    %v668 = vadd.f32 0.0, %v667
    %v669 = vpop.f32.mrb[0].mxu0
    %v670 = vpop.f32.mrb[0].mxu0
    %v671 = vpop.f32.mrb[0].mxu0
    %672 = vdwg.mxu0
    %674 = vrot.lane.b32.xlu0 %v668, 16
    %v675 = vpop.permute.xlu0 %674
    %vm677 = vcmask 195712
    %678 = vst.msk [vmem:[#allocation2] sm:$0xff] %vm677, %v675
    %679 = vrot.lane.b32.xlu0 %v326, 104
    %v680 = vpop.permute.xlu0 %679
    %681 = vrot.lane.b32.xlu0 %v327, 40
    %v682 = vpop.permute.xlu0 %681
    %v684 = vsel %vm332, %v680, 0
    %v687 = vsel %vm332, %v682, 0
    %689 = vmatprep.subr.bf16.mxu0 0
    %690 = vmatpush1.bf16.xpose.msra.mxu0 %v687
    %691 = vmatprep.subr.bf16.mxu0 0
    %692 = vmatpush1.bf16.xpose.msra.mxu0 0
    %693 = vmatprep.subr.bf16.mxu0 0
    %694 = vmatpush1.bf16.xpose.msra.mxu0 0
    %695 = vmatprep.subr.bf16.mxu0 0
    %696 = vmatpush1.bf16.xpose.msra.mxu0 0
    %697 = vmatprep.subr.bf16.mxu0 0
    %698 = vmatpush1.bf16.xpose.msra.mxu0 0
    %699 = vmatprep.subr.bf16.mxu0 0
    %700 = vmatpush1.bf16.xpose.msra.mxu0 0
    %701 = vmatprep.subr.bf16.mxu0 0
    %702 = vmatpush1.bf16.xpose.msra.mxu0 0
    %703 = vmatprep.subr.bf16.mxu0 0
    %704 = vmatpush1.bf16.xpose.msra.mxu0 0
    %705 = vmatprep.subr.bf16.mxu0 0
    %706 = vmatpush1.bf16.xpose.msra.mxu0 0
    %707 = vmatprep.subr.bf16.mxu0 0
    %708 = vmatpush1.bf16.xpose.msra.mxu0 0
    %709 = vmatprep.subr.bf16.mxu0 0
    %710 = vmatpush1.bf16.xpose.msra.mxu0 0
    %711 = vmatprep.subr.bf16.mxu0 0
    %712 = vmatpush1.bf16.xpose.msra.mxu0 0
    %713 = vmatprep.subr.bf16.mxu0 0
    %714 = vmatpush1.bf16.xpose.msra.mxu0 0
    %715 = vmatprep.subr.bf16.mxu0 0
    %716 = vmatpush1.bf16.xpose.msra.mxu0 0
    %717 = vmatprep.subr.bf16.mxu0 0
    %718 = vmatpush1.bf16.xpose.msra.mxu0 0
    %719 = vmatprep.subr.bf16.mxu0 0
    %720 = vmatpush1.bf16.xpose.msra.mxu0 0
    %721 = vmatprep.mubr.bf16.mxu0 0
    %722 = vmatmul.mubr.bf16.gmra.mrb[0].mxu0 %v684
    %v723 = vpop.f32.mrb[0].mxu0
    %v724 = vadd.f32 0.0, %v723
    %v725 = vpop.f32.mrb[0].mxu0
    %v726 = vpop.f32.mrb[0].mxu0
    %v727 = vpop.f32.mrb[0].mxu0
    %728 = vdwg.mxu0
    %v729 = vmul.f32 %v724, 0.35355338
    %v730 = vadd.f32 %v729, %v325
    %v731 = vsel %vm332, %v730, -inf
    %732 = vmax.xlane.f32.xlu0 %v731
    %v733 = vpop.xlane.xlu0 %732
    %v734 = vsub.f32 %v730, %v733
    %v735 = vmul.f32 %v734, 1.442695
    %v736 = vpow.pop %v735
    %v737 = vsel %vm332, %v736, 0.0
    %738 = vadd.xlane.f32.xlu0 %v737
    %v739 = vpop.xlane.xlu0 %738
    %v740 = vrcp.pop %v739
    %v741 = vmul.f32 %v736, %v740
    %v742 = vpack.c.bf16 %v741, %v741
    %743 = vrot.lane.b32.xlu0 %v328, 104
    %v744 = vpop.permute.xlu0 %743
    %v746 = vsel %vm332, %v742, 0
    %v749 = vsel %vm396, %v744, 0
    %751 = vmatprep.subr.bf16.mxu0 0
    %752 = vmatpush1.bf16.msra.mxu0 %v749
    %753 = vmatprep.subr.bf16.mxu0 0
    %754 = vmatpush1.bf16.msra.mxu0 0
    %755 = vmatprep.subr.bf16.mxu0 0
    %756 = vmatpush1.bf16.msra.mxu0 0
    %757 = vmatprep.subr.bf16.mxu0 0
    %758 = vmatpush1.bf16.msra.mxu0 0
    %759 = vmatprep.subr.bf16.mxu0 0
    %760 = vmatpush1.bf16.msra.mxu0 0
    %761 = vmatprep.subr.bf16.mxu0 0
    %762 = vmatpush1.bf16.msra.mxu0 0
    %763 = vmatprep.subr.bf16.mxu0 0
    %764 = vmatpush1.bf16.msra.mxu0 0
    %765 = vmatprep.subr.bf16.mxu0 0
    %766 = vmatpush1.bf16.msra.mxu0 0
    %767 = vmatprep.subr.bf16.mxu0 0
    %768 = vmatpush1.bf16.msra.mxu0 0
    %769 = vmatprep.subr.bf16.mxu0 0
    %770 = vmatpush1.bf16.msra.mxu0 0
    %771 = vmatprep.subr.bf16.mxu0 0
    %772 = vmatpush1.bf16.msra.mxu0 0
    %773 = vmatprep.subr.bf16.mxu0 0
    %774 = vmatpush1.bf16.msra.mxu0 0
    %775 = vmatprep.subr.bf16.mxu0 0
    %776 = vmatpush1.bf16.msra.mxu0 0
    %777 = vmatprep.subr.bf16.mxu0 0
    %778 = vmatpush1.bf16.msra.mxu0 0
    %779 = vmatprep.subr.bf16.mxu0 0
    %780 = vmatpush1.bf16.msra.mxu0 0
    %781 = vmatprep.subr.bf16.mxu0 0
    %782 = vmatpush1.bf16.msra.mxu0 0
    %783 = vmatprep.mubr.bf16.mxu0 0
    %784 = vmatmul.mubr.bf16.gmra.mrb[0].mxu0 %v746
    %v785 = vpop.f32.mrb[0].mxu0
    %v786 = vadd.f32 0.0, %v785
    %v787 = vpop.f32.mrb[0].mxu0
    %v788 = vpop.f32.mrb[0].mxu0
    %v789 = vpop.f32.mrb[0].mxu0
    %790 = vdwg.mxu0
    %792 = vrot.lane.b32.xlu0 %v786, 24
    %v793 = vpop.permute.xlu0 %792
    %vm795 = vcmask 261312
    %796 = vst.msk [vmem:[#allocation2] sm:$0xff] %vm795, %v793
    %v798 = vlaneseq
    %v799 = vshrl.u32 %v798, 7
    %v800 = vsub.s32 0, %v799
    %v801 = vrot.slane %v167, %v800
    %v803 = vadd.f32 %v161, %v801
    %v804 = vpack.c.bf16 %v290, %v290
    %v805 = vpack.c.bf16 %v318, %v318
    %v806 = vpack.c.bf16 %v267, %v267
    %808 = vrot.lane.b32.xlu0 %v805, 64
    %v809 = vpop.permute.xlu0 %808
    %v811 = vsel %vm332, %v804, 0
    %v814 = vsel %vm332, %v809, 0
    %816 = vmatprep.subr.bf16.mxu0 0
    %817 = vmatpush1.bf16.xpose.msra.mxu0 %v814
    %818 = vmatprep.subr.bf16.mxu0 0
    %819 = vmatpush1.bf16.xpose.msra.mxu0 0
    %820 = vmatprep.subr.bf16.mxu0 0
    %821 = vmatpush1.bf16.xpose.msra.mxu0 0
    %822 = vmatprep.subr.bf16.mxu0 0
    %823 = vmatpush1.bf16.xpose.msra.mxu0 0
    %824 = vmatprep.subr.bf16.mxu0 0
    %825 = vmatpush1.bf16.xpose.msra.mxu0 0
    %826 = vmatprep.subr.bf16.mxu0 0
    %827 = vmatpush1.bf16.xpose.msra.mxu0 0
    %828 = vmatprep.subr.bf16.mxu0 0
    %829 = vmatpush1.bf16.xpose.msra.mxu0 0
    %830 = vmatprep.subr.bf16.mxu0 0
    %831 = vmatpush1.bf16.xpose.msra.mxu0 0
    %832 = vmatprep.subr.bf16.mxu0 0
    %833 = vmatpush1.bf16.xpose.msra.mxu0 0
    %834 = vmatprep.subr.bf16.mxu0 0
    %835 = vmatpush1.bf16.xpose.msra.mxu0 0
    %836 = vmatprep.subr.bf16.mxu0 0
    %837 = vmatpush1.bf16.xpose.msra.mxu0 0
    %838 = vmatprep.subr.bf16.mxu0 0
    %839 = vmatpush1.bf16.xpose.msra.mxu0 0
    %840 = vmatprep.subr.bf16.mxu0 0
    %841 = vmatpush1.bf16.xpose.msra.mxu0 0
    %842 = vmatprep.subr.bf16.mxu0 0
    %843 = vmatpush1.bf16.xpose.msra.mxu0 0
    %844 = vmatprep.subr.bf16.mxu0 0
    %845 = vmatpush1.bf16.xpose.msra.mxu0 0
    %846 = vmatprep.subr.bf16.mxu0 0
    %847 = vmatpush1.bf16.xpose.msra.mxu0 0
    %848 = vmatprep.mubr.bf16.mxu0 0
    %849 = vmatmul.mubr.bf16.gmra.mrb[0].mxu0 %v811
    %v850 = vpop.f32.mrb[0].mxu0
    %v851 = vadd.f32 0.0, %v850
    %v852 = vpop.f32.mrb[0].mxu0
    %v853 = vpop.f32.mrb[0].mxu0
    %v854 = vpop.f32.mrb[0].mxu0
    %855 = vdwg.mxu0
    %v856 = vmul.f32 %v851, 0.35355338
    %v857 = vadd.f32 %v856, %v803
    %v858 = vsel %vm332, %v857, -inf
    %859 = vmax.xlane.f32.xlu0 %v858
    %v860 = vpop.xlane.xlu0 %859
    %v861 = vsub.f32 %v857, %v860
    %v862 = vmul.f32 %v861, 1.442695
    %v863 = vpow.pop %v862
    %v864 = vsel %vm332, %v863, 0.0
    %865 = vadd.xlane.f32.xlu0 %v864
    %v866 = vpop.xlane.xlu0 %865
    %v867 = vrcp.pop %v866
    %v868 = vmul.f32 %v863, %v867
    %v869 = vpack.c.bf16 %v868, %v868
    %v871 = vsel %vm332, %v869, 0
    %v874 = vsel %vm396, %v806, 0
    %876 = vmatprep.subr.bf16.mxu0 0
    %877 = vmatpush1.bf16.msra.mxu0 %v874
    %878 = vmatprep.subr.bf16.mxu0 0
    %879 = vmatpush1.bf16.msra.mxu0 0
    %880 = vmatprep.subr.bf16.mxu0 0
    %881 = vmatpush1.bf16.msra.mxu0 0
    %882 = vmatprep.subr.bf16.mxu0 0
    %883 = vmatpush1.bf16.msra.mxu0 0
    %884 = vmatprep.subr.bf16.mxu0 0
    %885 = vmatpush1.bf16.msra.mxu0 0
    %886 = vmatprep.subr.bf16.mxu0 0
    %887 = vmatpush1.bf16.msra.mxu0 0
    %888 = vmatprep.subr.bf16.mxu0 0
    %889 = vmatpush1.bf16.msra.mxu0 0
    %890 = vmatprep.subr.bf16.mxu0 0
    %891 = vmatpush1.bf16.msra.mxu0 0
    %892 = vmatprep.subr.bf16.mxu0 0
    %893 = vmatpush1.bf16.msra.mxu0 0
    %894 = vmatprep.subr.bf16.mxu0 0
    %895 = vmatpush1.bf16.msra.mxu0 0
    %896 = vmatprep.subr.bf16.mxu0 0
    %897 = vmatpush1.bf16.msra.mxu0 0
    %898 = vmatprep.subr.bf16.mxu0 0
    %899 = vmatpush1.bf16.msra.mxu0 0
    %900 = vmatprep.subr.bf16.mxu0 0
    %901 = vmatpush1.bf16.msra.mxu0 0
    %902 = vmatprep.subr.bf16.mxu0 0
    %903 = vmatpush1.bf16.msra.mxu0 0
    %904 = vmatprep.subr.bf16.mxu0 0
    %905 = vmatpush1.bf16.msra.mxu0 0
    %906 = vmatprep.subr.bf16.mxu0 0
    %907 = vmatpush1.bf16.msra.mxu0 0
    %908 = vmatprep.mubr.bf16.mxu0 0
    %909 = vmatmul.mubr.bf16.gmra.mrb[0].mxu0 %v871
    %v910 = vpop.f32.mrb[0].mxu0
    %v911 = vadd.f32 0.0, %v910
    %v912 = vpop.f32.mrb[0].mxu0
    %v913 = vpop.f32.mrb[0].mxu0
    %v914 = vpop.f32.mrb[0].mxu0
    %915 = vdwg.mxu0
    %916 = vst.msk [vmem:[#allocation2 + $0x8] sm:$0xff] %vm332, %v911
    %918 = vrot.lane.b32.xlu0 %v804, 120
    %v919 = vpop.permute.xlu0 %918
    %920 = vrot.lane.b32.xlu0 %v805, 56
    %v921 = vpop.permute.xlu0 %920
    %v923 = vsel %vm332, %v919, 0
    %v926 = vsel %vm332, %v921, 0
    %928 = vmatprep.subr.bf16.mxu0 0
    %929 = vmatpush1.bf16.xpose.msra.mxu0 %v926
    %930 = vmatprep.subr.bf16.mxu0 0
    %931 = vmatpush1.bf16.xpose.msra.mxu0 0
    %932 = vmatprep.subr.bf16.mxu0 0
    %933 = vmatpush1.bf16.xpose.msra.mxu0 0
    %934 = vmatprep.subr.bf16.mxu0 0
    %935 = vmatpush1.bf16.xpose.msra.mxu0 0
    %936 = vmatprep.subr.bf16.mxu0 0
    %937 = vmatpush1.bf16.xpose.msra.mxu0 0
    %938 = vmatprep.subr.bf16.mxu0 0
    %939 = vmatpush1.bf16.xpose.msra.mxu0 0
    %940 = vmatprep.subr.bf16.mxu0 0
    %941 = vmatpush1.bf16.xpose.msra.mxu0 0
    %942 = vmatprep.subr.bf16.mxu0 0
    %943 = vmatpush1.bf16.xpose.msra.mxu0 0
    %944 = vmatprep.subr.bf16.mxu0 0
    %945 = vmatpush1.bf16.xpose.msra.mxu0 0
    %946 = vmatprep.subr.bf16.mxu0 0
    %947 = vmatpush1.bf16.xpose.msra.mxu0 0
    %948 = vmatprep.subr.bf16.mxu0 0
    %949 = vmatpush1.bf16.xpose.msra.mxu0 0
    %950 = vmatprep.subr.bf16.mxu0 0
    %951 = vmatpush1.bf16.xpose.msra.mxu0 0
    %952 = vmatprep.subr.bf16.mxu0 0
    %953 = vmatpush1.bf16.xpose.msra.mxu0 0
    %954 = vmatprep.subr.bf16.mxu0 0
    %955 = vmatpush1.bf16.xpose.msra.mxu0 0
    %956 = vmatprep.subr.bf16.mxu0 0
    %957 = vmatpush1.bf16.xpose.msra.mxu0 0
    %958 = vmatprep.subr.bf16.mxu0 0
    %959 = vmatpush1.bf16.xpose.msra.mxu0 0
    %960 = vmatprep.mubr.bf16.mxu0 0
    %961 = vmatmul.mubr.bf16.gmra.mrb[0].mxu0 %v923
    %v962 = vpop.f32.mrb[0].mxu0
    %v963 = vadd.f32 0.0, %v962
    %v964 = vpop.f32.mrb[0].mxu0
    %v965 = vpop.f32.mrb[0].mxu0
    %v966 = vpop.f32.mrb[0].mxu0
    %967 = vdwg.mxu0
    %v968 = vmul.f32 %v963, 0.35355338
    %v969 = vadd.f32 %v968, %v803
    %v970 = vsel %vm332, %v969, -inf
    %971 = vmax.xlane.f32.xlu0 %v970
    %v972 = vpop.xlane.xlu0 %971
    %v973 = vsub.f32 %v969, %v972
    %v974 = vmul.f32 %v973, 1.442695
    %v975 = vpow.pop %v974
    %v976 = vsel %vm332, %v975, 0.0
    %977 = vadd.xlane.f32.xlu0 %v976
    %v978 = vpop.xlane.xlu0 %977
    %v979 = vrcp.pop %v978
    %v980 = vmul.f32 %v975, %v979
    %v981 = vpack.c.bf16 %v980, %v980
    %983 = vrot.lane.b32.xlu0 %v806, 120
    %v984 = vpop.permute.xlu0 %983
    %v986 = vsel %vm332, %v981, 0
    %v989 = vsel %vm396, %v984, 0
    %991 = vmatprep.subr.bf16.mxu0 0
    %992 = vmatpush1.bf16.msra.mxu0 %v989
    %993 = vmatprep.subr.bf16.mxu0 0
    %994 = vmatpush1.bf16.msra.mxu0 0
    %995 = vmatprep.subr.bf16.mxu0 0
    %996 = vmatpush1.bf16.msra.mxu0 0
    %997 = vmatprep.subr.bf16.mxu0 0
    %998 = vmatpush1.bf16.msra.mxu0 0
    %999 = vmatprep.subr.bf16.mxu0 0
    %1000 = vmatpush1.bf16.msra.mxu0 0
    %1001 = vmatprep.subr.bf16.mxu0 0
    %1002 = vmatpush1.bf16.msra.mxu0 0
    %1003 = vmatprep.subr.bf16.mxu0 0
    %1004 = vmatpush1.bf16.msra.mxu0 0
    %1005 = vmatprep.subr.bf16.mxu0 0
    %1006 = vmatpush1.bf16.msra.mxu0 0
    %1007 = vmatprep.subr.bf16.mxu0 0
    %1008 = vmatpush1.bf16.msra.mxu0 0
    %1009 = vmatprep.subr.bf16.mxu0 0
    %1010 = vmatpush1.bf16.msra.mxu0 0
    %1011 = vmatprep.subr.bf16.mxu0 0
    %1012 = vmatpush1.bf16.msra.mxu0 0
    %1013 = vmatprep.subr.bf16.mxu0 0
    %1014 = vmatpush1.bf16.msra.mxu0 0
    %1015 = vmatprep.subr.bf16.mxu0 0
    %1016 = vmatpush1.bf16.msra.mxu0 0
    %1017 = vmatprep.subr.bf16.mxu0 0
    %1018 = vmatpush1.bf16.msra.mxu0 0
    %1019 = vmatprep.subr.bf16.mxu0 0
    %1020 = vmatpush1.bf16.msra.mxu0 0
    %1021 = vmatprep.subr.bf16.mxu0 0
    %1022 = vmatpush1.bf16.msra.mxu0 0
    %1023 = vmatprep.mubr.bf16.mxu0 0
    %1024 = vmatmul.mubr.bf16.gmra.mrb[0].mxu0 %v986
    %v1025 = vpop.f32.mrb[0].mxu0
    %v1026 = vadd.f32 0.0, %v1025
    %v1027 = vpop.f32.mrb[0].mxu0
    %v1028 = vpop.f32.mrb[0].mxu0
    %v1029 = vpop.f32.mrb[0].mxu0
    %1030 = vdwg.mxu0
    %1032 = vrot.lane.b32.xlu0 %v1026, 8
    %v1033 = vpop.permute.xlu0 %1032
    %1035 = vst.msk [vmem:[#allocation2 + $0x8] sm:$0xff] %vm559, %v1033
    %1036 = vrot.lane.b32.xlu0 %v804, 112
    %v1037 = vpop.permute.xlu0 %1036
    %1038 = vrot.lane.b32.xlu0 %v805, 48
    %v1039 = vpop.permute.xlu0 %1038
    %v1041 = vsel %vm332, %v1037, 0
    %v1044 = vsel %vm332, %v1039, 0
    %1046 = vmatprep.subr.bf16.mxu0 0
    %1047 = vmatpush1.bf16.xpose.msra.mxu0 %v1044
    %1048 = vmatprep.subr.bf16.mxu0 0
    %1049 = vmatpush1.bf16.xpose.msra.mxu0 0
    %1050 = vmatprep.subr.bf16.mxu0 0
    %1051 = vmatpush1.bf16.xpose.msra.mxu0 0
    %1052 = vmatprep.subr.bf16.mxu0 0
    %1053 = vmatpush1.bf16.xpose.msra.mxu0 0
    %1054 = vmatprep.subr.bf16.mxu0 0
    %1055 = vmatpush1.bf16.xpose.msra.mxu0 0
    %1056 = vmatprep.subr.bf16.mxu0 0
    %1057 = vmatpush1.bf16.xpose.msra.mxu0 0
    %1058 = vmatprep.subr.bf16.mxu0 0
    %1059 = vmatpush1.bf16.xpose.msra.mxu0 0
    %1060 = vmatprep.subr.bf16.mxu0 0
    %1061 = vmatpush1.bf16.xpose.msra.mxu0 0
    %1062 = vmatprep.subr.bf16.mxu0 0
    %1063 = vmatpush1.bf16.xpose.msra.mxu0 0
    %1064 = vmatprep.subr.bf16.mxu0 0
    %1065 = vmatpush1.bf16.xpose.msra.mxu0 0
    %1066 = vmatprep.subr.bf16.mxu0 0
    %1067 = vmatpush1.bf16.xpose.msra.mxu0 0
    %1068 = vmatprep.subr.bf16.mxu0 0
    %1069 = vmatpush1.bf16.xpose.msra.mxu0 0
    %1070 = vmatprep.subr.bf16.mxu0 0
    %1071 = vmatpush1.bf16.xpose.msra.mxu0 0
    %1072 = vmatprep.subr.bf16.mxu0 0
    %1073 = vmatpush1.bf16.xpose.msra.mxu0 0
    %1074 = vmatprep.subr.bf16.mxu0 0
    %1075 = vmatpush1.bf16.xpose.msra.mxu0 0
    %1076 = vmatprep.subr.bf16.mxu0 0
    %1077 = vmatpush1.bf16.xpose.msra.mxu0 0
    %1078 = vmatprep.mubr.bf16.mxu0 0
    %1079 = vmatmul.mubr.bf16.gmra.mrb[0].mxu0 %v1041
    %v1080 = vpop.f32.mrb[0].mxu0
    %v1081 = vadd.f32 0.0, %v1080
    %v1082 = vpop.f32.mrb[0].mxu0
    %v1083 = vpop.f32.mrb[0].mxu0
    %v1084 = vpop.f32.mrb[0].mxu0
    %1085 = vdwg.mxu0
    %v1086 = vmul.f32 %v1081, 0.35355338
    %v1087 = vadd.f32 %v1086, %v803
    %v1088 = vsel %vm332, %v1087, -inf
    %1089 = vmax.xlane.f32.xlu0 %v1088
    %v1090 = vpop.xlane.xlu0 %1089
    %v1091 = vsub.f32 %v1087, %v1090
    %v1092 = vmul.f32 %v1091, 1.442695
    %v1093 = vpow.pop %v1092
    %v1094 = vsel %vm332, %v1093, 0.0
    %1095 = vadd.xlane.f32.xlu0 %v1094
    %v1096 = vpop.xlane.xlu0 %1095
    %v1097 = vrcp.pop %v1096
    %v1098 = vmul.f32 %v1093, %v1097
    %v1099 = vpack.c.bf16 %v1098, %v1098
    %1100 = vrot.lane.b32.xlu0 %v806, 112
    %v1101 = vpop.permute.xlu0 %1100
    %v1103 = vsel %vm332, %v1099, 0
    %v1106 = vsel %vm396, %v1101, 0
    %1108 = vmatprep.subr.bf16.mxu0 0
    %1109 = vmatpush1.bf16.msra.mxu0 %v1106
    %1110 = vmatprep.subr.bf16.mxu0 0
    %1111 = vmatpush1.bf16.msra.mxu0 0
    %1112 = vmatprep.subr.bf16.mxu0 0
    %1113 = vmatpush1.bf16.msra.mxu0 0
    %1114 = vmatprep.subr.bf16.mxu0 0
    %1115 = vmatpush1.bf16.msra.mxu0 0
    %1116 = vmatprep.subr.bf16.mxu0 0
    %1117 = vmatpush1.bf16.msra.mxu0 0
    %1118 = vmatprep.subr.bf16.mxu0 0
    %1119 = vmatpush1.bf16.msra.mxu0 0
    %1120 = vmatprep.subr.bf16.mxu0 0
    %1121 = vmatpush1.bf16.msra.mxu0 0
    %1122 = vmatprep.subr.bf16.mxu0 0
    %1123 = vmatpush1.bf16.msra.mxu0 0
    %1124 = vmatprep.subr.bf16.mxu0 0
    %1125 = vmatpush1.bf16.msra.mxu0 0
    %1126 = vmatprep.subr.bf16.mxu0 0
    %1127 = vmatpush1.bf16.msra.mxu0 0
    %1128 = vmatprep.subr.bf16.mxu0 0
    %1129 = vmatpush1.bf16.msra.mxu0 0
    %1130 = vmatprep.subr.bf16.mxu0 0
    %1131 = vmatpush1.bf16.msra.mxu0 0
    %1132 = vmatprep.subr.bf16.mxu0 0
    %1133 = vmatpush1.bf16.msra.mxu0 0
    %1134 = vmatprep.subr.bf16.mxu0 0
    %1135 = vmatpush1.bf16.msra.mxu0 0
    %1136 = vmatprep.subr.bf16.mxu0 0
    %1137 = vmatpush1.bf16.msra.mxu0 0
    %1138 = vmatprep.subr.bf16.mxu0 0
    %1139 = vmatpush1.bf16.msra.mxu0 0
    %1140 = vmatprep.mubr.bf16.mxu0 0
    %1141 = vmatmul.mubr.bf16.gmra.mrb[0].mxu0 %v1103
    %v1142 = vpop.f32.mrb[0].mxu0
    %v1143 = vadd.f32 0.0, %v1142
    %v1144 = vpop.f32.mrb[0].mxu0
    %v1145 = vpop.f32.mrb[0].mxu0
    %v1146 = vpop.f32.mrb[0].mxu0
    %1147 = vdwg.mxu0
    %1149 = vrot.lane.b32.xlu0 %v1143, 16
    %v1150 = vpop.permute.xlu0 %1149
    %1152 = vst.msk [vmem:[#allocation2 + $0x8] sm:$0xff] %vm677, %v1150
    %1153 = vrot.lane.b32.xlu0 %v804, 104
    %v1154 = vpop.permute.xlu0 %1153
    %1155 = vrot.lane.b32.xlu0 %v805, 40
    %v1156 = vpop.permute.xlu0 %1155
    %v1158 = vsel %vm332, %v1154, 0
    %v1161 = vsel %vm332, %v1156, 0
    %1163 = vmatprep.subr.bf16.mxu0 0
    %1164 = vmatpush1.bf16.xpose.msra.mxu0 %v1161
    %1165 = vmatprep.subr.bf16.mxu0 0
    %1166 = vmatpush1.bf16.xpose.msra.mxu0 0
    %1167 = vmatprep.subr.bf16.mxu0 0
    %1168 = vmatpush1.bf16.xpose.msra.mxu0 0
    %1169 = vmatprep.subr.bf16.mxu0 0
    %1170 = vmatpush1.bf16.xpose.msra.mxu0 0
    %1171 = vmatprep.subr.bf16.mxu0 0
    %1172 = vmatpush1.bf16.xpose.msra.mxu0 0
    %1173 = vmatprep.subr.bf16.mxu0 0
    %1174 = vmatpush1.bf16.xpose.msra.mxu0 0
    %1175 = vmatprep.subr.bf16.mxu0 0
    %1176 = vmatpush1.bf16.xpose.msra.mxu0 0
    %1177 = vmatprep.subr.bf16.mxu0 0
    %1178 = vmatpush1.bf16.xpose.msra.mxu0 0
    %1179 = vmatprep.subr.bf16.mxu0 0
    %1180 = vmatpush1.bf16.xpose.msra.mxu0 0
    %1181 = vmatprep.subr.bf16.mxu0 0
    %1182 = vmatpush1.bf16.xpose.msra.mxu0 0
    %1183 = vmatprep.subr.bf16.mxu0 0
    %1184 = vmatpush1.bf16.xpose.msra.mxu0 0
    %1185 = vmatprep.subr.bf16.mxu0 0
    %1186 = vmatpush1.bf16.xpose.msra.mxu0 0
    %1187 = vmatprep.subr.bf16.mxu0 0
    %1188 = vmatpush1.bf16.xpose.msra.mxu0 0
    %1189 = vmatprep.subr.bf16.mxu0 0
    %1190 = vmatpush1.bf16.xpose.msra.mxu0 0
    %1191 = vmatprep.subr.bf16.mxu0 0
    %1192 = vmatpush1.bf16.xpose.msra.mxu0 0
    %1193 = vmatprep.subr.bf16.mxu0 0
    %1194 = vmatpush1.bf16.xpose.msra.mxu0 0
    %1195 = vmatprep.mubr.bf16.mxu0 0
    %1196 = vmatmul.mubr.bf16.gmra.mrb[0].mxu0 %v1158
    %v1197 = vpop.f32.mrb[0].mxu0
    %v1198 = vadd.f32 0.0, %v1197
    %v1199 = vpop.f32.mrb[0].mxu0
    %v1200 = vpop.f32.mrb[0].mxu0
    %v1201 = vpop.f32.mrb[0].mxu0
    %1202 = vdwg.mxu0
    %v1203 = vmul.f32 %v1198, 0.35355338
    %v1204 = vadd.f32 %v1203, %v803
    %v1205 = vsel %vm332, %v1204, -inf
    %1206 = vmax.xlane.f32.xlu0 %v1205
    %v1207 = vpop.xlane.xlu0 %1206
    %v1208 = vsub.f32 %v1204, %v1207
    %v1209 = vmul.f32 %v1208, 1.442695
    %v1210 = vpow.pop %v1209
    %v1211 = vsel %vm332, %v1210, 0.0
    %1212 = vadd.xlane.f32.xlu0 %v1211
    %v1213 = vpop.xlane.xlu0 %1212
    %v1214 = vrcp.pop %v1213
    %v1215 = vmul.f32 %v1210, %v1214
    %v1216 = vpack.c.bf16 %v1215, %v1215
    %1217 = vrot.lane.b32.xlu0 %v806, 104
    %v1218 = vpop.permute.xlu0 %1217
    %v1220 = vsel %vm332, %v1216, 0
    %v1223 = vsel %vm396, %v1218, 0
    %1225 = vmatprep.subr.bf16.mxu0 0
    %1226 = vmatpush1.bf16.msra.mxu0 %v1223
    %1227 = vmatprep.subr.bf16.mxu0 0
    %1228 = vmatpush1.bf16.msra.mxu0 0
    %1229 = vmatprep.subr.bf16.mxu0 0
    %1230 = vmatpush1.bf16.msra.mxu0 0
    %1231 = vmatprep.subr.bf16.mxu0 0
    %1232 = vmatpush1.bf16.msra.mxu0 0
    %1233 = vmatprep.subr.bf16.mxu0 0
    %1234 = vmatpush1.bf16.msra.mxu0 0
    %1235 = vmatprep.subr.bf16.mxu0 0
    %1236 = vmatpush1.bf16.msra.mxu0 0
    %1237 = vmatprep.subr.bf16.mxu0 0
    %1238 = vmatpush1.bf16.msra.mxu0 0
    %1239 = vmatprep.subr.bf16.mxu0 0
    %1240 = vmatpush1.bf16.msra.mxu0 0
    %1241 = vmatprep.subr.bf16.mxu0 0
    %1242 = vmatpush1.bf16.msra.mxu0 0
    %1243 = vmatprep.subr.bf16.mxu0 0
    %1244 = vmatpush1.bf16.msra.mxu0 0
    %1245 = vmatprep.subr.bf16.mxu0 0
    %1246 = vmatpush1.bf16.msra.mxu0 0
    %1247 = vmatprep.subr.bf16.mxu0 0
    %1248 = vmatpush1.bf16.msra.mxu0 0
    %1249 = vmatprep.subr.bf16.mxu0 0
    %1250 = vmatpush1.bf16.msra.mxu0 0
    %1251 = vmatprep.subr.bf16.mxu0 0
    %1252 = vmatpush1.bf16.msra.mxu0 0
    %1253 = vmatprep.subr.bf16.mxu0 0
    %1254 = vmatpush1.bf16.msra.mxu0 0
    %1255 = vmatprep.subr.bf16.mxu0 0
    %1256 = vmatpush1.bf16.msra.mxu0 0
    %1257 = vmatprep.mubr.bf16.mxu0 0
    %1258 = vmatmul.mubr.bf16.gmra.mrb[0].mxu0 %v1220
    %v1259 = vpop.f32.mrb[0].mxu0
    %v1260 = vadd.f32 0.0, %v1259
    %v1261 = vpop.f32.mrb[0].mxu0
    %v1262 = vpop.f32.mrb[0].mxu0
    %v1263 = vpop.f32.mrb[0].mxu0
    %1264 = vdwg.mxu0
    %1266 = vrot.lane.b32.xlu0 %v1260, 24
    %v1267 = vpop.permute.xlu0 %1266
    %1269 = vst.msk [vmem:[#allocation2 + $0x8] sm:$0xff] %vm795, %v1267
    %v1270 = vld [vmem:[#allocation2] sm:$0xff]
    %v1271 = vld [vmem:[#allocation2 + $0x8] sm:$0xff]
    %v1272 = vpack.c.bf16 %v1271, %v1270
    %v1273 = vld [vmem:[%s7] sm:$0xf]
    %v1274 = vld [vmem:[%s7 + $0x4] sm:$0xf]
    %v1275 = vld [vmem:[%s7 + $0x8] sm:$0xf]
    %v1276 = vld [vmem:[%s7 + $0xc] sm:$0xf]
    %v1281 = vunpack.c.l.b16 %v1273
    %v1282 = vunpack.c.l.b16 %v1274
    %v1283 = vunpack.c.l.b16 %v1275
    %v1284 = vunpack.c.l.b16 %v1276
    %v1285 = vpack.c.b16 %v1282, %v1281
    %v1286 = vpack.c.b16 %v1284, %v1283
    %v1290 = vsel %vm155, %v1272, 0
    %1292 = vmatprep.subr.bf16.mxu0 0
    %1293 = vmatpush1.bf16.msra.mxu0 %v1285
    %1294 = vmatprep.subr.bf16.mxu0 0
    %1295 = vmatpush1.bf16.msra.mxu0 %v1286
    %1296 = vmatprep.subr.bf16.mxu0 0
    %1297 = vmatpush1.bf16.msra.mxu0 0
    %1298 = vmatprep.subr.bf16.mxu0 0
    %1299 = vmatpush1.bf16.msra.mxu0 0
    %1300 = vmatprep.subr.bf16.mxu0 0
    %1301 = vmatpush1.bf16.msra.mxu0 0
    %1302 = vmatprep.subr.bf16.mxu0 0
    %1303 = vmatpush1.bf16.msra.mxu0 0
    %1304 = vmatprep.subr.bf16.mxu0 0
    %1305 = vmatpush1.bf16.msra.mxu0 0
    %1306 = vmatprep.subr.bf16.mxu0 0
    %1307 = vmatpush1.bf16.msra.mxu0 0
    %1308 = vmatprep.subr.bf16.mxu0 0
    %1309 = vmatpush1.bf16.msra.mxu0 0
    %1310 = vmatprep.subr.bf16.mxu0 0
    %1311 = vmatpush1.bf16.msra.mxu0 0
    %1312 = vmatprep.subr.bf16.mxu0 0
    %1313 = vmatpush1.bf16.msra.mxu0 0
    %1314 = vmatprep.subr.bf16.mxu0 0
    %1315 = vmatpush1.bf16.msra.mxu0 0
    %1316 = vmatprep.subr.bf16.mxu0 0
    %1317 = vmatpush1.bf16.msra.mxu0 0
    %1318 = vmatprep.subr.bf16.mxu0 0
    %1319 = vmatpush1.bf16.msra.mxu0 0
    %1320 = vmatprep.subr.bf16.mxu0 0
    %1321 = vmatpush1.bf16.msra.mxu0 0
    %1322 = vmatprep.subr.bf16.mxu0 0
    %1323 = vmatpush1.bf16.msra.mxu0 0
    %1324 = vmatprep.mubr.bf16.mxu0 0
    %1325 = vmatmul.mubr.bf16.gmra.mrb[0].mxu0 %v1290
    %v1326 = vpop.f32.mrb[0].mxu0
    %v1327 = vadd.f32 0.0, %v1326
    %v1328 = vpop.f32.mrb[0].mxu0
    %v1329 = vpop.f32.mrb[0].mxu0
    %v1330 = vadd.f32 0.0, %v1329
    %v1331 = vpop.f32.mrb[0].mxu0
    %1332 = vdwg.mxu0
    %v1333 = vadd.f32 %v147, %v1327
    %v1334 = vadd.f32 %v152, %v1330
    %v1335 = vld [vmem:[%s8] sm:$0x1]
    %v1336 = vmul.f32 %v1333, %v1333
    %v1337 = vmul.f32 %v1334, %v1334
    %v1338 = vsel %vm155, %v1336, 0.0
    %1339 = vadd.xlane.f32.xlu0 %v1338
    %v1340 = vpop.xlane.xlu0 %1339
    %v1341 = vsel %vm155, %v1337, 0.0
    %1342 = vadd.xlane.f32.xlu0 %v1341
    %v1343 = vpop.xlane.xlu0 %1342
    %v1344 = vmul.f32 %v1340, %v181
    %v1345 = vmul.f32 %v1343, %v181
    %v1346 = vadd.f32 %v1344, 1e-06
    %v1347 = vadd.f32 %v1345, 1e-06
    %v1348 = vrsqrt.pop %v1346
    %v1349 = vrsqrt.pop %v1347
    %v1350 = vmul.f32 %v1333, %v1348
    %v1351 = vmul.f32 %v1334, %v1349
    %v1353 = vlaneseq
    %v1354 = vshrl.u32 %v1353, 7
    %v1355 = vsub.s32 0, %v1354
    %v1356 = vrot.slane %v1335, %v1355
    %v1358 = vmul.f32 %v1350, %v1356
    %v1359 = vmul.f32 %v1351, %v1356
    %v1360 = vpack.c.bf16 %v1359, %v1358
    %v1361 = vld [vmem:[%s9] sm:$0xf]
    %v1362 = vld [vmem:[%s9 + $0x4] sm:$0xf]
    %v1363 = vld [vmem:[%s9 + $0x8] sm:$0xf]
    %v1364 = vld [vmem:[%s9 + $0xc] sm:$0xf]
    %v1369 = vunpack.c.l.b16 %v1361
    %v1370 = vunpack.c.l.b16 %v1362
    %v1371 = vunpack.c.l.b16 %v1363
    %v1372 = vunpack.c.l.b16 %v1364
    %v1373 = vpack.c.b16 %v1370, %v1369
    %v1374 = vpack.c.b16 %v1372, %v1371
    %v1378 = vsel %vm155, %v1360, 0
    %1380 = vmatprep.subr.bf16.mxu0 0
    %1381 = vmatpush1.bf16.msra.mxu0 %v1373
    %1382 = vmatprep.subr.bf16.mxu0 0
    %1383 = vmatpush1.bf16.msra.mxu0 %v1374
    %1384 = vmatprep.subr.bf16.mxu0 0
    %1385 = vmatpush1.bf16.msra.mxu0 0
    %1386 = vmatprep.subr.bf16.mxu0 0
    %1387 = vmatpush1.bf16.msra.mxu0 0
    %1388 = vmatprep.subr.bf16.mxu0 0
    %1389 = vmatpush1.bf16.msra.mxu0 0
    %1390 = vmatprep.subr.bf16.mxu0 0
    %1391 = vmatpush1.bf16.msra.mxu0 0
    %1392 = vmatprep.subr.bf16.mxu0 0
    %1393 = vmatpush1.bf16.msra.mxu0 0
    %1394 = vmatprep.subr.bf16.mxu0 0
    %1395 = vmatpush1.bf16.msra.mxu0 0
    %1396 = vmatprep.subr.bf16.mxu0 0
    %1397 = vmatpush1.bf16.msra.mxu0 0
    %1398 = vmatprep.subr.bf16.mxu0 0
    %1399 = vmatpush1.bf16.msra.mxu0 0
    %1400 = vmatprep.subr.bf16.mxu0 0
    %1401 = vmatpush1.bf16.msra.mxu0 0
    %1402 = vmatprep.subr.bf16.mxu0 0
    %1403 = vmatpush1.bf16.msra.mxu0 0
    %1404 = vmatprep.subr.bf16.mxu0 0
    %1405 = vmatpush1.bf16.msra.mxu0 0
    %1406 = vmatprep.subr.bf16.mxu0 0
    %1407 = vmatpush1.bf16.msra.mxu0 0
    %1408 = vmatprep.subr.bf16.mxu0 0
    %1409 = vmatpush1.bf16.msra.mxu0 0
    %1410 = vmatprep.subr.bf16.mxu0 0
    %1411 = vmatpush1.bf16.msra.mxu0 0
    %1412 = vmatprep.mubr.bf16.mxu0 0
    %1413 = vmatmul.mubr.bf16.gmra.mrb[0].mxu0 %v1378
    %v1414 = vpop.f32.mrb[0].mxu0
    %v1415 = vadd.f32 0.0, %v1414
    %v1416 = vpop.f32.mrb[0].mxu0
    %v1417 = vpop.f32.mrb[0].mxu0
    %v1418 = vadd.f32 0.0, %v1417
    %v1419 = vpop.f32.mrb[0].mxu0
    %1420 = vdwg.mxu0
    %v1421 = vxor.u32 %v1415, 2147483648
    %v1422 = vxor.u32 %v1418, 2147483648
    %v1423 = vmul.f32 %v1421, 1.442695
    %v1424 = vpow.pop %v1423
    %v1425 = vmul.f32 %v1422, 1.442695
    %v1426 = vpow.pop %v1425
    %v1427 = vadd.f32 %v1424, 1.0
    %v1428 = vadd.f32 %v1426, 1.0
    %v1429 = vrcp.pop %v1427
    %v1430 = vmul.f32 1.0, %v1429
    %v1431 = vrcp.pop %v1428
    %v1432 = vmul.f32 1.0, %v1431
    %v1433 = vmul.f32 %v1415, %v1430
    %v1434 = vmul.f32 %v1418, %v1432
    %1437 = vrot.lane.b32.xlu0 %v1415, 64
    %v1438 = vpop.permute.xlu0 %1437
    %1439 = vrot.lane.b32.xlu0 %v1418, 64
    %v1440 = vpop.permute.xlu0 %1439
    %v1443 = vmul.f32 %v1433, %v1438
    %v1444 = vmul.f32 %v1434, %v1440
    %v1445 = vpack.c.bf16 %v1444, %v1443
    %v1446 = vld [vmem:[%s10] sm:$0xf]
    %v1447 = vld [vmem:[%s10 + $0x4] sm:$0xf]
    %v1448 = vld [vmem:[%s10 + $0x8] sm:$0xf]
    %v1449 = vld [vmem:[%s10 + $0xc] sm:$0xf]
    %v1450 = vld [vmem:[%s10 + $0x10] sm:$0xf]
    %v1451 = vld [vmem:[%s10 + $0x14] sm:$0xf]
    %v1452 = vld [vmem:[%s10 + $0x18] sm:$0xf]
    %v1453 = vld [vmem:[%s10 + $0x1c] sm:$0xf]
    %v1462 = vunpack.c.l.b16 %v1446
    %v1463 = vunpack.c.l.b16 %v1447
    %v1464 = vunpack.c.l.b16 %v1448
    %v1465 = vunpack.c.l.b16 %v1449
    %v1466 = vunpack.c.l.b16 %v1450
    %v1467 = vunpack.c.l.b16 %v1451
    %v1468 = vunpack.c.l.b16 %v1452
    %v1469 = vunpack.c.l.b16 %v1453
    %v1470 = vpack.c.b16 %v1463, %v1462
    %v1471 = vpack.c.b16 %v1465, %v1464
    %v1472 = vpack.c.b16 %v1467, %v1466
    %v1473 = vpack.c.b16 %v1469, %v1468
    %vm1478 = vcmask 523264
    %v1480 = vsel %vm1478, %v1445, 0
    %1482 = vmatprep.subr.bf16.mxu0 0
    %1483 = vmatpush1.bf16.msra.mxu0 %v1470
    %1484 = vmatprep.subr.bf16.mxu0 0
    %1485 = vmatpush1.bf16.msra.mxu0 %v1471
    %1486 = vmatprep.subr.bf16.mxu0 0
    %1487 = vmatpush1.bf16.msra.mxu0 %v1472
    %1488 = vmatprep.subr.bf16.mxu0 0
    %1489 = vmatpush1.bf16.msra.mxu0 %v1473
    %1490 = vmatprep.subr.bf16.mxu0 0
    %1491 = vmatpush1.bf16.msra.mxu0 0
    %1492 = vmatprep.subr.bf16.mxu0 0
    %1493 = vmatpush1.bf16.msra.mxu0 0
    %1494 = vmatprep.subr.bf16.mxu0 0
    %1495 = vmatpush1.bf16.msra.mxu0 0
    %1496 = vmatprep.subr.bf16.mxu0 0
    %1497 = vmatpush1.bf16.msra.mxu0 0
    %1498 = vmatprep.subr.bf16.mxu0 0
    %1499 = vmatpush1.bf16.msra.mxu0 0
    %1500 = vmatprep.subr.bf16.mxu0 0
    %1501 = vmatpush1.bf16.msra.mxu0 0
    %1502 = vmatprep.subr.bf16.mxu0 0
    %1503 = vmatpush1.bf16.msra.mxu0 0
    %1504 = vmatprep.subr.bf16.mxu0 0
    %1505 = vmatpush1.bf16.msra.mxu0 0
    %1506 = vmatprep.subr.bf16.mxu0 0
    %1507 = vmatpush1.bf16.msra.mxu0 0
    %1508 = vmatprep.subr.bf16.mxu0 0
    %1509 = vmatpush1.bf16.msra.mxu0 0
    %1510 = vmatprep.subr.bf16.mxu0 0
    %1511 = vmatpush1.bf16.msra.mxu0 0
    %1512 = vmatprep.subr.bf16.mxu0 0
    %1513 = vmatpush1.bf16.msra.mxu0 0
    %1514 = vmatprep.mubr.bf16.mxu0 0
    %1515 = vmatmul.mubr.bf16.gmra.mrb[0].mxu0 %v1480
    %v1516 = vpop.f32.mrb[0].mxu0
    %v1517 = vadd.f32 0.0, %v1516
    %v1518 = vpop.f32.mrb[0].mxu0
    %v1519 = vpop.f32.mrb[0].mxu0
    %v1520 = vadd.f32 0.0, %v1519
    %v1521 = vpop.f32.mrb[0].mxu0
    %1522 = vdwg.mxu0
    %v1523 = vadd.f32 %v1333, %v1517
    %v1524 = vadd.f32 %v1334, %v1520
    %s1525 = scalar_lea.vmem %s13, 16
    %1526 = vst.msk [vmem:[%s1525] sm:$0xff] %vm155, %v1523
    %1527 = vst.msk [vmem:[%s1525 + $0x8] sm:$0xff] %vm155, %v1524
    %s1528 = scalar_lea.vmem %s5, 1
    %v1529 = vld [vmem:[%s1528] sm:$0x1]
    %v1530 = vmul.f32 %v1523, %v1523
    %v1531 = vmul.f32 %v1524, %v1524
    %v1532 = vsel %vm155, %v1530, 0.0
    %1533 = vadd.xlane.f32.xlu0 %v1532
    %v1534 = vpop.xlane.xlu0 %1533
    %v1535 = vsel %vm155, %v1531, 0.0
    %1536 = vadd.xlane.f32.xlu0 %v1535
    %v1537 = vpop.xlane.xlu0 %1536
    %v1538 = vmul.f32 %v1534, %v181
    %v1539 = vmul.f32 %v1537, %v181
    %v1540 = vadd.f32 %v1538, 1e-06
    %v1541 = vadd.f32 %v1539, 1e-06
    %v1542 = vrsqrt.pop %v1540
    %v1543 = vrsqrt.pop %v1541
    %v1544 = vmul.f32 %v1523, %v1542
    %v1545 = vmul.f32 %v1524, %v1543
    %v1547 = vlaneseq
    %v1548 = vshrl.u32 %v1547, 7
    %v1549 = vsub.s32 0, %v1548
    %v1550 = vrot.slane %v1529, %v1549
    %v1552 = vmul.f32 %v1544, %v1550
    %v1553 = vmul.f32 %v1545, %v1550
    %v1554 = vpack.c.bf16 %v1553, %v1552
    %s1555 = scalar_lea.vmem %s6, 32
    %v1556 = vld [vmem:[%s1555] sm:$0xff]
    %v1557 = vld [vmem:[%s1555 + $0x8] sm:$0xff]
    %v1558 = vld [vmem:[%s1555 + $0x10] sm:$0xff]
    %v1559 = vld [vmem:[%s1555 + $0x18] sm:$0xff]
    %v1564 = vunpack.c.l.b16 %v1556
    %v1565 = vunpack.c.h.b16 %v1556
    %v1566 = vunpack.c.l.b16 %v1557
    %v1567 = vunpack.c.h.b16 %v1557
    %v1568 = vunpack.c.l.b16 %v1558
    %v1569 = vunpack.c.h.b16 %v1558
    %v1570 = vunpack.c.l.b16 %v1559
    %v1571 = vunpack.c.h.b16 %v1559
    %v1572 = vpack.c.b16 %v1566, %v1564
    %v1573 = vpack.c.b16 %v1567, %v1565
    %v1574 = vpack.c.b16 %v1570, %v1568
    %v1575 = vpack.c.b16 %v1571, %v1569
    %v1581 = vsel %vm155, %v1554, 0
    %1583 = vmatprep.subr.bf16.mxu0 %v1573
    %1584 = vmatpush1.bf16.msra.mxu0 %v1572
    %1585 = vmatprep.subr.bf16.mxu0 %v1575
    %1586 = vmatpush1.bf16.msra.mxu0 %v1574
    %1587 = vmatprep.subr.bf16.mxu0 0
    %1588 = vmatpush1.bf16.msra.mxu0 0
    %1589 = vmatprep.subr.bf16.mxu0 0
    %1590 = vmatpush1.bf16.msra.mxu0 0
    %1591 = vmatprep.subr.bf16.mxu0 0
    %1592 = vmatpush1.bf16.msra.mxu0 0
    %1593 = vmatprep.subr.bf16.mxu0 0
    %1594 = vmatpush1.bf16.msra.mxu0 0
    %1595 = vmatprep.subr.bf16.mxu0 0
    %1596 = vmatpush1.bf16.msra.mxu0 0
    %1597 = vmatprep.subr.bf16.mxu0 0
    %1598 = vmatpush1.bf16.msra.mxu0 0
    %1599 = vmatprep.subr.bf16.mxu0 0
    %1600 = vmatpush1.bf16.msra.mxu0 0
    %1601 = vmatprep.subr.bf16.mxu0 0
    %1602 = vmatpush1.bf16.msra.mxu0 0
    %1603 = vmatprep.subr.bf16.mxu0 0
    %1604 = vmatpush1.bf16.msra.mxu0 0
    %1605 = vmatprep.subr.bf16.mxu0 0
    %1606 = vmatpush1.bf16.msra.mxu0 0
    %1607 = vmatprep.subr.bf16.mxu0 0
    %1608 = vmatpush1.bf16.msra.mxu0 0
    %1609 = vmatprep.subr.bf16.mxu0 0
    %1610 = vmatpush1.bf16.msra.mxu0 0
    %1611 = vmatprep.subr.bf16.mxu0 0
    %1612 = vmatpush1.bf16.msra.mxu0 0
    %1613 = vmatprep.subr.bf16.mxu0 0
    %1614 = vmatpush1.bf16.msra.mxu0 0
    %1615 = vmatprep.mubr.bf16.mxu0 0
    %1616 = vmatmul.mubr.bf16.gmra.mrb[0].mxu0 %v1581
    %v1617 = vpop.f32.mrb[0].mxu0
    %v1618 = vadd.f32 0.0, %v1617
    %v1619 = vpop.f32.mrb[0].mxu0
    %v1620 = vadd.f32 0.0, %v1619
    %v1621 = vpop.f32.mrb[0].mxu0
    %v1622 = vadd.f32 0.0, %v1621
    %v1623 = vpop.f32.mrb[0].mxu0
    %v1624 = vadd.f32 0.0, %v1623
    %1625 = vdwg.mxu0
    %v1626 = vmul.f32 %v1618, %v168
    %v1627 = vmul.f32 %v1622, %v169
    %v1628 = vmul.f32 %v1618, %v274
    %v1629 = vmul.f32 %v1622, %v276
    %1632 = vrot.lane.b32.xlu0 %v1628, 96
    %v1633 = vpop.permute.xlu0 %1632
    %1634 = vrot.lane.b32.xlu0 %v1629, 96
    %v1635 = vpop.permute.xlu0 %1634
    %v1638 = vadd.f32 %v1626, %v1633
    %v1639 = vadd.f32 %v1627, %v1635
    %v1640 = vmul.f32 %v1618, %v294
    %v1641 = vmul.f32 %v1622, %v296
    %v1642 = vmul.f32 %v1618, %v302
    %v1643 = vmul.f32 %v1622, %v304
    %1646 = vrot.lane.b32.xlu0 %v1642, 96
    %v1647 = vpop.permute.xlu0 %1646
    %1648 = vrot.lane.b32.xlu0 %v1643, 96
    %v1649 = vpop.permute.xlu0 %1648
    %v1652 = vadd.f32 %v1640, %v1647
    %v1653 = vadd.f32 %v1641, %v1649
    %v1654 = vpack.c.bf16 %v1638, %v1638
    %v1655 = vpack.c.bf16 %v1652, %v1652
    %v1656 = vpack.c.bf16 %v1620, %v1620
    %1658 = vrot.lane.b32.xlu0 %v1655, 64
    %v1659 = vpop.permute.xlu0 %1658
    %v1661 = vsel %vm332, %v1654, 0
    %v1664 = vsel %vm332, %v1659, 0
    %1666 = vmatprep.subr.bf16.mxu0 0
    %1667 = vmatpush1.bf16.xpose.msra.mxu0 %v1664
    %1668 = vmatprep.subr.bf16.mxu0 0
    %1669 = vmatpush1.bf16.xpose.msra.mxu0 0
    %1670 = vmatprep.subr.bf16.mxu0 0
    %1671 = vmatpush1.bf16.xpose.msra.mxu0 0
    %1672 = vmatprep.subr.bf16.mxu0 0
    %1673 = vmatpush1.bf16.xpose.msra.mxu0 0
    %1674 = vmatprep.subr.bf16.mxu0 0
    %1675 = vmatpush1.bf16.xpose.msra.mxu0 0
    %1676 = vmatprep.subr.bf16.mxu0 0
    %1677 = vmatpush1.bf16.xpose.msra.mxu0 0
    %1678 = vmatprep.subr.bf16.mxu0 0
    %1679 = vmatpush1.bf16.xpose.msra.mxu0 0
    %1680 = vmatprep.subr.bf16.mxu0 0
    %1681 = vmatpush1.bf16.xpose.msra.mxu0 0
    %1682 = vmatprep.subr.bf16.mxu0 0
    %1683 = vmatpush1.bf16.xpose.msra.mxu0 0
    %1684 = vmatprep.subr.bf16.mxu0 0
    %1685 = vmatpush1.bf16.xpose.msra.mxu0 0
    %1686 = vmatprep.subr.bf16.mxu0 0
    %1687 = vmatpush1.bf16.xpose.msra.mxu0 0
    %1688 = vmatprep.subr.bf16.mxu0 0
    %1689 = vmatpush1.bf16.xpose.msra.mxu0 0
    %1690 = vmatprep.subr.bf16.mxu0 0
    %1691 = vmatpush1.bf16.xpose.msra.mxu0 0
    %1692 = vmatprep.subr.bf16.mxu0 0
    %1693 = vmatpush1.bf16.xpose.msra.mxu0 0
    %1694 = vmatprep.subr.bf16.mxu0 0
    %1695 = vmatpush1.bf16.xpose.msra.mxu0 0
    %1696 = vmatprep.subr.bf16.mxu0 0
    %1697 = vmatpush1.bf16.xpose.msra.mxu0 0
    %1698 = vmatprep.mubr.bf16.mxu0 0
    %1699 = vmatmul.mubr.bf16.gmra.mrb[0].mxu0 %v1661
    %v1700 = vpop.f32.mrb[0].mxu0
    %v1701 = vadd.f32 0.0, %v1700
    %v1702 = vpop.f32.mrb[0].mxu0
    %v1703 = vpop.f32.mrb[0].mxu0
    %v1704 = vpop.f32.mrb[0].mxu0
    %1705 = vdwg.mxu0
    %v1706 = vmul.f32 %v1701, 0.35355338
    %v1707 = vadd.f32 %v1706, %v325
    %v1708 = vsel %vm332, %v1707, -inf
    %1709 = vmax.xlane.f32.xlu0 %v1708
    %v1710 = vpop.xlane.xlu0 %1709
    %v1711 = vsub.f32 %v1707, %v1710
    %v1712 = vmul.f32 %v1711, 1.442695
    %v1713 = vpow.pop %v1712
    %v1714 = vsel %vm332, %v1713, 0.0
    %1715 = vadd.xlane.f32.xlu0 %v1714
    %v1716 = vpop.xlane.xlu0 %1715
    %v1717 = vrcp.pop %v1716
    %v1718 = vmul.f32 %v1713, %v1717
    %v1719 = vpack.c.bf16 %v1718, %v1718
    %v1721 = vsel %vm332, %v1719, 0
    %v1724 = vsel %vm396, %v1656, 0
    %1726 = vmatprep.subr.bf16.mxu0 0
    %1727 = vmatpush1.bf16.msra.mxu0 %v1724
    %1728 = vmatprep.subr.bf16.mxu0 0
    %1729 = vmatpush1.bf16.msra.mxu0 0
    %1730 = vmatprep.subr.bf16.mxu0 0
    %1731 = vmatpush1.bf16.msra.mxu0 0
    %1732 = vmatprep.subr.bf16.mxu0 0
    %1733 = vmatpush1.bf16.msra.mxu0 0
    %1734 = vmatprep.subr.bf16.mxu0 0
    %1735 = vmatpush1.bf16.msra.mxu0 0
    %1736 = vmatprep.subr.bf16.mxu0 0
    %1737 = vmatpush1.bf16.msra.mxu0 0
    %1738 = vmatprep.subr.bf16.mxu0 0
    %1739 = vmatpush1.bf16.msra.mxu0 0
    %1740 = vmatprep.subr.bf16.mxu0 0
    %1741 = vmatpush1.bf16.msra.mxu0 0
    %1742 = vmatprep.subr.bf16.mxu0 0
    %1743 = vmatpush1.bf16.msra.mxu0 0
    %1744 = vmatprep.subr.bf16.mxu0 0
    %1745 = vmatpush1.bf16.msra.mxu0 0
    %1746 = vmatprep.subr.bf16.mxu0 0
    %1747 = vmatpush1.bf16.msra.mxu0 0
    %1748 = vmatprep.subr.bf16.mxu0 0
    %1749 = vmatpush1.bf16.msra.mxu0 0
    %1750 = vmatprep.subr.bf16.mxu0 0
    %1751 = vmatpush1.bf16.msra.mxu0 0
    %1752 = vmatprep.subr.bf16.mxu0 0
    %1753 = vmatpush1.bf16.msra.mxu0 0
    %1754 = vmatprep.subr.bf16.mxu0 0
    %1755 = vmatpush1.bf16.msra.mxu0 0
    %1756 = vmatprep.subr.bf16.mxu0 0
    %1757 = vmatpush1.bf16.msra.mxu0 0
    %1758 = vmatprep.mubr.bf16.mxu0 0
    %1759 = vmatmul.mubr.bf16.gmra.mrb[0].mxu0 %v1721
    %v1760 = vpop.f32.mrb[0].mxu0
    %v1761 = vadd.f32 0.0, %v1760
    %v1762 = vpop.f32.mrb[0].mxu0
    %v1763 = vpop.f32.mrb[0].mxu0
    %v1764 = vpop.f32.mrb[0].mxu0
    %1765 = vdwg.mxu0
    %1766 = vst.msk [vmem:[#allocation2] sm:$0xff] %vm332, %v1761
    %1768 = vrot.lane.b32.xlu0 %v1654, 120
    %v1769 = vpop.permute.xlu0 %1768
    %1770 = vrot.lane.b32.xlu0 %v1655, 56
    %v1771 = vpop.permute.xlu0 %1770
    %v1773 = vsel %vm332, %v1769, 0
    %v1776 = vsel %vm332, %v1771, 0
    %1778 = vmatprep.subr.bf16.mxu0 0
    %1779 = vmatpush1.bf16.xpose.msra.mxu0 %v1776
    %1780 = vmatprep.subr.bf16.mxu0 0
    %1781 = vmatpush1.bf16.xpose.msra.mxu0 0
    %1782 = vmatprep.subr.bf16.mxu0 0
    %1783 = vmatpush1.bf16.xpose.msra.mxu0 0
    %1784 = vmatprep.subr.bf16.mxu0 0
    %1785 = vmatpush1.bf16.xpose.msra.mxu0 0
    %1786 = vmatprep.subr.bf16.mxu0 0
    %1787 = vmatpush1.bf16.xpose.msra.mxu0 0
    %1788 = vmatprep.subr.bf16.mxu0 0
    %1789 = vmatpush1.bf16.xpose.msra.mxu0 0
    %1790 = vmatprep.subr.bf16.mxu0 0
    %1791 = vmatpush1.bf16.xpose.msra.mxu0 0
    %1792 = vmatprep.subr.bf16.mxu0 0
    %1793 = vmatpush1.bf16.xpose.msra.mxu0 0
    %1794 = vmatprep.subr.bf16.mxu0 0
    %1795 = vmatpush1.bf16.xpose.msra.mxu0 0
    %1796 = vmatprep.subr.bf16.mxu0 0
    %1797 = vmatpush1.bf16.xpose.msra.mxu0 0
    %1798 = vmatprep.subr.bf16.mxu0 0
    %1799 = vmatpush1.bf16.xpose.msra.mxu0 0
    %1800 = vmatprep.subr.bf16.mxu0 0
    %1801 = vmatpush1.bf16.xpose.msra.mxu0 0
    %1802 = vmatprep.subr.bf16.mxu0 0
    %1803 = vmatpush1.bf16.xpose.msra.mxu0 0
    %1804 = vmatprep.subr.bf16.mxu0 0
    %1805 = vmatpush1.bf16.xpose.msra.mxu0 0
    %1806 = vmatprep.subr.bf16.mxu0 0
    %1807 = vmatpush1.bf16.xpose.msra.mxu0 0
    %1808 = vmatprep.subr.bf16.mxu0 0
    %1809 = vmatpush1.bf16.xpose.msra.mxu0 0
    %1810 = vmatprep.mubr.bf16.mxu0 0
    %1811 = vmatmul.mubr.bf16.gmra.mrb[0].mxu0 %v1773
    %v1812 = vpop.f32.mrb[0].mxu0
    %v1813 = vadd.f32 0.0, %v1812
    %v1814 = vpop.f32.mrb[0].mxu0
    %v1815 = vpop.f32.mrb[0].mxu0
    %v1816 = vpop.f32.mrb[0].mxu0
    %1817 = vdwg.mxu0
    %v1818 = vmul.f32 %v1813, 0.35355338
    %v1819 = vadd.f32 %v1818, %v325
    %v1820 = vsel %vm332, %v1819, -inf
    %1821 = vmax.xlane.f32.xlu0 %v1820
    %v1822 = vpop.xlane.xlu0 %1821
    %v1823 = vsub.f32 %v1819, %v1822
    %v1824 = vmul.f32 %v1823, 1.442695
    %v1825 = vpow.pop %v1824
    %v1826 = vsel %vm332, %v1825, 0.0
    %1827 = vadd.xlane.f32.xlu0 %v1826
    %v1828 = vpop.xlane.xlu0 %1827
    %v1829 = vrcp.pop %v1828
    %v1830 = vmul.f32 %v1825, %v1829
    %v1831 = vpack.c.bf16 %v1830, %v1830
    %1833 = vrot.lane.b32.xlu0 %v1656, 120
    %v1834 = vpop.permute.xlu0 %1833
    %v1836 = vsel %vm332, %v1831, 0
    %v1839 = vsel %vm396, %v1834, 0
    %1841 = vmatprep.subr.bf16.mxu0 0
    %1842 = vmatpush1.bf16.msra.mxu0 %v1839
    %1843 = vmatprep.subr.bf16.mxu0 0
    %1844 = vmatpush1.bf16.msra.mxu0 0
    %1845 = vmatprep.subr.bf16.mxu0 0
    %1846 = vmatpush1.bf16.msra.mxu0 0
    %1847 = vmatprep.subr.bf16.mxu0 0
    %1848 = vmatpush1.bf16.msra.mxu0 0
    %1849 = vmatprep.subr.bf16.mxu0 0
    %1850 = vmatpush1.bf16.msra.mxu0 0
    %1851 = vmatprep.subr.bf16.mxu0 0
    %1852 = vmatpush1.bf16.msra.mxu0 0
    %1853 = vmatprep.subr.bf16.mxu0 0
    %1854 = vmatpush1.bf16.msra.mxu0 0
    %1855 = vmatprep.subr.bf16.mxu0 0
    %1856 = vmatpush1.bf16.msra.mxu0 0
    %1857 = vmatprep.subr.bf16.mxu0 0
    %1858 = vmatpush1.bf16.msra.mxu0 0
    %1859 = vmatprep.subr.bf16.mxu0 0
    %1860 = vmatpush1.bf16.msra.mxu0 0
    %1861 = vmatprep.subr.bf16.mxu0 0
    %1862 = vmatpush1.bf16.msra.mxu0 0
    %1863 = vmatprep.subr.bf16.mxu0 0
    %1864 = vmatpush1.bf16.msra.mxu0 0
    %1865 = vmatprep.subr.bf16.mxu0 0
    %1866 = vmatpush1.bf16.msra.mxu0 0
    %1867 = vmatprep.subr.bf16.mxu0 0
    %1868 = vmatpush1.bf16.msra.mxu0 0
    %1869 = vmatprep.subr.bf16.mxu0 0
    %1870 = vmatpush1.bf16.msra.mxu0 0
    %1871 = vmatprep.subr.bf16.mxu0 0
    %1872 = vmatpush1.bf16.msra.mxu0 0
    %1873 = vmatprep.mubr.bf16.mxu0 0
    %1874 = vmatmul.mubr.bf16.gmra.mrb[0].mxu0 %v1836
    %v1875 = vpop.f32.mrb[0].mxu0
    %v1876 = vadd.f32 0.0, %v1875
    %v1877 = vpop.f32.mrb[0].mxu0
    %v1878 = vpop.f32.mrb[0].mxu0
    %v1879 = vpop.f32.mrb[0].mxu0
    %1880 = vdwg.mxu0
    %1882 = vrot.lane.b32.xlu0 %v1876, 8
    %v1883 = vpop.permute.xlu0 %1882
    %1885 = vst.msk [vmem:[#allocation2] sm:$0xff] %vm559, %v1883
    %1886 = vrot.lane.b32.xlu0 %v1654, 112
    %v1887 = vpop.permute.xlu0 %1886
    %1888 = vrot.lane.b32.xlu0 %v1655, 48
    %v1889 = vpop.permute.xlu0 %1888
    %v1891 = vsel %vm332, %v1887, 0
    %v1894 = vsel %vm332, %v1889, 0
    %1896 = vmatprep.subr.bf16.mxu0 0
    %1897 = vmatpush1.bf16.xpose.msra.mxu0 %v1894
    %1898 = vmatprep.subr.bf16.mxu0 0
    %1899 = vmatpush1.bf16.xpose.msra.mxu0 0
    %1900 = vmatprep.subr.bf16.mxu0 0
    %1901 = vmatpush1.bf16.xpose.msra.mxu0 0
    %1902 = vmatprep.subr.bf16.mxu0 0
    %1903 = vmatpush1.bf16.xpose.msra.mxu0 0
    %1904 = vmatprep.subr.bf16.mxu0 0
    %1905 = vmatpush1.bf16.xpose.msra.mxu0 0
    %1906 = vmatprep.subr.bf16.mxu0 0
    %1907 = vmatpush1.bf16.xpose.msra.mxu0 0
    %1908 = vmatprep.subr.bf16.mxu0 0
    %1909 = vmatpush1.bf16.xpose.msra.mxu0 0
    %1910 = vmatprep.subr.bf16.mxu0 0
    %1911 = vmatpush1.bf16.xpose.msra.mxu0 0
    %1912 = vmatprep.subr.bf16.mxu0 0
    %1913 = vmatpush1.bf16.xpose.msra.mxu0 0
    %1914 = vmatprep.subr.bf16.mxu0 0
    %1915 = vmatpush1.bf16.xpose.msra.mxu0 0
    %1916 = vmatprep.subr.bf16.mxu0 0
    %1917 = vmatpush1.bf16.xpose.msra.mxu0 0
    %1918 = vmatprep.subr.bf16.mxu0 0
    %1919 = vmatpush1.bf16.xpose.msra.mxu0 0
    %1920 = vmatprep.subr.bf16.mxu0 0
    %1921 = vmatpush1.bf16.xpose.msra.mxu0 0
    %1922 = vmatprep.subr.bf16.mxu0 0
    %1923 = vmatpush1.bf16.xpose.msra.mxu0 0
    %1924 = vmatprep.subr.bf16.mxu0 0
    %1925 = vmatpush1.bf16.xpose.msra.mxu0 0
    %1926 = vmatprep.subr.bf16.mxu0 0
    %1927 = vmatpush1.bf16.xpose.msra.mxu0 0
    %1928 = vmatprep.mubr.bf16.mxu0 0
    %1929 = vmatmul.mubr.bf16.gmra.mrb[0].mxu0 %v1891
    %v1930 = vpop.f32.mrb[0].mxu0
    %v1931 = vadd.f32 0.0, %v1930
    %v1932 = vpop.f32.mrb[0].mxu0
    %v1933 = vpop.f32.mrb[0].mxu0
    %v1934 = vpop.f32.mrb[0].mxu0
    %1935 = vdwg.mxu0
    %v1936 = vmul.f32 %v1931, 0.35355338
    %v1937 = vadd.f32 %v1936, %v325
    %v1938 = vsel %vm332, %v1937, -inf
    %1939 = vmax.xlane.f32.xlu0 %v1938
    %v1940 = vpop.xlane.xlu0 %1939
    %v1941 = vsub.f32 %v1937, %v1940
    %v1942 = vmul.f32 %v1941, 1.442695
    %v1943 = vpow.pop %v1942
    %v1944 = vsel %vm332, %v1943, 0.0
    %1945 = vadd.xlane.f32.xlu0 %v1944
    %v1946 = vpop.xlane.xlu0 %1945
    %v1947 = vrcp.pop %v1946
    %v1948 = vmul.f32 %v1943, %v1947
    %v1949 = vpack.c.bf16 %v1948, %v1948
    %1950 = vrot.lane.b32.xlu0 %v1656, 112
    %v1951 = vpop.permute.xlu0 %1950
    %v1953 = vsel %vm332, %v1949, 0
    %v1956 = vsel %vm396, %v1951, 0
    %1958 = vmatprep.subr.bf16.mxu0 0
    %1959 = vmatpush1.bf16.msra.mxu0 %v1956
    %1960 = vmatprep.subr.bf16.mxu0 0
    %1961 = vmatpush1.bf16.msra.mxu0 0
    %1962 = vmatprep.subr.bf16.mxu0 0
    %1963 = vmatpush1.bf16.msra.mxu0 0
    %1964 = vmatprep.subr.bf16.mxu0 0
    %1965 = vmatpush1.bf16.msra.mxu0 0
    %1966 = vmatprep.subr.bf16.mxu0 0
    %1967 = vmatpush1.bf16.msra.mxu0 0
    %1968 = vmatprep.subr.bf16.mxu0 0
    %1969 = vmatpush1.bf16.msra.mxu0 0
    %1970 = vmatprep.subr.bf16.mxu0 0
    %1971 = vmatpush1.bf16.msra.mxu0 0
    %1972 = vmatprep.subr.bf16.mxu0 0
    %1973 = vmatpush1.bf16.msra.mxu0 0
    %1974 = vmatprep.subr.bf16.mxu0 0
    %1975 = vmatpush1.bf16.msra.mxu0 0
    %1976 = vmatprep.subr.bf16.mxu0 0
    %1977 = vmatpush1.bf16.msra.mxu0 0
    %1978 = vmatprep.subr.bf16.mxu0 0
    %1979 = vmatpush1.bf16.msra.mxu0 0
    %1980 = vmatprep.subr.bf16.mxu0 0
    %1981 = vmatpush1.bf16.msra.mxu0 0
    %1982 = vmatprep.subr.bf16.mxu0 0
    %1983 = vmatpush1.bf16.msra.mxu0 0
    %1984 = vmatprep.subr.bf16.mxu0 0
    %1985 = vmatpush1.bf16.msra.mxu0 0
    %1986 = vmatprep.subr.bf16.mxu0 0
    %1987 = vmatpush1.bf16.msra.mxu0 0
    %1988 = vmatprep.subr.bf16.mxu0 0
    %1989 = vmatpush1.bf16.msra.mxu0 0
    %1990 = vmatprep.mubr.bf16.mxu0 0
    %1991 = vmatmul.mubr.bf16.gmra.mrb[0].mxu0 %v1953
    %v1992 = vpop.f32.mrb[0].mxu0
    %v1993 = vadd.f32 0.0, %v1992
    %v1994 = vpop.f32.mrb[0].mxu0
    %v1995 = vpop.f32.mrb[0].mxu0
    %v1996 = vpop.f32.mrb[0].mxu0
    %1997 = vdwg.mxu0
    %1999 = vrot.lane.b32.xlu0 %v1993, 16
    %v2000 = vpop.permute.xlu0 %1999
    %2002 = vst.msk [vmem:[#allocation2] sm:$0xff] %vm677, %v2000
    %2003 = vrot.lane.b32.xlu0 %v1654, 104
    %v2004 = vpop.permute.xlu0 %2003
    %2005 = vrot.lane.b32.xlu0 %v1655, 40
    %v2006 = vpop.permute.xlu0 %2005
    %v2008 = vsel %vm332, %v2004, 0
    %v2011 = vsel %vm332, %v2006, 0
    %2013 = vmatprep.subr.bf16.mxu0 0
    %2014 = vmatpush1.bf16.xpose.msra.mxu0 %v2011
    %2015 = vmatprep.subr.bf16.mxu0 0
    %2016 = vmatpush1.bf16.xpose.msra.mxu0 0
    %2017 = vmatprep.subr.bf16.mxu0 0
    %2018 = vmatpush1.bf16.xpose.msra.mxu0 0
    %2019 = vmatprep.subr.bf16.mxu0 0
    %2020 = vmatpush1.bf16.xpose.msra.mxu0 0
    %2021 = vmatprep.subr.bf16.mxu0 0
    %2022 = vmatpush1.bf16.xpose.msra.mxu0 0
    %2023 = vmatprep.subr.bf16.mxu0 0
    %2024 = vmatpush1.bf16.xpose.msra.mxu0 0
    %2025 = vmatprep.subr.bf16.mxu0 0
    %2026 = vmatpush1.bf16.xpose.msra.mxu0 0
    %2027 = vmatprep.subr.bf16.mxu0 0
    %2028 = vmatpush1.bf16.xpose.msra.mxu0 0
    %2029 = vmatprep.subr.bf16.mxu0 0
    %2030 = vmatpush1.bf16.xpose.msra.mxu0 0
    %2031 = vmatprep.subr.bf16.mxu0 0
    %2032 = vmatpush1.bf16.xpose.msra.mxu0 0
    %2033 = vmatprep.subr.bf16.mxu0 0
    %2034 = vmatpush1.bf16.xpose.msra.mxu0 0
    %2035 = vmatprep.subr.bf16.mxu0 0
    %2036 = vmatpush1.bf16.xpose.msra.mxu0 0
    %2037 = vmatprep.subr.bf16.mxu0 0
    %2038 = vmatpush1.bf16.xpose.msra.mxu0 0
    %2039 = vmatprep.subr.bf16.mxu0 0
    %2040 = vmatpush1.bf16.xpose.msra.mxu0 0
    %2041 = vmatprep.subr.bf16.mxu0 0
    %2042 = vmatpush1.bf16.xpose.msra.mxu0 0
    %2043 = vmatprep.subr.bf16.mxu0 0
    %2044 = vmatpush1.bf16.xpose.msra.mxu0 0
    %2045 = vmatprep.mubr.bf16.mxu0 0
    %2046 = vmatmul.mubr.bf16.gmra.mrb[0].mxu0 %v2008
    %v2047 = vpop.f32.mrb[0].mxu0
    %v2048 = vadd.f32 0.0, %v2047
    %v2049 = vpop.f32.mrb[0].mxu0
    %v2050 = vpop.f32.mrb[0].mxu0
    %v2051 = vpop.f32.mrb[0].mxu0
    %2052 = vdwg.mxu0
    %v2053 = vmul.f32 %v2048, 0.35355338
    %v2054 = vadd.f32 %v2053, %v325
    %v2055 = vsel %vm332, %v2054, -inf
    %2056 = vmax.xlane.f32.xlu0 %v2055
    %v2057 = vpop.xlane.xlu0 %2056
    %v2058 = vsub.f32 %v2054, %v2057
    %v2059 = vmul.f32 %v2058, 1.442695
    %v2060 = vpow.pop %v2059
    %v2061 = vsel %vm332, %v2060, 0.0
    %2062 = vadd.xlane.f32.xlu0 %v2061
    %v2063 = vpop.xlane.xlu0 %2062
    %v2064 = vrcp.pop %v2063
    %v2065 = vmul.f32 %v2060, %v2064
    %v2066 = vpack.c.bf16 %v2065, %v2065
    %2067 = vrot.lane.b32.xlu0 %v1656, 104
    %v2068 = vpop.permute.xlu0 %2067
    %v2070 = vsel %vm332, %v2066, 0
    %v2073 = vsel %vm396, %v2068, 0
    %2075 = vmatprep.subr.bf16.mxu0 0
    %2076 = vmatpush1.bf16.msra.mxu0 %v2073
    %2077 = vmatprep.subr.bf16.mxu0 0
    %2078 = vmatpush1.bf16.msra.mxu0 0
    %2079 = vmatprep.subr.bf16.mxu0 0
    %2080 = vmatpush1.bf16.msra.mxu0 0
    %2081 = vmatprep.subr.bf16.mxu0 0
    %2082 = vmatpush1.bf16.msra.mxu0 0
    %2083 = vmatprep.subr.bf16.mxu0 0
    %2084 = vmatpush1.bf16.msra.mxu0 0
    %2085 = vmatprep.subr.bf16.mxu0 0
    %2086 = vmatpush1.bf16.msra.mxu0 0
    %2087 = vmatprep.subr.bf16.mxu0 0
    %2088 = vmatpush1.bf16.msra.mxu0 0
    %2089 = vmatprep.subr.bf16.mxu0 0
    %2090 = vmatpush1.bf16.msra.mxu0 0
    %2091 = vmatprep.subr.bf16.mxu0 0
    %2092 = vmatpush1.bf16.msra.mxu0 0
    %2093 = vmatprep.subr.bf16.mxu0 0
    %2094 = vmatpush1.bf16.msra.mxu0 0
    %2095 = vmatprep.subr.bf16.mxu0 0
    %2096 = vmatpush1.bf16.msra.mxu0 0
    %2097 = vmatprep.subr.bf16.mxu0 0
    %2098 = vmatpush1.bf16.msra.mxu0 0
    %2099 = vmatprep.subr.bf16.mxu0 0
    %2100 = vmatpush1.bf16.msra.mxu0 0
    %2101 = vmatprep.subr.bf16.mxu0 0
    %2102 = vmatpush1.bf16.msra.mxu0 0
    %2103 = vmatprep.subr.bf16.mxu0 0
    %2104 = vmatpush1.bf16.msra.mxu0 0
    %2105 = vmatprep.subr.bf16.mxu0 0
    %2106 = vmatpush1.bf16.msra.mxu0 0
    %2107 = vmatprep.mubr.bf16.mxu0 0
    %2108 = vmatmul.mubr.bf16.gmra.mrb[0].mxu0 %v2070
    %v2109 = vpop.f32.mrb[0].mxu0
    %v2110 = vadd.f32 0.0, %v2109
    %v2111 = vpop.f32.mrb[0].mxu0
    %v2112 = vpop.f32.mrb[0].mxu0
    %v2113 = vpop.f32.mrb[0].mxu0
    %2114 = vdwg.mxu0
    %2116 = vrot.lane.b32.xlu0 %v2110, 24
    %v2117 = vpop.permute.xlu0 %2116
    %2119 = vst.msk [vmem:[#allocation2] sm:$0xff] %vm795, %v2117
    %v2120 = vpack.c.bf16 %v1639, %v1639
    %v2121 = vpack.c.bf16 %v1653, %v1653
    %v2122 = vpack.c.bf16 %v1624, %v1624
    %2124 = vrot.lane.b32.xlu0 %v2121, 64
    %v2125 = vpop.permute.xlu0 %2124
    %v2127 = vsel %vm332, %v2120, 0
    %v2130 = vsel %vm332, %v2125, 0
    %2132 = vmatprep.subr.bf16.mxu0 0
    %2133 = vmatpush1.bf16.xpose.msra.mxu0 %v2130
    %2134 = vmatprep.subr.bf16.mxu0 0
    %2135 = vmatpush1.bf16.xpose.msra.mxu0 0
    %2136 = vmatprep.subr.bf16.mxu0 0
    %2137 = vmatpush1.bf16.xpose.msra.mxu0 0
    %2138 = vmatprep.subr.bf16.mxu0 0
    %2139 = vmatpush1.bf16.xpose.msra.mxu0 0
    %2140 = vmatprep.subr.bf16.mxu0 0
    %2141 = vmatpush1.bf16.xpose.msra.mxu0 0
    %2142 = vmatprep.subr.bf16.mxu0 0
    %2143 = vmatpush1.bf16.xpose.msra.mxu0 0
    %2144 = vmatprep.subr.bf16.mxu0 0
    %2145 = vmatpush1.bf16.xpose.msra.mxu0 0
    %2146 = vmatprep.subr.bf16.mxu0 0
    %2147 = vmatpush1.bf16.xpose.msra.mxu0 0
    %2148 = vmatprep.subr.bf16.mxu0 0
    %2149 = vmatpush1.bf16.xpose.msra.mxu0 0
    %2150 = vmatprep.subr.bf16.mxu0 0
    %2151 = vmatpush1.bf16.xpose.msra.mxu0 0
    %2152 = vmatprep.subr.bf16.mxu0 0
    %2153 = vmatpush1.bf16.xpose.msra.mxu0 0
    %2154 = vmatprep.subr.bf16.mxu0 0
    %2155 = vmatpush1.bf16.xpose.msra.mxu0 0
    %2156 = vmatprep.subr.bf16.mxu0 0
    %2157 = vmatpush1.bf16.xpose.msra.mxu0 0
    %2158 = vmatprep.subr.bf16.mxu0 0
    %2159 = vmatpush1.bf16.xpose.msra.mxu0 0
    %2160 = vmatprep.subr.bf16.mxu0 0
    %2161 = vmatpush1.bf16.xpose.msra.mxu0 0
    %2162 = vmatprep.subr.bf16.mxu0 0
    %2163 = vmatpush1.bf16.xpose.msra.mxu0 0
    %2164 = vmatprep.mubr.bf16.mxu0 0
    %2165 = vmatmul.mubr.bf16.gmra.mrb[0].mxu0 %v2127
    %v2166 = vpop.f32.mrb[0].mxu0
    %v2167 = vadd.f32 0.0, %v2166
    %v2168 = vpop.f32.mrb[0].mxu0
    %v2169 = vpop.f32.mrb[0].mxu0
    %v2170 = vpop.f32.mrb[0].mxu0
    %2171 = vdwg.mxu0
    %v2172 = vmul.f32 %v2167, 0.35355338
    %v2173 = vadd.f32 %v2172, %v803
    %v2174 = vsel %vm332, %v2173, -inf
    %2175 = vmax.xlane.f32.xlu0 %v2174
    %v2176 = vpop.xlane.xlu0 %2175
    %v2177 = vsub.f32 %v2173, %v2176
    %v2178 = vmul.f32 %v2177, 1.442695
    %v2179 = vpow.pop %v2178
    %v2180 = vsel %vm332, %v2179, 0.0
    %2181 = vadd.xlane.f32.xlu0 %v2180
    %v2182 = vpop.xlane.xlu0 %2181
    %v2183 = vrcp.pop %v2182
    %v2184 = vmul.f32 %v2179, %v2183
    %v2185 = vpack.c.bf16 %v2184, %v2184
    %v2187 = vsel %vm332, %v2185, 0
    %v2190 = vsel %vm396, %v2122, 0
    %2192 = vmatprep.subr.bf16.mxu0 0
    %2193 = vmatpush1.bf16.msra.mxu0 %v2190
    %2194 = vmatprep.subr.bf16.mxu0 0
    %2195 = vmatpush1.bf16.msra.mxu0 0
    %2196 = vmatprep.subr.bf16.mxu0 0
    %2197 = vmatpush1.bf16.msra.mxu0 0
    %2198 = vmatprep.subr.bf16.mxu0 0
    %2199 = vmatpush1.bf16.msra.mxu0 0
    %2200 = vmatprep.subr.bf16.mxu0 0
    %2201 = vmatpush1.bf16.msra.mxu0 0
    %2202 = vmatprep.subr.bf16.mxu0 0
    %2203 = vmatpush1.bf16.msra.mxu0 0
    %2204 = vmatprep.subr.bf16.mxu0 0
    %2205 = vmatpush1.bf16.msra.mxu0 0
    %2206 = vmatprep.subr.bf16.mxu0 0
    %2207 = vmatpush1.bf16.msra.mxu0 0
    %2208 = vmatprep.subr.bf16.mxu0 0
    %2209 = vmatpush1.bf16.msra.mxu0 0
    %2210 = vmatprep.subr.bf16.mxu0 0
    %2211 = vmatpush1.bf16.msra.mxu0 0
    %2212 = vmatprep.subr.bf16.mxu0 0
    %2213 = vmatpush1.bf16.msra.mxu0 0
    %2214 = vmatprep.subr.bf16.mxu0 0
    %2215 = vmatpush1.bf16.msra.mxu0 0
    %2216 = vmatprep.subr.bf16.mxu0 0
    %2217 = vmatpush1.bf16.msra.mxu0 0
    %2218 = vmatprep.subr.bf16.mxu0 0
    %2219 = vmatpush1.bf16.msra.mxu0 0
    %2220 = vmatprep.subr.bf16.mxu0 0
    %2221 = vmatpush1.bf16.msra.mxu0 0
    %2222 = vmatprep.subr.bf16.mxu0 0
    %2223 = vmatpush1.bf16.msra.mxu0 0
    %2224 = vmatprep.mubr.bf16.mxu0 0
    %2225 = vmatmul.mubr.bf16.gmra.mrb[0].mxu0 %v2187
    %v2226 = vpop.f32.mrb[0].mxu0
    %v2227 = vadd.f32 0.0, %v2226
    %v2228 = vpop.f32.mrb[0].mxu0
    %v2229 = vpop.f32.mrb[0].mxu0
    %v2230 = vpop.f32.mrb[0].mxu0
    %2231 = vdwg.mxu0
    %2232 = vst.msk [vmem:[#allocation2 + $0x8] sm:$0xff] %vm332, %v2227
    %2234 = vrot.lane.b32.xlu0 %v2120, 120
    %v2235 = vpop.permute.xlu0 %2234
    %2236 = vrot.lane.b32.xlu0 %v2121, 56
    %v2237 = vpop.permute.xlu0 %2236
    %v2239 = vsel %vm332, %v2235, 0
    %v2242 = vsel %vm332, %v2237, 0
    %2244 = vmatprep.subr.bf16.mxu0 0
    %2245 = vmatpush1.bf16.xpose.msra.mxu0 %v2242
    %2246 = vmatprep.subr.bf16.mxu0 0
    %2247 = vmatpush1.bf16.xpose.msra.mxu0 0
    %2248 = vmatprep.subr.bf16.mxu0 0
    %2249 = vmatpush1.bf16.xpose.msra.mxu0 0
    %2250 = vmatprep.subr.bf16.mxu0 0
    %2251 = vmatpush1.bf16.xpose.msra.mxu0 0
    %2252 = vmatprep.subr.bf16.mxu0 0
    %2253 = vmatpush1.bf16.xpose.msra.mxu0 0
    %2254 = vmatprep.subr.bf16.mxu0 0
    %2255 = vmatpush1.bf16.xpose.msra.mxu0 0
    %2256 = vmatprep.subr.bf16.mxu0 0
    %2257 = vmatpush1.bf16.xpose.msra.mxu0 0
    %2258 = vmatprep.subr.bf16.mxu0 0
    %2259 = vmatpush1.bf16.xpose.msra.mxu0 0
    %2260 = vmatprep.subr.bf16.mxu0 0
    %2261 = vmatpush1.bf16.xpose.msra.mxu0 0
    %2262 = vmatprep.subr.bf16.mxu0 0
    %2263 = vmatpush1.bf16.xpose.msra.mxu0 0
    %2264 = vmatprep.subr.bf16.mxu0 0
    %2265 = vmatpush1.bf16.xpose.msra.mxu0 0
    %2266 = vmatprep.subr.bf16.mxu0 0
    %2267 = vmatpush1.bf16.xpose.msra.mxu0 0
    %2268 = vmatprep.subr.bf16.mxu0 0
    %2269 = vmatpush1.bf16.xpose.msra.mxu0 0
    %2270 = vmatprep.subr.bf16.mxu0 0
    %2271 = vmatpush1.bf16.xpose.msra.mxu0 0
    %2272 = vmatprep.subr.bf16.mxu0 0
    %2273 = vmatpush1.bf16.xpose.msra.mxu0 0
    %2274 = vmatprep.subr.bf16.mxu0 0
    %2275 = vmatpush1.bf16.xpose.msra.mxu0 0
    %2276 = vmatprep.mubr.bf16.mxu0 0
    %2277 = vmatmul.mubr.bf16.gmra.mrb[0].mxu0 %v2239
    %v2278 = vpop.f32.mrb[0].mxu0
    %v2279 = vadd.f32 0.0, %v2278
    %v2280 = vpop.f32.mrb[0].mxu0
    %v2281 = vpop.f32.mrb[0].mxu0
    %v2282 = vpop.f32.mrb[0].mxu0
    %2283 = vdwg.mxu0
    %v2284 = vmul.f32 %v2279, 0.35355338
    %v2285 = vadd.f32 %v2284, %v803
    %v2286 = vsel %vm332, %v2285, -inf
    %2287 = vmax.xlane.f32.xlu0 %v2286
    %v2288 = vpop.xlane.xlu0 %2287
    %v2289 = vsub.f32 %v2285, %v2288
    %v2290 = vmul.f32 %v2289, 1.442695
    %v2291 = vpow.pop %v2290
    %v2292 = vsel %vm332, %v2291, 0.0
    %2293 = vadd.xlane.f32.xlu0 %v2292
    %v2294 = vpop.xlane.xlu0 %2293
    %v2295 = vrcp.pop %v2294
    %v2296 = vmul.f32 %v2291, %v2295
    %v2297 = vpack.c.bf16 %v2296, %v2296
    %2299 = vrot.lane.b32.xlu0 %v2122, 120
    %v2300 = vpop.permute.xlu0 %2299
    %v2302 = vsel %vm332, %v2297, 0
    %v2305 = vsel %vm396, %v2300, 0
    %2307 = vmatprep.subr.bf16.mxu0 0
    %2308 = vmatpush1.bf16.msra.mxu0 %v2305
    %2309 = vmatprep.subr.bf16.mxu0 0
    %2310 = vmatpush1.bf16.msra.mxu0 0
    %2311 = vmatprep.subr.bf16.mxu0 0
    %2312 = vmatpush1.bf16.msra.mxu0 0
    %2313 = vmatprep.subr.bf16.mxu0 0
    %2314 = vmatpush1.bf16.msra.mxu0 0
    %2315 = vmatprep.subr.bf16.mxu0 0
    %2316 = vmatpush1.bf16.msra.mxu0 0
    %2317 = vmatprep.subr.bf16.mxu0 0
    %2318 = vmatpush1.bf16.msra.mxu0 0
    %2319 = vmatprep.subr.bf16.mxu0 0
    %2320 = vmatpush1.bf16.msra.mxu0 0
    %2321 = vmatprep.subr.bf16.mxu0 0
    %2322 = vmatpush1.bf16.msra.mxu0 0
    %2323 = vmatprep.subr.bf16.mxu0 0
    %2324 = vmatpush1.bf16.msra.mxu0 0
    %2325 = vmatprep.subr.bf16.mxu0 0
    %2326 = vmatpush1.bf16.msra.mxu0 0
    %2327 = vmatprep.subr.bf16.mxu0 0
    %2328 = vmatpush1.bf16.msra.mxu0 0
    %2329 = vmatprep.subr.bf16.mxu0 0
    %2330 = vmatpush1.bf16.msra.mxu0 0
    %2331 = vmatprep.subr.bf16.mxu0 0
    %2332 = vmatpush1.bf16.msra.mxu0 0
    %2333 = vmatprep.subr.bf16.mxu0 0
    %2334 = vmatpush1.bf16.msra.mxu0 0
    %2335 = vmatprep.subr.bf16.mxu0 0
    %2336 = vmatpush1.bf16.msra.mxu0 0
    %2337 = vmatprep.subr.bf16.mxu0 0
    %2338 = vmatpush1.bf16.msra.mxu0 0
    %2339 = vmatprep.mubr.bf16.mxu0 0
    %2340 = vmatmul.mubr.bf16.gmra.mrb[0].mxu0 %v2302
    %v2341 = vpop.f32.mrb[0].mxu0
    %v2342 = vadd.f32 0.0, %v2341
    %v2343 = vpop.f32.mrb[0].mxu0
    %v2344 = vpop.f32.mrb[0].mxu0
    %v2345 = vpop.f32.mrb[0].mxu0
    %2346 = vdwg.mxu0
    %2348 = vrot.lane.b32.xlu0 %v2342, 8
    %v2349 = vpop.permute.xlu0 %2348
    %2351 = vst.msk [vmem:[#allocation2 + $0x8] sm:$0xff] %vm559, %v2349
    %2352 = vrot.lane.b32.xlu0 %v2120, 112
    %v2353 = vpop.permute.xlu0 %2352
    %2354 = vrot.lane.b32.xlu0 %v2121, 48
    %v2355 = vpop.permute.xlu0 %2354
    %v2357 = vsel %vm332, %v2353, 0
    %v2360 = vsel %vm332, %v2355, 0
    %2362 = vmatprep.subr.bf16.mxu0 0
    %2363 = vmatpush1.bf16.xpose.msra.mxu0 %v2360
    %2364 = vmatprep.subr.bf16.mxu0 0
    %2365 = vmatpush1.bf16.xpose.msra.mxu0 0
    %2366 = vmatprep.subr.bf16.mxu0 0
    %2367 = vmatpush1.bf16.xpose.msra.mxu0 0
    %2368 = vmatprep.subr.bf16.mxu0 0
    %2369 = vmatpush1.bf16.xpose.msra.mxu0 0
    %2370 = vmatprep.subr.bf16.mxu0 0
    %2371 = vmatpush1.bf16.xpose.msra.mxu0 0
    %2372 = vmatprep.subr.bf16.mxu0 0
    %2373 = vmatpush1.bf16.xpose.msra.mxu0 0
    %2374 = vmatprep.subr.bf16.mxu0 0
    %2375 = vmatpush1.bf16.xpose.msra.mxu0 0
    %2376 = vmatprep.subr.bf16.mxu0 0
    %2377 = vmatpush1.bf16.xpose.msra.mxu0 0
    %2378 = vmatprep.subr.bf16.mxu0 0
    %2379 = vmatpush1.bf16.xpose.msra.mxu0 0
    %2380 = vmatprep.subr.bf16.mxu0 0
    %2381 = vmatpush1.bf16.xpose.msra.mxu0 0
    %2382 = vmatprep.subr.bf16.mxu0 0
    %2383 = vmatpush1.bf16.xpose.msra.mxu0 0
    %2384 = vmatprep.subr.bf16.mxu0 0
    %2385 = vmatpush1.bf16.xpose.msra.mxu0 0
    %2386 = vmatprep.subr.bf16.mxu0 0
    %2387 = vmatpush1.bf16.xpose.msra.mxu0 0
    %2388 = vmatprep.subr.bf16.mxu0 0
    %2389 = vmatpush1.bf16.xpose.msra.mxu0 0
    %2390 = vmatprep.subr.bf16.mxu0 0
    %2391 = vmatpush1.bf16.xpose.msra.mxu0 0
    %2392 = vmatprep.subr.bf16.mxu0 0
    %2393 = vmatpush1.bf16.xpose.msra.mxu0 0
    %2394 = vmatprep.mubr.bf16.mxu0 0
    %2395 = vmatmul.mubr.bf16.gmra.mrb[0].mxu0 %v2357
    %v2396 = vpop.f32.mrb[0].mxu0
    %v2397 = vadd.f32 0.0, %v2396
    %v2398 = vpop.f32.mrb[0].mxu0
    %v2399 = vpop.f32.mrb[0].mxu0
    %v2400 = vpop.f32.mrb[0].mxu0
    %2401 = vdwg.mxu0
    %v2402 = vmul.f32 %v2397, 0.35355338
    %v2403 = vadd.f32 %v2402, %v803
    %v2404 = vsel %vm332, %v2403, -inf
    %2405 = vmax.xlane.f32.xlu0 %v2404
    %v2406 = vpop.xlane.xlu0 %2405
    %v2407 = vsub.f32 %v2403, %v2406
    %v2408 = vmul.f32 %v2407, 1.442695
    %v2409 = vpow.pop %v2408
    %v2410 = vsel %vm332, %v2409, 0.0
    %2411 = vadd.xlane.f32.xlu0 %v2410
    %v2412 = vpop.xlane.xlu0 %2411
    %v2413 = vrcp.pop %v2412
    %v2414 = vmul.f32 %v2409, %v2413
    %v2415 = vpack.c.bf16 %v2414, %v2414
    %2416 = vrot.lane.b32.xlu0 %v2122, 112
    %v2417 = vpop.permute.xlu0 %2416
    %v2419 = vsel %vm332, %v2415, 0
    %v2422 = vsel %vm396, %v2417, 0
    %2424 = vmatprep.subr.bf16.mxu0 0
    %2425 = vmatpush1.bf16.msra.mxu0 %v2422
    %2426 = vmatprep.subr.bf16.mxu0 0
    %2427 = vmatpush1.bf16.msra.mxu0 0
    %2428 = vmatprep.subr.bf16.mxu0 0
    %2429 = vmatpush1.bf16.msra.mxu0 0
    %2430 = vmatprep.subr.bf16.mxu0 0
    %2431 = vmatpush1.bf16.msra.mxu0 0
    %2432 = vmatprep.subr.bf16.mxu0 0
    %2433 = vmatpush1.bf16.msra.mxu0 0
    %2434 = vmatprep.subr.bf16.mxu0 0
    %2435 = vmatpush1.bf16.msra.mxu0 0
    %2436 = vmatprep.subr.bf16.mxu0 0
    %2437 = vmatpush1.bf16.msra.mxu0 0
    %2438 = vmatprep.subr.bf16.mxu0 0
    %2439 = vmatpush1.bf16.msra.mxu0 0
    %2440 = vmatprep.subr.bf16.mxu0 0
    %2441 = vmatpush1.bf16.msra.mxu0 0
    %2442 = vmatprep.subr.bf16.mxu0 0
    %2443 = vmatpush1.bf16.msra.mxu0 0
    %2444 = vmatprep.subr.bf16.mxu0 0
    %2445 = vmatpush1.bf16.msra.mxu0 0
    %2446 = vmatprep.subr.bf16.mxu0 0
    %2447 = vmatpush1.bf16.msra.mxu0 0
    %2448 = vmatprep.subr.bf16.mxu0 0
    %2449 = vmatpush1.bf16.msra.mxu0 0
    %2450 = vmatprep.subr.bf16.mxu0 0
    %2451 = vmatpush1.bf16.msra.mxu0 0
    %2452 = vmatprep.subr.bf16.mxu0 0
    %2453 = vmatpush1.bf16.msra.mxu0 0
    %2454 = vmatprep.subr.bf16.mxu0 0
    %2455 = vmatpush1.bf16.msra.mxu0 0
    %2456 = vmatprep.mubr.bf16.mxu0 0
    %2457 = vmatmul.mubr.bf16.gmra.mrb[0].mxu0 %v2419
    %v2458 = vpop.f32.mrb[0].mxu0
    %v2459 = vadd.f32 0.0, %v2458
    %v2460 = vpop.f32.mrb[0].mxu0
    %v2461 = vpop.f32.mrb[0].mxu0
    %v2462 = vpop.f32.mrb[0].mxu0
    %2463 = vdwg.mxu0
    %2465 = vrot.lane.b32.xlu0 %v2459, 16
    %v2466 = vpop.permute.xlu0 %2465
    %2468 = vst.msk [vmem:[#allocation2 + $0x8] sm:$0xff] %vm677, %v2466
    %2469 = vrot.lane.b32.xlu0 %v2120, 104
    %v2470 = vpop.permute.xlu0 %2469
    %2471 = vrot.lane.b32.xlu0 %v2121, 40
    %v2472 = vpop.permute.xlu0 %2471
    %v2474 = vsel %vm332, %v2470, 0
    %v2477 = vsel %vm332, %v2472, 0
    %2479 = vmatprep.subr.bf16.mxu0 0
    %2480 = vmatpush1.bf16.xpose.msra.mxu0 %v2477
    %2481 = vmatprep.subr.bf16.mxu0 0
    %2482 = vmatpush1.bf16.xpose.msra.mxu0 0
    %2483 = vmatprep.subr.bf16.mxu0 0
    %2484 = vmatpush1.bf16.xpose.msra.mxu0 0
    %2485 = vmatprep.subr.bf16.mxu0 0
    %2486 = vmatpush1.bf16.xpose.msra.mxu0 0
    %2487 = vmatprep.subr.bf16.mxu0 0
    %2488 = vmatpush1.bf16.xpose.msra.mxu0 0
    %2489 = vmatprep.subr.bf16.mxu0 0
    %2490 = vmatpush1.bf16.xpose.msra.mxu0 0
    %2491 = vmatprep.subr.bf16.mxu0 0
    %2492 = vmatpush1.bf16.xpose.msra.mxu0 0
    %2493 = vmatprep.subr.bf16.mxu0 0
    %2494 = vmatpush1.bf16.xpose.msra.mxu0 0
    %2495 = vmatprep.subr.bf16.mxu0 0
    %2496 = vmatpush1.bf16.xpose.msra.mxu0 0
    %2497 = vmatprep.subr.bf16.mxu0 0
    %2498 = vmatpush1.bf16.xpose.msra.mxu0 0
    %2499 = vmatprep.subr.bf16.mxu0 0
    %2500 = vmatpush1.bf16.xpose.msra.mxu0 0
    %2501 = vmatprep.subr.bf16.mxu0 0
    %2502 = vmatpush1.bf16.xpose.msra.mxu0 0
    %2503 = vmatprep.subr.bf16.mxu0 0
    %2504 = vmatpush1.bf16.xpose.msra.mxu0 0
    %2505 = vmatprep.subr.bf16.mxu0 0
    %2506 = vmatpush1.bf16.xpose.msra.mxu0 0
    %2507 = vmatprep.subr.bf16.mxu0 0
    %2508 = vmatpush1.bf16.xpose.msra.mxu0 0
    %2509 = vmatprep.subr.bf16.mxu0 0
    %2510 = vmatpush1.bf16.xpose.msra.mxu0 0
    %2511 = vmatprep.mubr.bf16.mxu0 0
    %2512 = vmatmul.mubr.bf16.gmra.mrb[0].mxu0 %v2474
    %v2513 = vpop.f32.mrb[0].mxu0
    %v2514 = vadd.f32 0.0, %v2513
    %v2515 = vpop.f32.mrb[0].mxu0
    %v2516 = vpop.f32.mrb[0].mxu0
    %v2517 = vpop.f32.mrb[0].mxu0
    %2518 = vdwg.mxu0
    %v2519 = vmul.f32 %v2514, 0.35355338
    %v2520 = vadd.f32 %v2519, %v803
    %v2521 = vsel %vm332, %v2520, -inf
    %2522 = vmax.xlane.f32.xlu0 %v2521
    %v2523 = vpop.xlane.xlu0 %2522
    %v2524 = vsub.f32 %v2520, %v2523
    %v2525 = vmul.f32 %v2524, 1.442695
    %v2526 = vpow.pop %v2525
    %v2527 = vsel %vm332, %v2526, 0.0
    %2528 = vadd.xlane.f32.xlu0 %v2527
    %v2529 = vpop.xlane.xlu0 %2528
    %v2530 = vrcp.pop %v2529
    %v2531 = vmul.f32 %v2526, %v2530
    %v2532 = vpack.c.bf16 %v2531, %v2531
    %2533 = vrot.lane.b32.xlu0 %v2122, 104
    %v2534 = vpop.permute.xlu0 %2533
    %v2536 = vsel %vm332, %v2532, 0
    %v2539 = vsel %vm396, %v2534, 0
    %2541 = vmatprep.subr.bf16.mxu0 0
    %2542 = vmatpush1.bf16.msra.mxu0 %v2539
    %2543 = vmatprep.subr.bf16.mxu0 0
    %2544 = vmatpush1.bf16.msra.mxu0 0
    %2545 = vmatprep.subr.bf16.mxu0 0
    %2546 = vmatpush1.bf16.msra.mxu0 0
    %2547 = vmatprep.subr.bf16.mxu0 0
    %2548 = vmatpush1.bf16.msra.mxu0 0
    %2549 = vmatprep.subr.bf16.mxu0 0
    %2550 = vmatpush1.bf16.msra.mxu0 0
    %2551 = vmatprep.subr.bf16.mxu0 0
    %2552 = vmatpush1.bf16.msra.mxu0 0
    %2553 = vmatprep.subr.bf16.mxu0 0
    %2554 = vmatpush1.bf16.msra.mxu0 0
    %2555 = vmatprep.subr.bf16.mxu0 0
    %2556 = vmatpush1.bf16.msra.mxu0 0
    %2557 = vmatprep.subr.bf16.mxu0 0
    %2558 = vmatpush1.bf16.msra.mxu0 0
    %2559 = vmatprep.subr.bf16.mxu0 0
    %2560 = vmatpush1.bf16.msra.mxu0 0
    %2561 = vmatprep.subr.bf16.mxu0 0
    %2562 = vmatpush1.bf16.msra.mxu0 0
    %2563 = vmatprep.subr.bf16.mxu0 0
    %2564 = vmatpush1.bf16.msra.mxu0 0
    %2565 = vmatprep.subr.bf16.mxu0 0
    %2566 = vmatpush1.bf16.msra.mxu0 0
    %2567 = vmatprep.subr.bf16.mxu0 0
    %2568 = vmatpush1.bf16.msra.mxu0 0
    %2569 = vmatprep.subr.bf16.mxu0 0
    %2570 = vmatpush1.bf16.msra.mxu0 0
    %2571 = vmatprep.subr.bf16.mxu0 0
    %2572 = vmatpush1.bf16.msra.mxu0 0
    %2573 = vmatprep.mubr.bf16.mxu0 0
    %2574 = vmatmul.mubr.bf16.gmra.mrb[0].mxu0 %v2536
    %v2575 = vpop.f32.mrb[0].mxu0
    %v2576 = vadd.f32 0.0, %v2575
    %v2577 = vpop.f32.mrb[0].mxu0
    %v2578 = vpop.f32.mrb[0].mxu0
    %v2579 = vpop.f32.mrb[0].mxu0
    %2580 = vdwg.mxu0
    %2582 = vrot.lane.b32.xlu0 %v2576, 24
    %v2583 = vpop.permute.xlu0 %2582
    %2585 = vst.msk [vmem:[#allocation2 + $0x8] sm:$0xff] %vm795, %v2583
    %v2586 = vld [vmem:[#allocation2] sm:$0xff]
    %v2587 = vld [vmem:[#allocation2 + $0x8] sm:$0xff]
    %v2588 = vpack.c.bf16 %v2587, %v2586
    %s2589 = scalar_lea.vmem %s7, 16
    %v2590 = vld [vmem:[%s2589] sm:$0xf]
    %v2591 = vld [vmem:[%s2589 + $0x4] sm:$0xf]
    %v2592 = vld [vmem:[%s2589 + $0x8] sm:$0xf]
    %v2593 = vld [vmem:[%s2589 + $0xc] sm:$0xf]
    %v2598 = vunpack.c.l.b16 %v2590
    %v2599 = vunpack.c.l.b16 %v2591
    %v2600 = vunpack.c.l.b16 %v2592
    %v2601 = vunpack.c.l.b16 %v2593
    %v2602 = vpack.c.b16 %v2599, %v2598
    %v2603 = vpack.c.b16 %v2601, %v2600
    %v2607 = vsel %vm155, %v2588, 0
    %2609 = vmatprep.subr.bf16.mxu0 0
    %2610 = vmatpush1.bf16.msra.mxu0 %v2602
    %2611 = vmatprep.subr.bf16.mxu0 0
    %2612 = vmatpush1.bf16.msra.mxu0 %v2603
    %2613 = vmatprep.subr.bf16.mxu0 0
    %2614 = vmatpush1.bf16.msra.mxu0 0
    %2615 = vmatprep.subr.bf16.mxu0 0
    %2616 = vmatpush1.bf16.msra.mxu0 0
    %2617 = vmatprep.subr.bf16.mxu0 0
    %2618 = vmatpush1.bf16.msra.mxu0 0
    %2619 = vmatprep.subr.bf16.mxu0 0
    %2620 = vmatpush1.bf16.msra.mxu0 0
    %2621 = vmatprep.subr.bf16.mxu0 0
    %2622 = vmatpush1.bf16.msra.mxu0 0
    %2623 = vmatprep.subr.bf16.mxu0 0
    %2624 = vmatpush1.bf16.msra.mxu0 0
    %2625 = vmatprep.subr.bf16.mxu0 0
    %2626 = vmatpush1.bf16.msra.mxu0 0
    %2627 = vmatprep.subr.bf16.mxu0 0
    %2628 = vmatpush1.bf16.msra.mxu0 0
    %2629 = vmatprep.subr.bf16.mxu0 0
    %2630 = vmatpush1.bf16.msra.mxu0 0
    %2631 = vmatprep.subr.bf16.mxu0 0
    %2632 = vmatpush1.bf16.msra.mxu0 0
    %2633 = vmatprep.subr.bf16.mxu0 0
    %2634 = vmatpush1.bf16.msra.mxu0 0
    %2635 = vmatprep.subr.bf16.mxu0 0
    %2636 = vmatpush1.bf16.msra.mxu0 0
    %2637 = vmatprep.subr.bf16.mxu0 0
    %2638 = vmatpush1.bf16.msra.mxu0 0
    %2639 = vmatprep.subr.bf16.mxu0 0
    %2640 = vmatpush1.bf16.msra.mxu0 0
    %2641 = vmatprep.mubr.bf16.mxu0 0
    %2642 = vmatmul.mubr.bf16.gmra.mrb[0].mxu0 %v2607
    %v2643 = vpop.f32.mrb[0].mxu0
    %v2644 = vadd.f32 0.0, %v2643
    %v2645 = vpop.f32.mrb[0].mxu0
    %v2646 = vpop.f32.mrb[0].mxu0
    %v2647 = vadd.f32 0.0, %v2646
    %v2648 = vpop.f32.mrb[0].mxu0
    %2649 = vdwg.mxu0
    %v2650 = vadd.f32 %v1523, %v2644
    %v2651 = vadd.f32 %v1524, %v2647
    %s2652 = scalar_lea.vmem %s8, 1
    %v2653 = vld [vmem:[%s2652] sm:$0x1]
    %v2654 = vmul.f32 %v2650, %v2650
    %v2655 = vmul.f32 %v2651, %v2651
    %v2656 = vsel %vm155, %v2654, 0.0
    %2657 = vadd.xlane.f32.xlu0 %v2656
    %v2658 = vpop.xlane.xlu0 %2657
    %v2659 = vsel %vm155, %v2655, 0.0
    %2660 = vadd.xlane.f32.xlu0 %v2659
    %v2661 = vpop.xlane.xlu0 %2660
    %v2662 = vmul.f32 %v2658, %v181
    %v2663 = vmul.f32 %v2661, %v181
    %v2664 = vadd.f32 %v2662, 1e-06
    %v2665 = vadd.f32 %v2663, 1e-06
    %v2666 = vrsqrt.pop %v2664
    %v2667 = vrsqrt.pop %v2665
    %v2668 = vmul.f32 %v2650, %v2666
    %v2669 = vmul.f32 %v2651, %v2667
    %v2671 = vlaneseq
    %v2672 = vshrl.u32 %v2671, 7
    %v2673 = vsub.s32 0, %v2672
    %v2674 = vrot.slane %v2653, %v2673
    %v2676 = vmul.f32 %v2668, %v2674
    %v2677 = vmul.f32 %v2669, %v2674
    %v2678 = vpack.c.bf16 %v2677, %v2676
    %s2679 = scalar_lea.vmem %s9, 16
    %v2680 = vld [vmem:[%s2679] sm:$0xf]
    %v2681 = vld [vmem:[%s2679 + $0x4] sm:$0xf]
    %v2682 = vld [vmem:[%s2679 + $0x8] sm:$0xf]
    %v2683 = vld [vmem:[%s2679 + $0xc] sm:$0xf]
    %v2688 = vunpack.c.l.b16 %v2680
    %v2689 = vunpack.c.l.b16 %v2681
    %v2690 = vunpack.c.l.b16 %v2682
    %v2691 = vunpack.c.l.b16 %v2683
    %v2692 = vpack.c.b16 %v2689, %v2688
    %v2693 = vpack.c.b16 %v2691, %v2690
    %v2697 = vsel %vm155, %v2678, 0
    %2699 = vmatprep.subr.bf16.mxu0 0
    %2700 = vmatpush1.bf16.msra.mxu0 %v2692
    %2701 = vmatprep.subr.bf16.mxu0 0
    %2702 = vmatpush1.bf16.msra.mxu0 %v2693
    %2703 = vmatprep.subr.bf16.mxu0 0
    %2704 = vmatpush1.bf16.msra.mxu0 0
    %2705 = vmatprep.subr.bf16.mxu0 0
    %2706 = vmatpush1.bf16.msra.mxu0 0
    %2707 = vmatprep.subr.bf16.mxu0 0
    %2708 = vmatpush1.bf16.msra.mxu0 0
    %2709 = vmatprep.subr.bf16.mxu0 0
    %2710 = vmatpush1.bf16.msra.mxu0 0
    %2711 = vmatprep.subr.bf16.mxu0 0
    %2712 = vmatpush1.bf16.msra.mxu0 0
    %2713 = vmatprep.subr.bf16.mxu0 0
    %2714 = vmatpush1.bf16.msra.mxu0 0
    %2715 = vmatprep.subr.bf16.mxu0 0
    %2716 = vmatpush1.bf16.msra.mxu0 0
    %2717 = vmatprep.subr.bf16.mxu0 0
    %2718 = vmatpush1.bf16.msra.mxu0 0
    %2719 = vmatprep.subr.bf16.mxu0 0
    %2720 = vmatpush1.bf16.msra.mxu0 0
    %2721 = vmatprep.subr.bf16.mxu0 0
    %2722 = vmatpush1.bf16.msra.mxu0 0
    %2723 = vmatprep.subr.bf16.mxu0 0
    %2724 = vmatpush1.bf16.msra.mxu0 0
    %2725 = vmatprep.subr.bf16.mxu0 0
    %2726 = vmatpush1.bf16.msra.mxu0 0
    %2727 = vmatprep.subr.bf16.mxu0 0
    %2728 = vmatpush1.bf16.msra.mxu0 0
    %2729 = vmatprep.subr.bf16.mxu0 0
    %2730 = vmatpush1.bf16.msra.mxu0 0
    %2731 = vmatprep.mubr.bf16.mxu0 0
    %2732 = vmatmul.mubr.bf16.gmra.mrb[0].mxu0 %v2697
    %v2733 = vpop.f32.mrb[0].mxu0
    %v2734 = vadd.f32 0.0, %v2733
    %v2735 = vpop.f32.mrb[0].mxu0
    %v2736 = vpop.f32.mrb[0].mxu0
    %v2737 = vadd.f32 0.0, %v2736
    %v2738 = vpop.f32.mrb[0].mxu0
    %2739 = vdwg.mxu0
    %v2740 = vxor.u32 %v2734, 2147483648
    %v2741 = vxor.u32 %v2737, 2147483648
    %v2742 = vmul.f32 %v2740, 1.442695
    %v2743 = vpow.pop %v2742
    %v2744 = vmul.f32 %v2741, 1.442695
    %v2745 = vpow.pop %v2744
    %v2746 = vadd.f32 %v2743, 1.0
    %v2747 = vadd.f32 %v2745, 1.0
    %v2748 = vrcp.pop %v2746
    %v2749 = vmul.f32 1.0, %v2748
    %v2750 = vrcp.pop %v2747
    %v2751 = vmul.f32 1.0, %v2750
    %v2752 = vmul.f32 %v2734, %v2749
    %v2753 = vmul.f32 %v2737, %v2751
    %2756 = vrot.lane.b32.xlu0 %v2734, 64
    %v2757 = vpop.permute.xlu0 %2756
    %2758 = vrot.lane.b32.xlu0 %v2737, 64
    %v2759 = vpop.permute.xlu0 %2758
    %v2762 = vmul.f32 %v2752, %v2757
    %v2763 = vmul.f32 %v2753, %v2759
    %v2764 = vpack.c.bf16 %v2763, %v2762
    %s2765 = scalar_lea.vmem %s10, 32
    %v2766 = vld [vmem:[%s2765] sm:$0xf]
    %v2767 = vld [vmem:[%s2765 + $0x4] sm:$0xf]
    %v2768 = vld [vmem:[%s2765 + $0x8] sm:$0xf]
    %v2769 = vld [vmem:[%s2765 + $0xc] sm:$0xf]
    %v2770 = vld [vmem:[%s2765 + $0x10] sm:$0xf]
    %v2771 = vld [vmem:[%s2765 + $0x14] sm:$0xf]
    %v2772 = vld [vmem:[%s2765 + $0x18] sm:$0xf]
    %v2773 = vld [vmem:[%s2765 + $0x1c] sm:$0xf]
    %v2782 = vunpack.c.l.b16 %v2766
    %v2783 = vunpack.c.l.b16 %v2767
    %v2784 = vunpack.c.l.b16 %v2768
    %v2785 = vunpack.c.l.b16 %v2769
    %v2786 = vunpack.c.l.b16 %v2770
    %v2787 = vunpack.c.l.b16 %v2771
    %v2788 = vunpack.c.l.b16 %v2772
    %v2789 = vunpack.c.l.b16 %v2773
    %v2790 = vpack.c.b16 %v2783, %v2782
    %v2791 = vpack.c.b16 %v2785, %v2784
    %v2792 = vpack.c.b16 %v2787, %v2786
    %v2793 = vpack.c.b16 %v2789, %v2788
    %v2799 = vsel %vm1478, %v2764, 0
    %2801 = vmatprep.subr.bf16.mxu0 0
    %2802 = vmatpush1.bf16.msra.mxu0 %v2790
    %2803 = vmatprep.subr.bf16.mxu0 0
    %2804 = vmatpush1.bf16.msra.mxu0 %v2791
    %2805 = vmatprep.subr.bf16.mxu0 0
    %2806 = vmatpush1.bf16.msra.mxu0 %v2792
    %2807 = vmatprep.subr.bf16.mxu0 0
    %2808 = vmatpush1.bf16.msra.mxu0 %v2793
    %2809 = vmatprep.subr.bf16.mxu0 0
    %2810 = vmatpush1.bf16.msra.mxu0 0
    %2811 = vmatprep.subr.bf16.mxu0 0
    %2812 = vmatpush1.bf16.msra.mxu0 0
    %2813 = vmatprep.subr.bf16.mxu0 0
    %2814 = vmatpush1.bf16.msra.mxu0 0
    %2815 = vmatprep.subr.bf16.mxu0 0
    %2816 = vmatpush1.bf16.msra.mxu0 0
    %2817 = vmatprep.subr.bf16.mxu0 0
    %2818 = vmatpush1.bf16.msra.mxu0 0
    %2819 = vmatprep.subr.bf16.mxu0 0
    %2820 = vmatpush1.bf16.msra.mxu0 0
    %2821 = vmatprep.subr.bf16.mxu0 0
    %2822 = vmatpush1.bf16.msra.mxu0 0
    %2823 = vmatprep.subr.bf16.mxu0 0
    %2824 = vmatpush1.bf16.msra.mxu0 0
    %2825 = vmatprep.subr.bf16.mxu0 0
    %2826 = vmatpush1.bf16.msra.mxu0 0
    %2827 = vmatprep.subr.bf16.mxu0 0
    %2828 = vmatpush1.bf16.msra.mxu0 0
    %2829 = vmatprep.subr.bf16.mxu0 0
    %2830 = vmatpush1.bf16.msra.mxu0 0
    %2831 = vmatprep.subr.bf16.mxu0 0
    %2832 = vmatpush1.bf16.msra.mxu0 0
    %2833 = vmatprep.mubr.bf16.mxu0 0
    %2834 = vmatmul.mubr.bf16.gmra.mrb[0].mxu0 %v2799
    %v2835 = vpop.f32.mrb[0].mxu0
    %v2836 = vadd.f32 0.0, %v2835
    %v2837 = vpop.f32.mrb[0].mxu0
    %v2838 = vpop.f32.mrb[0].mxu0
    %v2839 = vadd.f32 0.0, %v2838
    %v2840 = vpop.f32.mrb[0].mxu0
    %2841 = vdwg.mxu0
    %v2842 = vadd.f32 %v2650, %v2836
    %v2843 = vadd.f32 %v2651, %v2839
    %v2844 = vld [vmem:[%s11] sm:$0x1]
    %v2845 = vmul.f32 %v2842, %v2842
    %v2846 = vmul.f32 %v2843, %v2843
    %v2847 = vsel %vm155, %v2845, 0.0
    %2848 = vadd.xlane.f32.xlu0 %v2847
    %v2849 = vpop.xlane.xlu0 %2848
    %v2850 = vsel %vm155, %v2846, 0.0
    %2851 = vadd.xlane.f32.xlu0 %v2850
    %v2852 = vpop.xlane.xlu0 %2851
    %v2853 = vmul.f32 %v2849, %v181
    %v2854 = vmul.f32 %v2852, %v181
    %v2855 = vadd.f32 %v2853, 1e-06
    %v2856 = vadd.f32 %v2854, 1e-06
    %v2857 = vrsqrt.pop %v2855
    %v2858 = vrsqrt.pop %v2856
    %v2859 = vmul.f32 %v2842, %v2857
    %v2860 = vmul.f32 %v2843, %v2858
    %v2862 = vlaneseq
    %v2863 = vshrl.u32 %v2862, 7
    %v2864 = vsub.s32 0, %v2863
    %v2865 = vrot.slane %v2844, %v2864
    %v2867 = vmul.f32 %v2859, %v2865
    %v2868 = vmul.f32 %v2860, %v2865
    %s2869 = scalar_lea.vmem %s13, 32
    %2870 = vst.msk [vmem:[%s2869] sm:$0xff] %vm155, %v2867
    %2871 = vst.msk [vmem:[%s2869 + $0x8] sm:$0xff] %vm155, %v2868
    %v2872 = vpack.c.bf16 %v2868, %v2867
    %v2873 = vld [vmem:[%s12] sm:$0xf]
    %v2874 = vld [vmem:[%s12 + $0x4] sm:$0xf]
    %v2875 = vld [vmem:[%s12 + $0x8] sm:$0xf]
    %v2876 = vld [vmem:[%s12 + $0xc] sm:$0xf]
    %v2881 = vunpack.c.l.b16 %v2873
    %v2882 = vunpack.c.l.b16 %v2874
    %v2883 = vunpack.c.l.b16 %v2875
    %v2884 = vunpack.c.l.b16 %v2876
    %v2885 = vpack.c.b16 %v2882, %v2881
    %v2886 = vpack.c.b16 %v2884, %v2883
    %v2890 = vsel %vm155, %v2872, 0
    %2892 = vmatprep.subr.bf16.mxu0 0
    %2893 = vmatpush1.bf16.msra.mxu0 %v2885
    %2894 = vmatprep.subr.bf16.mxu0 0
    %2895 = vmatpush1.bf16.msra.mxu0 %v2886
    %2896 = vmatprep.subr.bf16.mxu0 0
    %2897 = vmatpush1.bf16.msra.mxu0 0
    %2898 = vmatprep.subr.bf16.mxu0 0
    %2899 = vmatpush1.bf16.msra.mxu0 0
    %2900 = vmatprep.subr.bf16.mxu0 0
    %2901 = vmatpush1.bf16.msra.mxu0 0
    %2902 = vmatprep.subr.bf16.mxu0 0
    %2903 = vmatpush1.bf16.msra.mxu0 0
    %2904 = vmatprep.subr.bf16.mxu0 0
    %2905 = vmatpush1.bf16.msra.mxu0 0
    %2906 = vmatprep.subr.bf16.mxu0 0
    %2907 = vmatpush1.bf16.msra.mxu0 0
    %2908 = vmatprep.subr.bf16.mxu0 0
    %2909 = vmatpush1.bf16.msra.mxu0 0
    %2910 = vmatprep.subr.bf16.mxu0 0
    %2911 = vmatpush1.bf16.msra.mxu0 0
    %2912 = vmatprep.subr.bf16.mxu0 0
    %2913 = vmatpush1.bf16.msra.mxu0 0
    %2914 = vmatprep.subr.bf16.mxu0 0
    %2915 = vmatpush1.bf16.msra.mxu0 0
    %2916 = vmatprep.subr.bf16.mxu0 0
    %2917 = vmatpush1.bf16.msra.mxu0 0
    %2918 = vmatprep.subr.bf16.mxu0 0
    %2919 = vmatpush1.bf16.msra.mxu0 0
    %2920 = vmatprep.subr.bf16.mxu0 0
    %2921 = vmatpush1.bf16.msra.mxu0 0
    %2922 = vmatprep.subr.bf16.mxu0 0
    %2923 = vmatpush1.bf16.msra.mxu0 0
    %2924 = vmatprep.mubr.bf16.mxu0 0
    %2925 = vmatmul.mubr.bf16.gmra.mrb[0].mxu0 %v2890
    %v2926 = vpop.f32.mrb[0].mxu0
    %v2927 = vadd.f32 0.0, %v2926
    %v2928 = vpop.f32.mrb[0].mxu0
    %v2929 = vpop.f32.mrb[0].mxu0
    %v2930 = vadd.f32 0.0, %v2929
    %v2931 = vpop.f32.mrb[0].mxu0
    %2932 = vdwg.mxu0
    %2933 = vst [vmem:[#allocation3] sm:$0xff] %v2927
    %2934 = vst [vmem:[#allocation3 + $0x8] sm:$0xff] %v2930
    // Predicated region
    $region54: #{llama_embedding_forward.1} parent=1 // pred_check
      _
    $region55: #{llama_embedding_forward.1} parent=1 // pred_check_branch
      %2936 = sbr.rel (0) target = $region57
    $region56: #{llama_embedding_forward.1} parent=1 // pred_region
      _
    $region57: #{llama_embedding_forward.1} parent=1 // pred_fallthru
      _
    // Predicated region
    $region58: #{llama_embedding_forward.1} parent=1 // pred_check
      _
    $region59: #{llama_embedding_forward.1} parent=1 // pred_check_branch
      %2938 = sbr.rel (0) target = $region61
    $region60: #{llama_embedding_forward.1} parent=1 // pred_region
      %s2940 = ssub.s32 256, 256
      %2941 = vsyncadd [#allocation4], %s2940
      %s2942 = sshll.u32 [#allocation3], 4
      %s2943 = int_to_ptr.vmem [resolvable:$true] %s2942
      %2948 = dma.vmem_to_hbm [thread:$0]  %s2943, 256, %s14, [#allocation4], 128, 128, 8
    $region61: #{llama_embedding_forward.1} parent=1 // pred_fallthru
      _
    // Predicated region
    $region62: #{llama_embedding_forward.1} parent=1 // pred_check
      _
    $region63: #{llama_embedding_forward.1} parent=1 // pred_check_branch
      %2950 = sbr.rel (0) target = $region65
    $region64: #{llama_embedding_forward.1} parent=1 // pred_region
      _
    $region65: #{llama_embedding_forward.1} parent=1 // pred_fallthru
      _
    // Predicated region
    $region66: #{llama_embedding_forward.1} parent=1 // pred_check
      _
    $region67: #{llama_embedding_forward.1} parent=1 // pred_check_branch
      %2952 = sbr.rel (0) target = $region69
    $region68: #{llama_embedding_forward.1} parent=1 // pred_region
      %2953 = dma.done [#allocation4], 256
    $region69: #{llama_embedding_forward.1} parent=1 // pred_fallthru
      _
    %2954 = vsyncpa [#allocation4], 1

</llo_original>
